<compile_context>
chip_gen: v6e
topology: v6e:2x2x1
jax: 0.10.0
libtpu: 0.0.40
codegen_flags: <defaults>
</compile_context>

<pallas_src>
import functools

import numpy as np
import jax
import jax.numpy as jnp
from jax import lax
from jax.experimental import pallas as pl
from jax.experimental.pallas import tpu as pltpu


# ---------------------------------------------------------------------------
# One-time host-side parameter preprocessing (review item 1: precompute once).
# ---------------------------------------------------------------------------
def prepare_unet_down(p1, p2, x_shape, *, kernel_size=3, pad_size=1, bn_eps=1e-5):
    """Build banded conv weights, folded conv-bias+BN affines and maxpool selection
    matrices once (numpy, host side).  Returns a dict of device arrays that is passed
    unchanged to every forward call."""
    N, Cin, D, H, W = x_shape
    k, p = kernel_size, pad_size
    # banded formulation assumes the exercised cfg_conv: stride=1, 'constant,0' padding, k=3
    assert k == 3 and p == (k - 1) // 2, "banded formulation assumes kernel_size=3, pad_size=1"
    assert H % 2 == 0 and W % 2 == 0, "MaxPool3d((1,2,2),(1,2,2)) needs even H, W"

    Hp = H + 2 * p
    Do, Ho = D, H                      # stride 1, 'same' padding
    M = Do * Hp                        # matmul M rows (valid rows + H-pad garbage rows)

    def band(w):
        # w: (Cout, Cin_u, k, k, k).  For tap (kd, kh):
        #   B[wi*Cin_u + ci, wo*Cout + co] = w[co, ci, kd, kh, kw],  wi = wo + kw - p
        # (W zero-padding folded in: no entry when wi is out of range).
        w = np.asarray(w, np.float32)
        Cout_u, Cin_u = w.shape[0], w.shape[1]
        b = np.zeros((k * k, W * Cin_u, W * Cout_u), np.float32)
        for kd in range(k):
            for kh in range(k):
                for kw in range(k):
                    tap = w[:, :, kd, kh, kw].T                      # (Cin_u, Cout_u)
                    for wo in range(W):
                        wi = wo + kw - p
                        if 0 <= wi < W:
                            b[kd * k + kh,
                              wi * Cin_u:(wi + 1) * Cin_u,
                              wo * Cout_u:(wo + 1) * Cout_u] = tap
        return b

    def affine(pr):
        # Conv bias + eval-mode BN folded into a single per-channel affine, tiled over w lanes.
        sc = np.asarray(pr['gamma'], np.float32) / np.sqrt(np.asarray(pr['var'], np.float32) + bn_eps)
        sh = (np.asarray(pr['b'], np.float32) - np.asarray(pr['mean'], np.float32)) * sc \
             + np.asarray(pr['beta'], np.float32)
        return np.stack([np.tile(sc, W), np.tile(sh, W)])            # (2, W*Cout)

    Cout = int(np.asarray(p1['w']).shape[0])
    wb1 = band(p1['w'])                                              # (9, W*Cin,  W*Cout)
    wb2 = band(p2['w'])                                              # (9, W*Cout, W*Cout)
    aff = np.stack([affine(p1), affine(p2)])                         # (2, 2, W*Cout)

    # MaxPool3d((1,2,2)) as 0/1 selection matmuls (exact given bf16 inputs):
    #   wsel[0/1]: pick even/odd w lane-group        (W*Cout, (W//2)*Cout)
    #   rsel[0/1]: pick even/odd h row of each pair  (Do*(Ho//2), Do*Hp)
    wsel = np.zeros((2, W * Cout, (W // 2) * Cout), np.float32)
    for j in range(W // 2):
        for c in range(Cout):
            wsel[0, (2 * j) * Cout + c, j * Cout + c] = 1.0
            wsel[1, (2 * j + 1) * Cout + c, j * Cout + c] = 1.0
    rsel = np.zeros((2, Do * (Ho // 2), M), np.float32)
    for d in range(Do):
        for i in range(Ho // 2):
            rsel[0, d * (Ho // 2) + i, d * Hp + 2 * i] = 1.0
            rsel[1, d * (Ho // 2) + i, d * Hp + 2 * i + 1] = 1.0

    return dict(
        wb1=jnp.asarray(wb1, jnp.bfloat16),
        wb2=jnp.asarray(wb2, jnp.bfloat16),
        aff=jnp.asarray(aff, jnp.float32),
        wsel=jnp.asarray(wsel, jnp.bfloat16),
        rsel=jnp.asarray(rsel, jnp.bfloat16),
    )


# ---------------------------------------------------------------------------
# Fused kernel: unit1 -> (VMEM scratch) -> unit2 -> x1 store + fused MaxPool x2.
# ---------------------------------------------------------------------------
def _unet_down_kernel(x_ref, wb1_ref, wb2_ref, aff_ref, wsel_ref, rsel_ref,
                      x1_ref, x2_ref, hbuf_ref, *, k, Hp, Ho, Do, slope):
    # x_ref:    (1, Dp*Hp + k-1, W*Cin)   bf16  per-batch D/H-padded slab (W-pad folded in band)
    # wb1_ref:  (k*k, W*Cin,  W*Cout)     bf16  banded tap weights, unit 1
    # wb2_ref:  (k*k, W*Cout, W*Cout)     bf16  banded tap weights, unit 2
    # aff_ref:  (2, 2, W*Cout)            f32   [unit, {scale, shift}, lanes]
    # wsel_ref: (2, W*Cout, (W//2)*Cout)  bf16  maxpool W-pair lane selection
    # rsel_ref: (2, Do*(Ho//2), Do*Hp)    bf16  maxpool H-pair row selection
    # x1_ref:   (1, Do, Ho, W*Cout)       f32
    # x2_ref:   (1, Do*(Ho//2), (W//2)*Cout) f32
    # hbuf_ref: (Dp*Hp + k-1, W*Cout)     f32   padded unit-2 input slab (VMEM scratch)
    M = Do * Hp

    def conv_unit(lhs_at, wb_ref, unit):
        # 9 banded matmuls, M-batched over the whole depth range; consecutive adds into one
        # f32 accumulator (MRB-friendly on v7x).  Rows with h >= Ho are garbage, ignored later.
        acc = None
        for kd in range(k):
            for kh in range(k):
                off = kd * Hp + kh
                contrib = jnp.dot(lhs_at(off), wb_ref[kd * k + kh],
                                  preferred_element_type=jnp.float32)
                acc = contrib if acc is None else acc + contrib
        scale = aff_ref[unit, 0:1, :]                 # hoisted: loaded once per unit
        shift = aff_ref[unit, 1:2, :]
        y = acc * scale + shift                       # f32 epilogue (v5e-safe)
        return jnp.where(y >= 0.0, y, slope * y)      # LeakyReLU

    # Zero the padded unit-2 slab so all D/H padding rows read as zeros.
    hbuf_ref[...] = jnp.zeros(hbuf_ref.shape, hbuf_ref.dtype)

    # ---- unit 1 ----------------------------------------------------------
    y1 = conv_unit(lambda off: x_ref[0, off:off + M, :], wb1_ref, 0)
    # Write only the valid rows into the slab interior (skips the H-pad garbage rows).
    for d in range(Do):
        hbuf_ref[(d + 1) * Hp + 1:(d + 1) * Hp + 1 + Ho, :] = y1[d * Hp:d * Hp + Ho, :]

    # ---- unit 2 (intermediate stays f32 in VMEM; cast to bf16 only at the MXU load) ----
    y2 = conv_unit(lambda off: hbuf_ref[off:off + M, :].astype(jnp.bfloat16), wb2_ref, 1)

    # ---- x1: lane-dense (Ho, 128) f32 stores of the valid rows, per depth ----
    for d in range(Do):
        x1_ref[0, d] = y2[d * Hp:d * Hp + Ho, :]

    # ---- x2 = MaxPool3d((1,2,2),(1,2,2)) fused via 0/1 selection matmuls + f32 max ----
    y2b = y2.astype(jnp.bfloat16)
    wmax = jnp.maximum(
        jnp.dot(y2b, wsel_ref[0], preferred_element_type=jnp.float32),
        jnp.dot(y2b, wsel_ref[1], preferred_element_type=jnp.float32))
    wmaxb = wmax.astype(jnp.bfloat16)                 # exact: max of bf16-representable values
    x2_ref[0] = jnp.maximum(
        jnp.dot(rsel_ref[0], wmaxb, preferred_element_type=jnp.float32),
        jnp.dot(rsel_ref[1], wmaxb, preferred_element_type=jnp.float32))


# ---------------------------------------------------------------------------
# unetDown forward: NCDHW in/out, channels-last + banded layout internally.
# ---------------------------------------------------------------------------
def unet_down_forward(x, prep, *, relu_slope=0.005):
    wb1, wb2, aff, wsel, rsel = prep['wb1'], prep['wb2'], prep['aff'], prep['wsel'], prep['rsel']
    N, Cin, D, H, W = x.shape
    k, p = 3, 1
    assert wb1.shape[0] == k * k and wb1.shape[1] == W * Cin
    LAN = wb1.shape[2]                       # W * Cout
    Cout = LAN // W
    assert wb2.shape == (k * k, LAN, LAN)
    Dp, Hp = D + 2 * p, H + 2 * p
    Do, Ho = D, H
    M = Do * Hp
    ROWS = Dp * Hp + (k - 1)                 # +k-1 garbage rows so every tap slice is in-bounds

    # channels-last, pad D and H only (W padding is folded into the bands), flatten to 2D slab
    x_cl = jnp.transpose(x, (0, 2, 3, 4, 1))
    xp = jnp.pad(x_cl, ((0, 0), (p, p), (p, p), (0, 0), (0, 0)))
    slab = jnp.pad(xp.reshape(N, Dp * Hp, W * Cin), ((0, 0), (0, k - 1), (0, 0)))
    slab = slab.astype(jnp.bfloat16)

    kern = functools.partial(_unet_down_kernel, k=k, Hp=Hp, Ho=Ho, Do=Do, slope=relu_slope)

    x1_cl, x2_cl = pl.pallas_call(
        kern,
        out_shape=(jax.ShapeDtypeStruct((N, Do, Ho, LAN), jnp.float32),
                   jax.ShapeDtypeStruct((N, Do * (Ho // 2), (W // 2) * Cout), jnp.float32)),
        grid_spec=pltpu.PrefetchScalarGridSpec(
            num_scalar_prefetch=0,
            grid=(N,),                       # one step per batch; parallel across TCs on v7x
            in_specs=[
                pl.BlockSpec((1, ROWS, W * Cin), lambda n: (n, 0, 0)),
                pl.BlockSpec(wb1.shape, lambda n: (0, 0, 0)),   # resident for the whole grid
                pl.BlockSpec(wb2.shape, lambda n: (0, 0, 0)),
                pl.BlockSpec(aff.shape, lambda n: (0, 0, 0)),
                pl.BlockSpec(wsel.shape, lambda n: (0, 0, 0)),
                pl.BlockSpec(rsel.shape, lambda n: (0, 0, 0)),
            ],
            out_specs=[
                pl.BlockSpec((1, Do, Ho, LAN), lambda n: (n, 0, 0, 0)),
                pl.BlockSpec((1, Do * (Ho // 2), (W // 2) * Cout), lambda n: (n, 0, 0)),
            ],
            scratch_shapes=[pltpu.VMEM((ROWS, LAN), jnp.float32)],   # padded unit-2 slab
        ),
        compiler_params=pltpu.CompilerParams(dimension_semantics=("parallel",)),
    )(slab, wb1, wb2, aff, wsel, rsel)

    # back to NCDHW only at the end (tiny tensors) for PyTorch parity
    x1 = jnp.transpose(x1_cl.reshape(N, Do, Ho, W, Cout), (0, 4, 1, 2, 3))
    x2 = jnp.transpose(x2_cl.reshape(N, Do, Ho // 2, W // 2, Cout), (0, 4, 1, 2, 3))
    return x1, x2


# ---------------------------------------------------------------------------
# Pure-JAX f32 reference (independent of the kernel math).
# ---------------------------------------------------------------------------
def _ref_unit(x, w, b, gamma, beta, mean, var, *, slope, pad=1, eps=1e-5):
    dn = lax.conv_dimension_numbers(x.shape, w.shape, ('NCDHW', 'OIDHW', 'NCDHW'))
    y = lax.conv_general_dilated(x, w, (1, 1, 1), [(pad, pad)] * 3, dimension_numbers=dn)
    y = y + b[None, :, None, None, None]
    sc = gamma / jnp.sqrt(var + eps)
    sh = beta - mean * sc
    y = y * sc[None, :, None, None, None] + sh[None, :, None, None, None]
    return jnp.where(y >= 0.0, y, slope * y)


def _reference_unet_down(x, p1, p2, *, relu_slope):
    x1 = _ref_unit(x, **p1, slope=relu_slope)
    x1 = _ref_unit(x1, **p2, slope=relu_slope)
    x2 = lax.reduce_window(x1, -jnp.inf, lax.max,
                           (1, 1, 1, 2, 2), (1, 1, 1, 2, 2), 'VALID')
    return x1, x2


if __name__ == "__main__":
    in_num, out_num = 4, 8
    N, D, H, W = 2, 8, 16, 16
    k = 3
    relu_slope = 0.005
    # has_dropout=0 -> no Dropout3d; BatchNorm3d in eval mode (running stats).

    key = jax.random.PRNGKey(0)
    keys = jax.random.split(key, 13)
    x = jax.random.normal(keys[0], (N, in_num, D, H, W), dtype=jnp.float32)

    def conv_params(kw, kb, kg, kbe, km, kv, cin, cout):
        fan_in = cin * k ** 3
        return dict(
            w=jax.random.normal(kw, (cout, cin, k, k, k), jnp.float32) / jnp.sqrt(fan_in),
            b=0.1 * jax.random.normal(kb, (cout,), jnp.float32),
            gamma=1.0 + 0.1 * jax.random.normal(kg, (cout,), jnp.float32),
            beta=0.1 * jax.random.normal(kbe, (cout,), jnp.float32),
            mean=0.1 * jax.random.normal(km, (cout,), jnp.float32),
            var=jnp.abs(jax.random.normal(kv, (cout,), jnp.float32)) + 0.5,
        )

    p1 = conv_params(*keys[1:7], in_num, out_num)     # unit 1: in_num -> out_num
    p2 = conv_params(*keys[7:13], out_num, out_num)   # unit 2: out_num -> out_num

    # One-time preprocessing (bands / folded affines / pool selections) — NOT per forward call.
    prep = prepare_unet_down(p1, p2, x.shape)

    fwd = jax.jit(unet_down_forward)
    x1, x2 = fwd(x, prep)
    x1, x2 = jax.block_until_ready((x1, x2))

    r1, r2 = _reference_unet_down(x, p1, p2, relu_slope=relu_slope)

    assert x1.shape == (N, out_num, D, H, W), x1.shape
    assert x2.shape == (N, out_num, D, H // 2, W // 2), x2.shape

    def rel_err(a, ref):
        return float(jnp.max(jnp.abs(a - ref)) / (jnp.max(jnp.abs(ref)) + 1e-6))

    e1, e2 = rel_err(x1, r1), rel_err(x2, r2)
    # bf16 MXU operands compound through both units -> 3e-2 relative tolerance.
    assert e1 < 3e-2, f"x1 rel err {e1}"
    assert e2 < 3e-2, f"x2 rel err {e2}"
    print("KERNEL_OK")
</pallas_src>

<mosaic_0001>
module attributes {stable_mosaic.version = 11 : i64} {
  func.func @_unet_down_kernel(%arg0: i32, %arg1: memref<1x182x64xbf16, #tpu.memory_space<vmem>>, %arg2: memref<9x64x128xbf16, #tpu.memory_space<vmem>>, %arg3: memref<9x128x128xbf16, #tpu.memory_space<vmem>>, %arg4: memref<2x2x128xf32, #tpu.memory_space<vmem>>, %arg5: memref<2x128x64xbf16, #tpu.memory_space<vmem>>, %arg6: memref<2x64x144xbf16, #tpu.memory_space<vmem>>, %arg7: memref<1x8x16x128xf32, #tpu.memory_space<vmem>>, %arg8: memref<1x64x64xf32, #tpu.memory_space<vmem>>, %arg9: memref<182x128xf32, #tpu.memory_space<vmem>>) attributes {dimension_semantics = [#tpu.dimension_semantics<parallel>], iteration_bounds = array<i64: 2>, scalar_prefetch = 0 : i64, scratch_operands = 1 : i64, tpu.core_type = #tpu.core_type<tc>, window_params = [{transform_indices = @transform_0, window_bounds = array<i64: 1, 182, 64>}, {pipeline_mode = #tpu.pipeline_mode<synchronous>, transform_indices = @transform_1, window_bounds = array<i64: 9, 64, 128>}, {pipeline_mode = #tpu.pipeline_mode<synchronous>, transform_indices = @transform_2, window_bounds = array<i64: 9, 128, 128>}, {pipeline_mode = #tpu.pipeline_mode<synchronous>, transform_indices = @transform_3, window_bounds = array<i64: 2, 2, 128>}, {pipeline_mode = #tpu.pipeline_mode<synchronous>, transform_indices = @transform_4, window_bounds = array<i64: 2, 128, 64>}, {pipeline_mode = #tpu.pipeline_mode<synchronous>, transform_indices = @transform_5, window_bounds = array<i64: 2, 64, 144>}, {transform_indices = @transform_6, window_bounds = array<i64: 1, 8, 16, 128>}, {transform_indices = @transform_7, window_bounds = array<i64: 1, 64, 64>}]} {
    %cst = arith.constant 0.000000e+00 : f32
    %0 = vector.broadcast %cst : f32 to vector<182x128xf32>
    %c0 = arith.constant 0 : index
    %c0_0 = arith.constant 0 : index
    %1 = vector.load %arg9[%c0, %c0_0] : memref<182x128xf32, #tpu.memory_space<vmem>>, vector<182x128xf32>
    tpu.vector_store %arg9[%c0, %c0_0], %0 {strides = array<i32>} : memref<182x128xf32, #tpu.memory_space<vmem>>, vector<182x128xf32>,
    %c0_1 = arith.constant 0 : index
    %c0_2 = arith.constant 0 : index
    %c0_3 = arith.constant 0 : index
    %2 = vector.load %arg1[%c0_1, %c0_2, %c0_3] : memref<1x182x64xbf16, #tpu.memory_space<vmem>>, vector<1x144x64xbf16>
    %3 = vector.shape_cast %2 : vector<1x144x64xbf16> to vector<144x64xbf16>
    %c0_4 = arith.constant 0 : index
    %c0_5 = arith.constant 0 : index
    %c0_6 = arith.constant 0 : index
    %4 = vector.load %arg2[%c0_4, %c0_5, %c0_6] : memref<9x64x128xbf16, #tpu.memory_space<vmem>>, vector<1x64x128xbf16>
    %5 = vector.shape_cast %4 : vector<1x64x128xbf16> to vector<64x128xbf16>
    %cst_7 = arith.constant dense<0.000000e+00> : vector<144x128xf32>
    %6 = tpu.matmul %3, %5, %cst_7 {dimension_numbers = #tpu.dot_dimension_numbers<[1], [0], [0], [1], [0, 0, 1, 1], [], []>} : vector<144x64xbf16>, vector<64x128xbf16>, vector<144x128xf32> -> vector<144x128xf32>
    %c0_8 = arith.constant 0 : index
    %c1 = arith.constant 1 : index
    %c0_9 = arith.constant 0 : index
    %7 = vector.load %arg1[%c0_8, %c1, %c0_9] : memref<1x182x64xbf16, #tpu.memory_space<vmem>>, vector<1x144x64xbf16>
    %8 = vector.shape_cast %7 : vector<1x144x64xbf16> to vector<144x64xbf16>
    %c1_10 = arith.constant 1 : index
    %c0_11 = arith.constant 0 : index
    %c0_12 = arith.constant 0 : index
    %9 = vector.load %arg2[%c1_10, %c0_11, %c0_12] : memref<9x64x128xbf16, #tpu.memory_space<vmem>>, vector<1x64x128xbf16>
    %10 = vector.shape_cast %9 : vector<1x64x128xbf16> to vector<64x128xbf16>
    %cst_13 = arith.constant dense<0.000000e+00> : vector<144x128xf32>
    %11 = tpu.matmul %8, %10, %cst_13 {dimension_numbers = #tpu.dot_dimension_numbers<[1], [0], [0], [1], [0, 0, 1, 1], [], []>} : vector<144x64xbf16>, vector<64x128xbf16>, vector<144x128xf32> -> vector<144x128xf32>
    %12 = arith.addf %6, %11 : vector<144x128xf32>
    %c0_14 = arith.constant 0 : index
    %c2 = arith.constant 2 : index
    %c0_15 = arith.constant 0 : index
    %13 = vector.load %arg1[%c0_14, %c2, %c0_15] : memref<1x182x64xbf16, #tpu.memory_space<vmem>>, vector<1x144x64xbf16>
    %14 = vector.shape_cast %13 : vector<1x144x64xbf16> to vector<144x64xbf16>
    %c2_16 = arith.constant 2 : index
    %c0_17 = arith.constant 0 : index
    %c0_18 = arith.constant 0 : index
    %15 = vector.load %arg2[%c2_16, %c0_17, %c0_18] : memref<9x64x128xbf16, #tpu.memory_space<vmem>>, vector<1x64x128xbf16>
    %16 = vector.shape_cast %15 : vector<1x64x128xbf16> to vector<64x128xbf16>
    %cst_19 = arith.constant dense<0.000000e+00> : vector<144x128xf32>
    %17 = tpu.matmul %14, %16, %cst_19 {dimension_numbers = #tpu.dot_dimension_numbers<[1], [0], [0], [1], [0, 0, 1, 1], [], []>} : vector<144x64xbf16>, vector<64x128xbf16>, vector<144x128xf32> -> vector<144x128xf32>
    %18 = arith.addf %12, %17 : vector<144x128xf32>
    %c0_20 = arith.constant 0 : index
    %c18 = arith.constant 18 : index
    %c0_21 = arith.constant 0 : index
    %19 = vector.load %arg1[%c0_20, %c18, %c0_21] : memref<1x182x64xbf16, #tpu.memory_space<vmem>>, vector<1x144x64xbf16>
    %20 = vector.shape_cast %19 : vector<1x144x64xbf16> to vector<144x64xbf16>
    %c3 = arith.constant 3 : index
    %c0_22 = arith.constant 0 : index
    %c0_23 = arith.constant 0 : index
    %21 = vector.load %arg2[%c3, %c0_22, %c0_23] : memref<9x64x128xbf16, #tpu.memory_space<vmem>>, vector<1x64x128xbf16>
    %22 = vector.shape_cast %21 : vector<1x64x128xbf16> to vector<64x128xbf16>
    %cst_24 = arith.constant dense<0.000000e+00> : vector<144x128xf32>
    %23 = tpu.matmul %20, %22, %cst_24 {dimension_numbers = #tpu.dot_dimension_numbers<[1], [0], [0], [1], [0, 0, 1, 1], [], []>} : vector<144x64xbf16>, vector<64x128xbf16>, vector<144x128xf32> -> vector<144x128xf32>
    %24 = arith.addf %18, %23 : vector<144x128xf32>
    %c0_25 = arith.constant 0 : index
    %c19 = arith.constant 19 : index
    %c0_26 = arith.constant 0 : index
    %25 = vector.load %arg1[%c0_25, %c19, %c0_26] : memref<1x182x64xbf16, #tpu.memory_space<vmem>>, vector<1x144x64xbf16>
    %26 = vector.shape_cast %25 : vector<1x144x64xbf16> to vector<144x64xbf16>
    %c4 = arith.constant 4 : index
    %c0_27 = arith.constant 0 : index
    %c0_28 = arith.constant 0 : index
    %27 = vector.load %arg2[%c4, %c0_27, %c0_28] : memref<9x64x128xbf16, #tpu.memory_space<vmem>>, vector<1x64x128xbf16>
    %28 = vector.shape_cast %27 : vector<1x64x128xbf16> to vector<64x128xbf16>
    %cst_29 = arith.constant dense<0.000000e+00> : vector<144x128xf32>
    %29 = tpu.matmul %26, %28, %cst_29 {dimension_numbers = #tpu.dot_dimension_numbers<[1], [0], [0], [1], [0, 0, 1, 1], [], []>} : vector<144x64xbf16>, vector<64x128xbf16>, vector<144x128xf32> -> vector<144x128xf32>
    %30 = arith.addf %24, %29 : vector<144x128xf32>
    %c0_30 = arith.constant 0 : index
    %c20 = arith.constant 20 : index
    %c0_31 = arith.constant 0 : index
    %31 = vector.load %arg1[%c0_30, %c20, %c0_31] : memref<1x182x64xbf16, #tpu.memory_space<vmem>>, vector<1x144x64xbf16>
    %32 = vector.shape_cast %31 : vector<1x144x64xbf16> to vector<144x64xbf16>
    %c5 = arith.constant 5 : index
    %c0_32 = arith.constant 0 : index
    %c0_33 = arith.constant 0 : index
    %33 = vector.load %arg2[%c5, %c0_32, %c0_33] : memref<9x64x128xbf16, #tpu.memory_space<vmem>>, vector<1x64x128xbf16>
    %34 = vector.shape_cast %33 : vector<1x64x128xbf16> to vector<64x128xbf16>
    %cst_34 = arith.constant dense<0.000000e+00> : vector<144x128xf32>
    %35 = tpu.matmul %32, %34, %cst_34 {dimension_numbers = #tpu.dot_dimension_numbers<[1], [0], [0], [1], [0, 0, 1, 1], [], []>} : vector<144x64xbf16>, vector<64x128xbf16>, vector<144x128xf32> -> vector<144x128xf32>
    %36 = arith.addf %30, %35 : vector<144x128xf32>
    %c0_35 = arith.constant 0 : index
    %c36 = arith.constant 36 : index
    %c0_36 = arith.constant 0 : index
    %37 = vector.load %arg1[%c0_35, %c36, %c0_36] : memref<1x182x64xbf16, #tpu.memory_space<vmem>>, vector<1x144x64xbf16>
    %38 = vector.shape_cast %37 : vector<1x144x64xbf16> to vector<144x64xbf16>
    %c6 = arith.constant 6 : index
    %c0_37 = arith.constant 0 : index
    %c0_38 = arith.constant 0 : index
    %39 = vector.load %arg2[%c6, %c0_37, %c0_38] : memref<9x64x128xbf16, #tpu.memory_space<vmem>>, vector<1x64x128xbf16>
    %40 = vector.shape_cast %39 : vector<1x64x128xbf16> to vector<64x128xbf16>
    %cst_39 = arith.constant dense<0.000000e+00> : vector<144x128xf32>
    %41 = tpu.matmul %38, %40, %cst_39 {dimension_numbers = #tpu.dot_dimension_numbers<[1], [0], [0], [1], [0, 0, 1, 1], [], []>} : vector<144x64xbf16>, vector<64x128xbf16>, vector<144x128xf32> -> vector<144x128xf32>
    %42 = arith.addf %36, %41 : vector<144x128xf32>
    %c0_40 = arith.constant 0 : index
    %c37 = arith.constant 37 : index
    %c0_41 = arith.constant 0 : index
    %43 = vector.load %arg1[%c0_40, %c37, %c0_41] : memref<1x182x64xbf16, #tpu.memory_space<vmem>>, vector<1x144x64xbf16>
    %44 = vector.shape_cast %43 : vector<1x144x64xbf16> to vector<144x64xbf16>
    %c7 = arith.constant 7 : index
    %c0_42 = arith.constant 0 : index
    %c0_43 = arith.constant 0 : index
    %45 = vector.load %arg2[%c7, %c0_42, %c0_43] : memref<9x64x128xbf16, #tpu.memory_space<vmem>>, vector<1x64x128xbf16>
    %46 = vector.shape_cast %45 : vector<1x64x128xbf16> to vector<64x128xbf16>
    %cst_44 = arith.constant dense<0.000000e+00> : vector<144x128xf32>
    %47 = tpu.matmul %44, %46, %cst_44 {dimension_numbers = #tpu.dot_dimension_numbers<[1], [0], [0], [1], [0, 0, 1, 1], [], []>} : vector<144x64xbf16>, vector<64x128xbf16>, vector<144x128xf32> -> vector<144x128xf32>
    %48 = arith.addf %42, %47 : vector<144x128xf32>
    %c0_45 = arith.constant 0 : index
    %c38 = arith.constant 38 : index
    %c0_46 = arith.constant 0 : index
    %49 = vector.load %arg1[%c0_45, %c38, %c0_46] : memref<1x182x64xbf16, #tpu.memory_space<vmem>>, vector<1x144x64xbf16>
    %50 = vector.shape_cast %49 : vector<1x144x64xbf16> to vector<144x64xbf16>
    %c8 = arith.constant 8 : index
    %c0_47 = arith.constant 0 : index
    %c0_48 = arith.constant 0 : index
    %51 = vector.load %arg2[%c8, %c0_47, %c0_48] : memref<9x64x128xbf16, #tpu.memory_space<vmem>>, vector<1x64x128xbf16>
    %52 = vector.shape_cast %51 : vector<1x64x128xbf16> to vector<64x128xbf16>
    %cst_49 = arith.constant dense<0.000000e+00> : vector<144x128xf32>
    %53 = tpu.matmul %50, %52, %cst_49 {dimension_numbers = #tpu.dot_dimension_numbers<[1], [0], [0], [1], [0, 0, 1, 1], [], []>} : vector<144x64xbf16>, vector<64x128xbf16>, vector<144x128xf32> -> vector<144x128xf32>
    %54 = arith.addf %48, %53 : vector<144x128xf32>
    %c0_50 = arith.constant 0 : index
    %c0_51 = arith.constant 0 : index
    %c0_52 = arith.constant 0 : index
    %55 = vector.load %arg4[%c0_50, %c0_51, %c0_52] : memref<2x2x128xf32, #tpu.memory_space<vmem>>, vector<1x1x128xf32>
    %56 = vector.shape_cast %55 : vector<1x1x128xf32> to vector<1x128xf32>
    %c0_53 = arith.constant 0 : index
    %c1_54 = arith.constant 1 : index
    %c0_55 = arith.constant 0 : index
    %57 = vector.load %arg4[%c0_53, %c1_54, %c0_55] : memref<2x2x128xf32, #tpu.memory_space<vmem>>, vector<1x1x128xf32>
    %58 = vector.shape_cast %57 : vector<1x1x128xf32> to vector<1x128xf32>
    %59 = vector.broadcast %56 : vector<1x128xf32> to vector<144x128xf32>
    %60 = arith.mulf %54, %59 : vector<144x128xf32>
    %61 = vector.broadcast %58 : vector<1x128xf32> to vector<144x128xf32>
    %62 = arith.addf %60, %61 : vector<144x128xf32>
    %cst_56 = arith.constant 0.000000e+00 : f32
    %63 = vector.broadcast %cst_56 : f32 to vector<144x128xf32>
    %64 = arith.cmpf oge, %62, %63 : vector<144x128xf32>
    %cst_57 = arith.constant 5.000000e-03 : f32
    %65 = vector.broadcast %cst_57 : f32 to vector<144x128xf32>
    %66 = arith.mulf %65, %62 : vector<144x128xf32>
    %67 = arith.select %64, %62, %66 : vector<144x128xi1>, vector<144x128xf32>
    %68 = vector.extract_strided_slice %67 {offsets = [0, 0], sizes = [16, 128], strides = [1, 1]} : vector<144x128xf32> to vector<16x128xf32>
    %c19_58 = arith.constant 19 : index
    %c0_59 = arith.constant 0 : index
    %69 = vector.load %arg9[%c19_58, %c0_59] : memref<182x128xf32, #tpu.memory_space<vmem>>, vector<16x128xf32>
    tpu.vector_store %arg9[%c19_58, %c0_59], %68 {strides = array<i32>} : memref<182x128xf32, #tpu.memory_space<vmem>>, vector<16x128xf32>,
    %70 = vector.extract_strided_slice %67 {offsets = [18, 0], sizes = [16, 128], strides = [1, 1]} : vector<144x128xf32> to vector<16x128xf32>
    %c37_60 = arith.constant 37 : index
    %c0_61 = arith.constant 0 : index
    %71 = vector.load %arg9[%c37_60, %c0_61] : memref<182x128xf32, #tpu.memory_space<vmem>>, vector<16x128xf32>
    tpu.vector_store %arg9[%c37_60, %c0_61], %70 {strides = array<i32>} : memref<182x128xf32, #tpu.memory_space<vmem>>, vector<16x128xf32>,
    %72 = vector.extract_strided_slice %67 {offsets = [36, 0], sizes = [16, 128], strides = [1, 1]} : vector<144x128xf32> to vector<16x128xf32>
    %c55 = arith.constant 55 : index
    %c0_62 = arith.constant 0 : index
    %73 = vector.load %arg9[%c55, %c0_62] : memref<182x128xf32, #tpu.memory_space<vmem>>, vector<16x128xf32>
    tpu.vector_store %arg9[%c55, %c0_62], %72 {strides = array<i32>} : memref<182x128xf32, #tpu.memory_space<vmem>>, vector<16x128xf32>,
    %74 = vector.extract_strided_slice %67 {offsets = [54, 0], sizes = [16, 128], strides = [1, 1]} : vector<144x128xf32> to vector<16x128xf32>
    %c73 = arith.constant 73 : index
    %c0_63 = arith.constant 0 : index
    %75 = vector.load %arg9[%c73, %c0_63] : memref<182x128xf32, #tpu.memory_space<vmem>>, vector<16x128xf32>
    tpu.vector_store %arg9[%c73, %c0_63], %74 {strides = array<i32>} : memref<182x128xf32, #tpu.memory_space<vmem>>, vector<16x128xf32>,
    %76 = vector.extract_strided_slice %67 {offsets = [72, 0], sizes = [16, 128], strides = [1, 1]} : vector<144x128xf32> to vector<16x128xf32>
    %c91 = arith.constant 91 : index
    %c0_64 = arith.constant 0 : index
    %77 = vector.load %arg9[%c91, %c0_64] : memref<182x128xf32, #tpu.memory_space<vmem>>, vector<16x128xf32>
    tpu.vector_store %arg9[%c91, %c0_64], %76 {strides = array<i32>} : memref<182x128xf32, #tpu.memory_space<vmem>>, vector<16x128xf32>,
    %78 = vector.extract_strided_slice %67 {offsets = [90, 0], sizes = [16, 128], strides = [1, 1]} : vector<144x128xf32> to vector<16x128xf32>
    %c109 = arith.constant 109 : index
    %c0_65 = arith.constant 0 : index
    %79 = vector.load %arg9[%c109, %c0_65] : memref<182x128xf32, #tpu.memory_space<vmem>>, vector<16x128xf32>
    tpu.vector_store %arg9[%c109, %c0_65], %78 {strides = array<i32>} : memref<182x128xf32, #tpu.memory_space<vmem>>, vector<16x128xf32>,
    %80 = vector.extract_strided_slice %67 {offsets = [108, 0], sizes = [16, 128], strides = [1, 1]} : vector<144x128xf32> to vector<16x128xf32>
    %c127 = arith.constant 127 : index
    %c0_66 = arith.constant 0 : index
    %81 = vector.load %arg9[%c127, %c0_66] : memref<182x128xf32, #tpu.memory_space<vmem>>, vector<16x128xf32>
    tpu.vector_store %arg9[%c127, %c0_66], %80 {strides = array<i32>} : memref<182x128xf32, #tpu.memory_space<vmem>>, vector<16x128xf32>,
    %82 = vector.extract_strided_slice %67 {offsets = [126, 0], sizes = [16, 128], strides = [1, 1]} : vector<144x128xf32> to vector<16x128xf32>
    %c145 = arith.constant 145 : index
    %c0_67 = arith.constant 0 : index
    %83 = vector.load %arg9[%c145, %c0_67] : memref<182x128xf32, #tpu.memory_space<vmem>>, vector<16x128xf32>
    tpu.vector_store %arg9[%c145, %c0_67], %82 {strides = array<i32>} : memref<182x128xf32, #tpu.memory_space<vmem>>, vector<16x128xf32>,
    %c0_68 = arith.constant 0 : index
    %c0_69 = arith.constant 0 : index
    %84 = vector.load %arg9[%c0_68, %c0_69] : memref<182x128xf32, #tpu.memory_space<vmem>>, vector<144x128xf32>
    %85 = arith.truncf %84 : vector<144x128xf32> to vector<144x128xbf16>
    %c0_70 = arith.constant 0 : index
    %c0_71 = arith.constant 0 : index
    %c0_72 = arith.constant 0 : index
    %86 = vector.load %arg3[%c0_70, %c0_71, %c0_72] : memref<9x128x128xbf16, #tpu.memory_space<vmem>>, vector<1x128x128xbf16>
    %87 = vector.shape_cast %86 : vector<1x128x128xbf16> to vector<128x128xbf16>
    %cst_73 = arith.constant dense<0.000000e+00> : vector<144x128xf32>
    %88 = tpu.matmul %85, %87, %cst_73 {dimension_numbers = #tpu.dot_dimension_numbers<[1], [0], [0], [1], [0, 0, 1, 1], [], []>} : vector<144x128xbf16>, vector<128x128xbf16>, vector<144x128xf32> -> vector<144x128xf32>
    %c1_74 = arith.constant 1 : index
    %c0_75 = arith.constant 0 : index
    %89 = vector.load %arg9[%c1_74, %c0_75] : memref<182x128xf32, #tpu.memory_space<vmem>>, vector<144x128xf32>
    %90 = arith.truncf %89 : vector<144x128xf32> to vector<144x128xbf16>
    %c1_76 = arith.constant 1 : index
    %c0_77 = arith.constant 0 : index
    %c0_78 = arith.constant 0 : index
    %91 = vector.load %arg3[%c1_76, %c0_77, %c0_78] : memref<9x128x128xbf16, #tpu.memory_space<vmem>>, vector<1x128x128xbf16>
    %92 = vector.shape_cast %91 : vector<1x128x128xbf16> to vector<128x128xbf16>
    %cst_79 = arith.constant dense<0.000000e+00> : vector<144x128xf32>
    %93 = tpu.matmul %90, %92, %cst_79 {dimension_numbers = #tpu.dot_dimension_numbers<[1], [0], [0], [1], [0, 0, 1, 1], [], []>} : vector<144x128xbf16>, vector<128x128xbf16>, vector<144x128xf32> -> vector<144x128xf32>
    %94 = arith.addf %88, %93 : vector<144x128xf32>
    %c2_80 = arith.constant 2 : index
    %c0_81 = arith.constant 0 : index
    %95 = vector.load %arg9[%c2_80, %c0_81] : memref<182x128xf32, #tpu.memory_space<vmem>>, vector<144x128xf32>
    %96 = arith.truncf %95 : vector<144x128xf32> to vector<144x128xbf16>
    %c2_82 = arith.constant 2 : index
    %c0_83 = arith.constant 0 : index
    %c0_84 = arith.constant 0 : index
    %97 = vector.load %arg3[%c2_82, %c0_83, %c0_84] : memref<9x128x128xbf16, #tpu.memory_space<vmem>>, vector<1x128x128xbf16>
    %98 = vector.shape_cast %97 : vector<1x128x128xbf16> to vector<128x128xbf16>
    %cst_85 = arith.constant dense<0.000000e+00> : vector<144x128xf32>
    %99 = tpu.matmul %96, %98, %cst_85 {dimension_numbers = #tpu.dot_dimension_numbers<[1], [0], [0], [1], [0, 0, 1, 1], [], []>} : vector<144x128xbf16>, vector<128x128xbf16>, vector<144x128xf32> -> vector<144x128xf32>
    %100 = arith.addf %94, %99 : vector<144x128xf32>
    %c18_86 = arith.constant 18 : index
    %c0_87 = arith.constant 0 : index
    %101 = vector.load %arg9[%c18_86, %c0_87] : memref<182x128xf32, #tpu.memory_space<vmem>>, vector<144x128xf32>
    %102 = arith.truncf %101 : vector<144x128xf32> to vector<144x128xbf16>
    %c3_88 = arith.constant 3 : index
    %c0_89 = arith.constant 0 : index
    %c0_90 = arith.constant 0 : index
    %103 = vector.load %arg3[%c3_88, %c0_89, %c0_90] : memref<9x128x128xbf16, #tpu.memory_space<vmem>>, vector<1x128x128xbf16>
    %104 = vector.shape_cast %103 : vector<1x128x128xbf16> to vector<128x128xbf16>
    %cst_91 = arith.constant dense<0.000000e+00> : vector<144x128xf32>
    %105 = tpu.matmul %102, %104, %cst_91 {dimension_numbers = #tpu.dot_dimension_numbers<[1], [0], [0], [1], [0, 0, 1, 1], [], []>} : vector<144x128xbf16>, vector<128x128xbf16>, vector<144x128xf32> -> vector<144x128xf32>
    %106 = arith.addf %100, %105 : vector<144x128xf32>
    %c19_92 = arith.constant 19 : index
    %c0_93 = arith.constant 0 : index
    %107 = vector.load %arg9[%c19_92, %c0_93] : memref<182x128xf32, #tpu.memory_space<vmem>>, vector<144x128xf32>
    %108 = arith.truncf %107 : vector<144x128xf32> to vector<144x128xbf16>
    %c4_94 = arith.constant 4 : index
    %c0_95 = arith.constant 0 : index
    %c0_96 = arith.constant 0 : index
    %109 = vector.load %arg3[%c4_94, %c0_95, %c0_96] : memref<9x128x128xbf16, #tpu.memory_space<vmem>>, vector<1x128x128xbf16>
    %110 = vector.shape_cast %109 : vector<1x128x128xbf16> to vector<128x128xbf16>
    %cst_97 = arith.constant dense<0.000000e+00> : vector<144x128xf32>
    %111 = tpu.matmul %108, %110, %cst_97 {dimension_numbers = #tpu.dot_dimension_numbers<[1], [0], [0], [1], [0, 0, 1, 1], [], []>} : vector<144x128xbf16>, vector<128x128xbf16>, vector<144x128xf32> -> vector<144x128xf32>
    %112 = arith.addf %106, %111 : vector<144x128xf32>
    %c20_98 = arith.constant 20 : index
    %c0_99 = arith.constant 0 : index
    %113 = vector.load %arg9[%c20_98, %c0_99] : memref<182x128xf32, #tpu.memory_space<vmem>>, vector<144x128xf32>
    %114 = arith.truncf %113 : vector<144x128xf32> to vector<144x128xbf16>
    %c5_100 = arith.constant 5 : index
    %c0_101 = arith.constant 0 : index
    %c0_102 = arith.constant 0 : index
    %115 = vector.load %arg3[%c5_100, %c0_101, %c0_102] : memref<9x128x128xbf16, #tpu.memory_space<vmem>>, vector<1x128x128xbf16>
    %116 = vector.shape_cast %115 : vector<1x128x128xbf16> to vector<128x128xbf16>
    %cst_103 = arith.constant dense<0.000000e+00> : vector<144x128xf32>
    %117 = tpu.matmul %114, %116, %cst_103 {dimension_numbers = #tpu.dot_dimension_numbers<[1], [0], [0], [1], [0, 0, 1, 1], [], []>} : vector<144x128xbf16>, vector<128x128xbf16>, vector<144x128xf32> -> vector<144x128xf32>
    %118 = arith.addf %112, %117 : vector<144x128xf32>
    %c36_104 = arith.constant 36 : index
    %c0_105 = arith.constant 0 : index
    %119 = vector.load %arg9[%c36_104, %c0_105] : memref<182x128xf32, #tpu.memory_space<vmem>>, vector<144x128xf32>
    %120 = arith.truncf %119 : vector<144x128xf32> to vector<144x128xbf16>
    %c6_106 = arith.constant 6 : index
    %c0_107 = arith.constant 0 : index
    %c0_108 = arith.constant 0 : index
    %121 = vector.load %arg3[%c6_106, %c0_107, %c0_108] : memref<9x128x128xbf16, #tpu.memory_space<vmem>>, vector<1x128x128xbf16>
    %122 = vector.shape_cast %121 : vector<1x128x128xbf16> to vector<128x128xbf16>
    %cst_109 = arith.constant dense<0.000000e+00> : vector<144x128xf32>
    %123 = tpu.matmul %120, %122, %cst_109 {dimension_numbers = #tpu.dot_dimension_numbers<[1], [0], [0], [1], [0, 0, 1, 1], [], []>} : vector<144x128xbf16>, vector<128x128xbf16>, vector<144x128xf32> -> vector<144x128xf32>
    %124 = arith.addf %118, %123 : vector<144x128xf32>
    %c37_110 = arith.constant 37 : index
    %c0_111 = arith.constant 0 : index
    %125 = vector.load %arg9[%c37_110, %c0_111] : memref<182x128xf32, #tpu.memory_space<vmem>>, vector<144x128xf32>
    %126 = arith.truncf %125 : vector<144x128xf32> to vector<144x128xbf16>
    %c7_112 = arith.constant 7 : index
    %c0_113 = arith.constant 0 : index
    %c0_114 = arith.constant 0 : index
    %127 = vector.load %arg3[%c7_112, %c0_113, %c0_114] : memref<9x128x128xbf16, #tpu.memory_space<vmem>>, vector<1x128x128xbf16>
    %128 = vector.shape_cast %127 : vector<1x128x128xbf16> to vector<128x128xbf16>
    %cst_115 = arith.constant dense<0.000000e+00> : vector<144x128xf32>
    %129 = tpu.matmul %126, %128, %cst_115 {dimension_numbers = #tpu.dot_dimension_numbers<[1], [0], [0], [1], [0, 0, 1, 1], [], []>} : vector<144x128xbf16>, vector<128x128xbf16>, vector<144x128xf32> -> vector<144x128xf32>
    %130 = arith.addf %124, %129 : vector<144x128xf32>
    %c38_116 = arith.constant 38 : index
    %c0_117 = arith.constant 0 : index
    %131 = vector.load %arg9[%c38_116, %c0_117] : memref<182x128xf32, #tpu.memory_space<vmem>>, vector<144x128xf32>
    %132 = arith.truncf %131 : vector<144x128xf32> to vector<144x128xbf16>
    %c8_118 = arith.constant 8 : index
    %c0_119 = arith.constant 0 : index
    %c0_120 = arith.constant 0 : index
    %133 = vector.load %arg3[%c8_118, %c0_119, %c0_120] : memref<9x128x128xbf16, #tpu.memory_space<vmem>>, vector<1x128x128xbf16>
    %134 = vector.shape_cast %133 : vector<1x128x128xbf16> to vector<128x128xbf16>
    %cst_121 = arith.constant dense<0.000000e+00> : vector<144x128xf32>
    %135 = tpu.matmul %132, %134, %cst_121 {dimension_numbers = #tpu.dot_dimension_numbers<[1], [0], [0], [1], [0, 0, 1, 1], [], []>} : vector<144x128xbf16>, vector<128x128xbf16>, vector<144x128xf32> -> vector<144x128xf32>
    %136 = arith.addf %130, %135 : vector<144x128xf32>
    %c1_122 = arith.constant 1 : index
    %c0_123 = arith.constant 0 : index
    %c0_124 = arith.constant 0 : index
    %137 = vector.load %arg4[%c1_122, %c0_123, %c0_124] : memref<2x2x128xf32, #tpu.memory_space<vmem>>, vector<1x1x128xf32>
    %138 = vector.shape_cast %137 : vector<1x1x128xf32> to vector<1x128xf32>
    %c1_125 = arith.constant 1 : index
    %c1_126 = arith.constant 1 : index
    %c0_127 = arith.constant 0 : index
    %139 = vector.load %arg4[%c1_125, %c1_126, %c0_127] : memref<2x2x128xf32, #tpu.memory_space<vmem>>, vector<1x1x128xf32>
    %140 = vector.shape_cast %139 : vector<1x1x128xf32> to vector<1x128xf32>
    %141 = vector.broadcast %138 : vector<1x128xf32> to vector<144x128xf32>
    %142 = arith.mulf %136, %141 : vector<144x128xf32>
    %143 = vector.broadcast %140 : vector<1x128xf32> to vector<144x128xf32>
    %144 = arith.addf %142, %143 : vector<144x128xf32>
    %cst_128 = arith.constant 0.000000e+00 : f32
    %145 = vector.broadcast %cst_128 : f32 to vector<144x128xf32>
    %146 = arith.cmpf oge, %144, %145 : vector<144x128xf32>
    %cst_129 = arith.constant 5.000000e-03 : f32
    %147 = vector.broadcast %cst_129 : f32 to vector<144x128xf32>
    %148 = arith.mulf %147, %144 : vector<144x128xf32>
    %149 = arith.select %146, %144, %148 : vector<144x128xi1>, vector<144x128xf32>
    %150 = vector.extract_strided_slice %149 {offsets = [0, 0], sizes = [16, 128], strides = [1, 1]} : vector<144x128xf32> to vector<16x128xf32>
    %c0_130 = arith.constant 0 : index
    %c0_131 = arith.constant 0 : index
    %c0_132 = arith.constant 0 : index
    %c0_133 = arith.constant 0 : index
    %151 = vector.load %arg7[%c0_130, %c0_131, %c0_132, %c0_133] : memref<1x8x16x128xf32, #tpu.memory_space<vmem>>, vector<1x1x16x128xf32>
    %152 = vector.shape_cast %151 : vector<1x1x16x128xf32> to vector<16x128xf32>
    %153 = vector.shape_cast %150 : vector<16x128xf32> to vector<1x1x16x128xf32>
    tpu.vector_store %arg7[%c0_130, %c0_131, %c0_132, %c0_133], %153 {strides = array<i32>} : memref<1x8x16x128xf32, #tpu.memory_space<vmem>>, vector<1x1x16x128xf32>,
    %154 = vector.extract_strided_slice %149 {offsets = [18, 0], sizes = [16, 128], strides = [1, 1]} : vector<144x128xf32> to vector<16x128xf32>
    %c0_134 = arith.constant 0 : index
    %c1_135 = arith.constant 1 : index
    %c0_136 = arith.constant 0 : index
    %c0_137 = arith.constant 0 : index
    %155 = vector.load %arg7[%c0_134, %c1_135, %c0_136, %c0_137] : memref<1x8x16x128xf32, #tpu.memory_space<vmem>>, vector<1x1x16x128xf32>
    %156 = vector.shape_cast %155 : vector<1x1x16x128xf32> to vector<16x128xf32>
    %157 = vector.shape_cast %154 : vector<16x128xf32> to vector<1x1x16x128xf32>
    tpu.vector_store %arg7[%c0_134, %c1_135, %c0_136, %c0_137], %157 {strides = array<i32>} : memref<1x8x16x128xf32, #tpu.memory_space<vmem>>, vector<1x1x16x128xf32>,
    %158 = vector.extract_strided_slice %149 {offsets = [36, 0], sizes = [16, 128], strides = [1, 1]} : vector<144x128xf32> to vector<16x128xf32>
    %c0_138 = arith.constant 0 : index
    %c2_139 = arith.constant 2 : index
    %c0_140 = arith.constant 0 : index
    %c0_141 = arith.constant 0 : index
    %159 = vector.load %arg7[%c0_138, %c2_139, %c0_140, %c0_141] : memref<1x8x16x128xf32, #tpu.memory_space<vmem>>, vector<1x1x16x128xf32>
    %160 = vector.shape_cast %159 : vector<1x1x16x128xf32> to vector<16x128xf32>
    %161 = vector.shape_cast %158 : vector<16x128xf32> to vector<1x1x16x128xf32>
    tpu.vector_store %arg7[%c0_138, %c2_139, %c0_140, %c0_141], %161 {strides = array<i32>} : memref<1x8x16x128xf32, #tpu.memory_space<vmem>>, vector<1x1x16x128xf32>,
    %162 = vector.extract_strided_slice %149 {offsets = [54, 0], sizes = [16, 128], strides = [1, 1]} : vector<144x128xf32> to vector<16x128xf32>
    %c0_142 = arith.constant 0 : index
    %c3_143 = arith.constant 3 : index
    %c0_144 = arith.constant 0 : index
    %c0_145 = arith.constant 0 : index
    %163 = vector.load %arg7[%c0_142, %c3_143, %c0_144, %c0_145] : memref<1x8x16x128xf32, #tpu.memory_space<vmem>>, vector<1x1x16x128xf32>
    %164 = vector.shape_cast %163 : vector<1x1x16x128xf32> to vector<16x128xf32>
    %165 = vector.shape_cast %162 : vector<16x128xf32> to vector<1x1x16x128xf32>
    tpu.vector_store %arg7[%c0_142, %c3_143, %c0_144, %c0_145], %165 {strides = array<i32>} : memref<1x8x16x128xf32, #tpu.memory_space<vmem>>, vector<1x1x16x128xf32>,
    %166 = vector.extract_strided_slice %149 {offsets = [72, 0], sizes = [16, 128], strides = [1, 1]} : vector<144x128xf32> to vector<16x128xf32>
    %c0_146 = arith.constant 0 : index
    %c4_147 = arith.constant 4 : index
    %c0_148 = arith.constant 0 : index
    %c0_149 = arith.constant 0 : index
    %167 = vector.load %arg7[%c0_146, %c4_147, %c0_148, %c0_149] : memref<1x8x16x128xf32, #tpu.memory_space<vmem>>, vector<1x1x16x128xf32>
    %168 = vector.shape_cast %167 : vector<1x1x16x128xf32> to vector<16x128xf32>
    %169 = vector.shape_cast %166 : vector<16x128xf32> to vector<1x1x16x128xf32>
    tpu.vector_store %arg7[%c0_146, %c4_147, %c0_148, %c0_149], %169 {strides = array<i32>} : memref<1x8x16x128xf32, #tpu.memory_space<vmem>>, vector<1x1x16x128xf32>,
    %170 = vector.extract_strided_slice %149 {offsets = [90, 0], sizes = [16, 128], strides = [1, 1]} : vector<144x128xf32> to vector<16x128xf32>
    %c0_150 = arith.constant 0 : index
    %c5_151 = arith.constant 5 : index
    %c0_152 = arith.constant 0 : index
    %c0_153 = arith.constant 0 : index
    %171 = vector.load %arg7[%c0_150, %c5_151, %c0_152, %c0_153] : memref<1x8x16x128xf32, #tpu.memory_space<vmem>>, vector<1x1x16x128xf32>
    %172 = vector.shape_cast %171 : vector<1x1x16x128xf32> to vector<16x128xf32>
    %173 = vector.shape_cast %170 : vector<16x128xf32> to vector<1x1x16x128xf32>
    tpu.vector_store %arg7[%c0_150, %c5_151, %c0_152, %c0_153], %173 {strides = array<i32>} : memref<1x8x16x128xf32, #tpu.memory_space<vmem>>, vector<1x1x16x128xf32>,
    %174 = vector.extract_strided_slice %149 {offsets = [108, 0], sizes = [16, 128], strides = [1, 1]} : vector<144x128xf32> to vector<16x128xf32>
    %c0_154 = arith.constant 0 : index
    %c6_155 = arith.constant 6 : index
    %c0_156 = arith.constant 0 : index
    %c0_157 = arith.constant 0 : index
    %175 = vector.load %arg7[%c0_154, %c6_155, %c0_156, %c0_157] : memref<1x8x16x128xf32, #tpu.memory_space<vmem>>, vector<1x1x16x128xf32>
    %176 = vector.shape_cast %175 : vector<1x1x16x128xf32> to vector<16x128xf32>
    %177 = vector.shape_cast %174 : vector<16x128xf32> to vector<1x1x16x128xf32>
    tpu.vector_store %arg7[%c0_154, %c6_155, %c0_156, %c0_157], %177 {strides = array<i32>} : memref<1x8x16x128xf32, #tpu.memory_space<vmem>>, vector<1x1x16x128xf32>,
    %178 = vector.extract_strided_slice %149 {offsets = [126, 0], sizes = [16, 128], strides = [1, 1]} : vector<144x128xf32> to vector<16x128xf32>
    %c0_158 = arith.constant 0 : index
    %c7_159 = arith.constant 7 : index
    %c0_160 = arith.constant 0 : index
    %c0_161 = arith.constant 0 : index
    %179 = vector.load %arg7[%c0_158, %c7_159, %c0_160, %c0_161] : memref<1x8x16x128xf32, #tpu.memory_space<vmem>>, vector<1x1x16x128xf32>
    %180 = vector.shape_cast %179 : vector<1x1x16x128xf32> to vector<16x128xf32>
    %181 = vector.shape_cast %178 : vector<16x128xf32> to vector<1x1x16x128xf32>
    tpu.vector_store %arg7[%c0_158, %c7_159, %c0_160, %c0_161], %181 {strides = array<i32>} : memref<1x8x16x128xf32, #tpu.memory_space<vmem>>, vector<1x1x16x128xf32>,
    %182 = arith.truncf %149 : vector<144x128xf32> to vector<144x128xbf16>
    %c0_162 = arith.constant 0 : index
    %c0_163 = arith.constant 0 : index
    %c0_164 = arith.constant 0 : index
    %183 = vector.load %arg5[%c0_162, %c0_163, %c0_164] : memref<2x128x64xbf16, #tpu.memory_space<vmem>>, vector<1x128x64xbf16>
    %184 = vector.shape_cast %183 : vector<1x128x64xbf16> to vector<128x64xbf16>
    %cst_165 = arith.constant dense<0.000000e+00> : vector<144x64xf32>
    %185 = tpu.matmul %182, %184, %cst_165 {dimension_numbers = #tpu.dot_dimension_numbers<[1], [0], [0], [1], [0, 0, 1, 1], [], []>} : vector<144x128xbf16>, vector<128x64xbf16>, vector<144x64xf32> -> vector<144x64xf32>
    %c1_166 = arith.constant 1 : index
    %c0_167 = arith.constant 0 : index
    %c0_168 = arith.constant 0 : index
    %186 = vector.load %arg5[%c1_166, %c0_167, %c0_168] : memref<2x128x64xbf16, #tpu.memory_space<vmem>>, vector<1x128x64xbf16>
    %187 = vector.shape_cast %186 : vector<1x128x64xbf16> to vector<128x64xbf16>
    %cst_169 = arith.constant dense<0.000000e+00> : vector<144x64xf32>
    %188 = tpu.matmul %182, %187, %cst_169 {dimension_numbers = #tpu.dot_dimension_numbers<[1], [0], [0], [1], [0, 0, 1, 1], [], []>} : vector<144x128xbf16>, vector<128x64xbf16>, vector<144x64xf32> -> vector<144x64xf32>
    %189 = arith.maximumf %185, %188 : vector<144x64xf32>
    %190 = arith.truncf %189 : vector<144x64xf32> to vector<144x64xbf16>
    %c0_170 = arith.constant 0 : index
    %c0_171 = arith.constant 0 : index
    %c0_172 = arith.constant 0 : index
    %191 = vector.load %arg6[%c0_170, %c0_171, %c0_172] : memref<2x64x144xbf16, #tpu.memory_space<vmem>>, vector<1x64x144xbf16>
    %192 = vector.shape_cast %191 : vector<1x64x144xbf16> to vector<64x144xbf16>
    %cst_173 = arith.constant dense<0.000000e+00> : vector<64x64xf32>
    %193 = tpu.matmul %192, %190, %cst_173 {dimension_numbers = #tpu.dot_dimension_numbers<[1], [0], [0], [1], [0, 0, 1, 1], [], []>} : vector<64x144xbf16>, vector<144x64xbf16>, vector<64x64xf32> -> vector<64x64xf32>
    %c1_174 = arith.constant 1 : index
    %c0_175 = arith.constant 0 : index
    %c0_176 = arith.constant 0 : index
    %194 = vector.load %arg6[%c1_174, %c0_175, %c0_176] : memref<2x64x144xbf16, #tpu.memory_space<vmem>>, vector<1x64x144xbf16>
    %195 = vector.shape_cast %194 : vector<1x64x144xbf16> to vector<64x144xbf16>
    %cst_177 = arith.constant dense<0.000000e+00> : vector<64x64xf32>
    %196 = tpu.matmul %195, %190, %cst_177 {dimension_numbers = #tpu.dot_dimension_numbers<[1], [0], [0], [1], [0, 0, 1, 1], [], []>} : vector<64x144xbf16>, vector<144x64xbf16>, vector<64x64xf32> -> vector<64x64xf32>
    %197 = arith.maximumf %193, %196 : vector<64x64xf32>
    %c0_178 = arith.constant 0 : index
    %c0_179 = arith.constant 0 : index
    %c0_180 = arith.constant 0 : index
    %198 = vector.load %arg8[%c0_178, %c0_179, %c0_180] : memref<1x64x64xf32, #tpu.memory_space<vmem>>, vector<1x64x64xf32>
    %199 = vector.shape_cast %198 : vector<1x64x64xf32> to vector<64x64xf32>
    %200 = vector.shape_cast %197 : vector<64x64xf32> to vector<1x64x64xf32>
    tpu.vector_store %arg8[%c0_178, %c0_179, %c0_180], %200 {strides = array<i32>} : memref<1x64x64xf32, #tpu.memory_space<vmem>>, vector<1x64x64xf32>,
    return
  }
  func.func @transform_0(%arg0: i32) -> (i32, i32, i32) {
    %c0_i32 = arith.constant 0 : i32
    %c0_i32_0 = arith.constant 0 : i32
    %c0_i32_1 = arith.constant 0 : i32
    return %arg0, %c0_i32, %c0_i32_0 : i32, i32, i32
  }
  func.func @transform_1(%arg0: i32) -> (i32, i32, i32) {
    %c0_i32 = arith.constant 0 : i32
    %c0_i32_0 = arith.constant 0 : i32
    %c0_i32_1 = arith.constant 0 : i32
    %c0_i32_2 = arith.constant 0 : i32
    return %c0_i32, %c0_i32_0, %c0_i32_1 : i32, i32, i32
  }
  func.func @transform_2(%arg0: i32) -> (i32, i32, i32) {
    %c0_i32 = arith.constant 0 : i32
    %c0_i32_0 = arith.constant 0 : i32
    %c0_i32_1 = arith.constant 0 : i32
    %c0_i32_2 = arith.constant 0 : i32
    return %c0_i32, %c0_i32_0, %c0_i32_1 : i32, i32, i32
  }
  func.func @transform_3(%arg0: i32) -> (i32, i32, i32) {
    %c0_i32 = arith.constant 0 : i32
    %c0_i32_0 = arith.constant 0 : i32
    %c0_i32_1 = arith.constant 0 : i32
    %c0_i32_2 = arith.constant 0 : i32
    return %c0_i32, %c0_i32_0, %c0_i32_1 : i32, i32, i32
  }
  func.func @transform_4(%arg0: i32) -> (i32, i32, i32) {
    %c0_i32 = arith.constant 0 : i32
    %c0_i32_0 = arith.constant 0 : i32
    %c0_i32_1 = arith.constant 0 : i32
    %c0_i32_2 = arith.constant 0 : i32
    return %c0_i32, %c0_i32_0, %c0_i32_1 : i32, i32, i32
  }
  func.func @transform_5(%arg0: i32) -> (i32, i32, i32) {
    %c0_i32 = arith.constant 0 : i32
    %c0_i32_0 = arith.constant 0 : i32
    %c0_i32_1 = arith.constant 0 : i32
    %c0_i32_2 = arith.constant 0 : i32
    return %c0_i32, %c0_i32_0, %c0_i32_1 : i32, i32, i32
  }
  func.func @transform_6(%arg0: i32) -> (i32, i32, i32, i32) {
    %c0_i32 = arith.constant 0 : i32
    %c0_i32_0 = arith.constant 0 : i32
    %c0_i32_1 = arith.constant 0 : i32
    %c0_i32_2 = arith.constant 0 : i32
    return %arg0, %c0_i32, %c0_i32_0, %c0_i32_1 : i32, i32, i32, i32
  }
  func.func @transform_7(%arg0: i32) -> (i32, i32, i32) {
    %c0_i32 = arith.constant 0 : i32
    %c0_i32_0 = arith.constant 0 : i32
    %c0_i32_1 = arith.constant 0 : i32
    return %arg0, %c0_i32, %c0_i32_0 : i32, i32, i32
  }
}

</mosaic_0001>

<llo_original>
// kernel: unet_down_forward.1
$region0: #{unet_down_forward.1}
  #allocation0 [shape = 'u32[]', space=smem, size = 0x4, offset = 0x4, fixed_abs, tag = 'smem constant byte address 0x4 - core index']
  #allocation1 [shape = 'u32[144,128]{1,0:T(1,128)}', space=vmem, size = 0x12000, scoped, tag = 'internal scratch']
  #allocation2 [shape = 'f32[182,128]{1,0:T(8,128)}', space=vmem, size = 0x17000, scoped, tag = 'scratch operand']
  %s0 = inlined_call_operand.vmem [shape: bf16[2,182,64], index: 0, kind: input, shape index: {}]
  %s1 = inlined_call_operand.vmem [shape: bf16[9,64,128], index: 1, kind: input, shape index: {}]
  %s2 = inlined_call_operand.vmem [shape: bf16[9,128,128], index: 2, kind: input, shape index: {}]
  %s3 = inlined_call_operand.vmem [shape: f32[2,2,128], index: 3, kind: input, shape index: {}]
  %s4 = inlined_call_operand.vmem [shape: bf16[2,128,64], index: 4, kind: input, shape index: {}]
  %s5 = inlined_call_operand.vmem [shape: bf16[2,64,144], index: 5, kind: input, shape index: {}]
  %s6 = inlined_call_operand.vmem [shape: f32[2,8,16,128], index: 6, kind: output, shape index: {0}]
  %s7 = inlined_call_operand.vmem [shape: f32[2,64,64], index: 7, kind: output, shape index: {1}]
  %8 = xla_tuple %s6, %s7
  %s9 = sld [smem:[#allocation0]]
  $region65: #{unet_down_forward.1} parent=0
    _
  %s11 = ssub.s32 1, %s9
  %s12 = scalar_select 0, %s11, %s9
  loop: start=0, step=1, limit=4
  $region2: #{unet_down_forward.1} parent=0 // loop_pre_header
    _
  $region3: #{unet_down_forward.1} parent=0 // loop_header
    %s14 = sphi 0, %s18
    %p15 = scmp.ge.s32.totalorder %s14, 4
    %s24 = sphi 0, %s26
    %s27 = sphi 0, %s24
    %s28 = sphi 0, %s27
    %s44 = sphi 0, %s28
    %s48 = sphi 0, %s48
    %s50 = sphi 0, %s48
    %s51 = sphi 0, %s50
    %s65 = sphi 0, %s51
    %s69 = sphi 0, %s69
    %s71 = sphi 0, %s69
    %s72 = sphi 0, %s71
    %s86 = sphi 0, %s72
    %s90 = sphi 0, %s90
    %s92 = sphi 0, %s90
    %s93 = sphi 0, %s92
    %s107 = sphi 0, %s93
    %s111 = sphi 0, %s111
    %s113 = sphi 0, %s111
    %s114 = sphi 0, %s113
    %s128 = sphi 0, %s114
    %s132 = sphi 0, %s132
    %s134 = sphi 0, %s132
    %s135 = sphi 0, %s134
    %s149 = sphi 0, %s135
    %s155 = sphi 0, %s157
    %s158 = sphi 0, %s155
    %s159 = sphi 0, %s158
    %s175 = sphi 0, %s159
    %s181 = sphi 0, %s183
    %s184 = sphi 0, %s181
    %s185 = sphi 0, %s184
    %s201 = sphi 0, %s185
  $region4: #{unet_down_forward.1} parent=0 // loop_header_branch
    %17 = sbr.rel (%p15) target = $region8
  $region5: #{unet_down_forward.1} parent=0 // loop_body
    %s19 = ssub.s32 %s14, 1
    %s20 = ssub.s32 %s14, 2
    %s21 = sadd.s32 %s14, 1
    %s22 = ssub.s32 %s14, %s21
    %p23 = scmp.eq.s32.totalorder %s22, 0
    %s25 = sadd.s32 %s24, 1
    %s26 = scalar_select %p23, %s24, %s25
    %p29 = pneg %p23
    %p30 = scmp.eq.s32.totalorder %s14, 1
    %p31 = por %p29, %p30
    %p32 = scmp.ne.s32.totalorder %s24, %s27
    %p33 = scmp.eq.s32.totalorder %s14, 0
    %p34 = por %p32, %p33
    %p35 = scmp.ne.s32.totalorder %s24, %s27
    %p36 = scmp.eq.s32.totalorder %s19, 1
    %p37 = por %p35, %p36
    %p38 = scmp.ne.s32.totalorder %s27, %s28
    %p39 = scmp.eq.s32.totalorder %s19, 0
    %p40 = por %p38, %p39
    %p41 = scmp.ne.s32.totalorder %s27, %s28
    %p42 = scmp.eq.s32.totalorder %s20, 1
    %p43 = por %p41, %p42
    %p45 = scmp.ne.s32.totalorder %s28, %s44
    %p46 = scmp.eq.s32.totalorder %s20, 0
    %p47 = por %p45, %p46
    %s49 = sadd.s32 %s48, 1
    %p52 = scmp.eq.s32.totalorder %s14, 1
    %p53 = scmp.ne.s32.totalorder %s48, %s50
    %p54 = scmp.eq.s32.totalorder %s14, 0
    %p55 = por %p53, %p54
    %p56 = scmp.ne.s32.totalorder %s48, %s50
    %p57 = scmp.eq.s32.totalorder %s19, 1
    %p58 = por %p56, %p57
    %p59 = scmp.ne.s32.totalorder %s50, %s51
    %p60 = scmp.eq.s32.totalorder %s19, 0
    %p61 = por %p59, %p60
    %p62 = scmp.ne.s32.totalorder %s50, %s51
    %p63 = scmp.eq.s32.totalorder %s20, 1
    %p64 = por %p62, %p63
    %p66 = scmp.ne.s32.totalorder %s51, %s65
    %p67 = scmp.eq.s32.totalorder %s20, 0
    %p68 = por %p66, %p67
    %s70 = sadd.s32 %s69, 1
    %p73 = scmp.eq.s32.totalorder %s14, 1
    %p74 = scmp.ne.s32.totalorder %s69, %s71
    %p75 = scmp.eq.s32.totalorder %s14, 0
    %p76 = por %p74, %p75
    %p77 = scmp.ne.s32.totalorder %s69, %s71
    %p78 = scmp.eq.s32.totalorder %s19, 1
    %p79 = por %p77, %p78
    %p80 = scmp.ne.s32.totalorder %s71, %s72
    %p81 = scmp.eq.s32.totalorder %s19, 0
    %p82 = por %p80, %p81
    %p83 = scmp.ne.s32.totalorder %s71, %s72
    %p84 = scmp.eq.s32.totalorder %s20, 1
    %p85 = por %p83, %p84
    %p87 = scmp.ne.s32.totalorder %s72, %s86
    %p88 = scmp.eq.s32.totalorder %s20, 0
    %p89 = por %p87, %p88
    %s91 = sadd.s32 %s90, 1
    %p94 = scmp.eq.s32.totalorder %s14, 1
    %p95 = scmp.ne.s32.totalorder %s90, %s92
    %p96 = scmp.eq.s32.totalorder %s14, 0
    %p97 = por %p95, %p96
    %p98 = scmp.ne.s32.totalorder %s90, %s92
    %p99 = scmp.eq.s32.totalorder %s19, 1
    %p100 = por %p98, %p99
    %p101 = scmp.ne.s32.totalorder %s92, %s93
    %p102 = scmp.eq.s32.totalorder %s19, 0
    %p103 = por %p101, %p102
    %p104 = scmp.ne.s32.totalorder %s92, %s93
    %p105 = scmp.eq.s32.totalorder %s20, 1
    %p106 = por %p104, %p105
    %p108 = scmp.ne.s32.totalorder %s93, %s107
    %p109 = scmp.eq.s32.totalorder %s20, 0
    %p110 = por %p108, %p109
    %s112 = sadd.s32 %s111, 1
    %p115 = scmp.eq.s32.totalorder %s14, 1
    %p116 = scmp.ne.s32.totalorder %s111, %s113
    %p117 = scmp.eq.s32.totalorder %s14, 0
    %p118 = por %p116, %p117
    %p119 = scmp.ne.s32.totalorder %s111, %s113
    %p120 = scmp.eq.s32.totalorder %s19, 1
    %p121 = por %p119, %p120
    %p122 = scmp.ne.s32.totalorder %s113, %s114
    %p123 = scmp.eq.s32.totalorder %s19, 0
    %p124 = por %p122, %p123
    %p125 = scmp.ne.s32.totalorder %s113, %s114
    %p126 = scmp.eq.s32.totalorder %s20, 1
    %p127 = por %p125, %p126
    %p129 = scmp.ne.s32.totalorder %s114, %s128
    %p130 = scmp.eq.s32.totalorder %s20, 0
    %p131 = por %p129, %p130
    %s133 = sadd.s32 %s132, 1
    %p136 = scmp.eq.s32.totalorder %s14, 1
    %p137 = scmp.ne.s32.totalorder %s132, %s134
    %p138 = scmp.eq.s32.totalorder %s14, 0
    %p139 = por %p137, %p138
    %p140 = scmp.ne.s32.totalorder %s132, %s134
    %p141 = scmp.eq.s32.totalorder %s19, 1
    %p142 = por %p140, %p141
    %p143 = scmp.ne.s32.totalorder %s134, %s135
    %p144 = scmp.eq.s32.totalorder %s19, 0
    %p145 = por %p143, %p144
    %p146 = scmp.ne.s32.totalorder %s134, %s135
    %p147 = scmp.eq.s32.totalorder %s20, 1
    %p148 = por %p146, %p147
    %p150 = scmp.ne.s32.totalorder %s135, %s149
    %p151 = scmp.eq.s32.totalorder %s20, 0
    %p152 = por %p150, %p151
    %s153 = ssub.s32 %s14, %s21
    %p154 = scmp.eq.s32.totalorder %s153, 0
    %s156 = sadd.s32 %s155, 1
    %s157 = scalar_select %p154, %s155, %s156
    %p160 = pneg %p154
    %p161 = scmp.eq.s32.totalorder %s14, 1
    %p162 = por %p160, %p161
    %p163 = scmp.ne.s32.totalorder %s155, %s158
    %p164 = scmp.eq.s32.totalorder %s14, 0
    %p165 = por %p163, %p164
    %p166 = scmp.ne.s32.totalorder %s155, %s158
    %p167 = scmp.eq.s32.totalorder %s19, 1
    %p168 = por %p166, %p167
    %p169 = scmp.ne.s32.totalorder %s158, %s159
    %p170 = scmp.eq.s32.totalorder %s19, 0
    %p171 = por %p169, %p170
    %p172 = scmp.ne.s32.totalorder %s158, %s159
    %p173 = scmp.eq.s32.totalorder %s20, 1
    %p174 = por %p172, %p173
    %p176 = scmp.ne.s32.totalorder %s159, %s175
    %p177 = scmp.eq.s32.totalorder %s20, 0
    %p178 = por %p176, %p177
    %s179 = ssub.s32 %s14, %s21
    %p180 = scmp.eq.s32.totalorder %s179, 0
    %s182 = sadd.s32 %s181, 1
    %s183 = scalar_select %p180, %s181, %s182
    %p186 = pneg %p180
    %p187 = scmp.eq.s32.totalorder %s14, 1
    %p188 = por %p186, %p187
    %p189 = scmp.ne.s32.totalorder %s181, %s184
    %p190 = scmp.eq.s32.totalorder %s14, 0
    %p191 = por %p189, %p190
    %p192 = scmp.ne.s32.totalorder %s181, %s184
    %p193 = scmp.eq.s32.totalorder %s19, 1
    %p194 = por %p192, %p193
    %p195 = scmp.ne.s32.totalorder %s184, %s185
    %p196 = scmp.eq.s32.totalorder %s19, 0
    %p197 = por %p195, %p196
    %p198 = scmp.ne.s32.totalorder %s184, %s185
    %p199 = scmp.eq.s32.totalorder %s20, 1
    %p200 = por %p198, %p199
    %p202 = scmp.ne.s32.totalorder %s185, %s201
    %p203 = scmp.eq.s32.totalorder %s20, 0
    %p204 = por %p202, %p203
    %p205 = scmp.le.s32.totalorder 1, %s14
    %p206 = scmp.lt.s32.totalorder %s14, 3
    %p207 = pnand %p205, %p206
    %p208 = pneg %p207
    // Predicated region
    $region9: #{unet_down_forward.1} parent=5 // pred_check
      _
    $region10: #{unet_down_forward.1} parent=5 // pred_check_branch
      %210 = sbr.rel (%p207) target = $region12
    $region11: #{unet_down_forward.1} parent=5 // pred_region
      %s211 = ssub.s32 %s14, 1
      // Predicated region
      $region13: #{unet_down_forward.1} parent=11 // pred_check
        %p212 = pneg %p61
      $region14: #{unet_down_forward.1} parent=11 // pred_check_branch
        %214 = sbr.rel (%p212) target = $region16
      $region15: #{unet_down_forward.1} parent=11 // pred_region
        _
      $region16: #{unet_down_forward.1} parent=11 // pred_fallthru
        _
      // Predicated region
      $region17: #{unet_down_forward.1} parent=11 // pred_check
        %p215 = pneg %p82
      $region18: #{unet_down_forward.1} parent=11 // pred_check_branch
        %217 = sbr.rel (%p215) target = $region20
      $region19: #{unet_down_forward.1} parent=11 // pred_region
        _
      $region20: #{unet_down_forward.1} parent=11 // pred_fallthru
        _
      // Predicated region
      $region21: #{unet_down_forward.1} parent=11 // pred_check
        %p218 = pneg %p103
      $region22: #{unet_down_forward.1} parent=11 // pred_check_branch
        %220 = sbr.rel (%p218) target = $region24
      $region23: #{unet_down_forward.1} parent=11 // pred_region
        _
      $region24: #{unet_down_forward.1} parent=11 // pred_fallthru
        _
      // Predicated region
      $region25: #{unet_down_forward.1} parent=11 // pred_check
        %p221 = pneg %p124
      $region26: #{unet_down_forward.1} parent=11 // pred_check_branch
        %223 = sbr.rel (%p221) target = $region28
      $region27: #{unet_down_forward.1} parent=11 // pred_region
        _
      $region28: #{unet_down_forward.1} parent=11 // pred_fallthru
        _
      // Predicated region
      $region29: #{unet_down_forward.1} parent=11 // pred_check
        %p224 = pneg %p145
      $region30: #{unet_down_forward.1} parent=11 // pred_check_branch
        %226 = sbr.rel (%p224) target = $region32
      $region31: #{unet_down_forward.1} parent=11 // pred_region
        _
      $region32: #{unet_down_forward.1} parent=11 // pred_fallthru
        _
    $region12: #{unet_down_forward.1} parent=5 // pred_fallthru
      _
    %p227 = scmp.lt.s32.totalorder %s14, 2
    // Predicated region
    $region33: #{unet_down_forward.1} parent=5 // pred_check
      %p228 = pneg %p227
    $region34: #{unet_down_forward.1} parent=5 // pred_check_branch
      %230 = sbr.rel (%p228) target = $region36
    $region35: #{unet_down_forward.1} parent=5 // pred_region
      // Predicated region
      $region37: #{unet_down_forward.1} parent=35 // pred_check
        %p231 = pneg %p34
      $region38: #{unet_down_forward.1} parent=35 // pred_check_branch
        %233 = sbr.rel (%p231) target = $region40
      $region39: #{unet_down_forward.1} parent=35 // pred_region
        %p234 = scmp.lt.s32.totalorder %s14, 1
        %s235 = scalar_select %p234, %s14, 1
        %s236 = smul.addr %s235, 23
        %s237 = smul.addr %s236, 4
        %s238 = scalar_lea.vmem %s0, %s237
      $region40: #{unet_down_forward.1} parent=35 // pred_fallthru
        _
    $region36: #{unet_down_forward.1} parent=5 // pred_fallthru
      _
    %p239 = scmp.le.s32.totalorder 1, %s14
    %p240 = scmp.lt.s32.totalorder %s14, 3
    %p241 = pnand %p239, %p240
    %p242 = pneg %p241
    // Predicated region
    $region41: #{unet_down_forward.1} parent=5 // pred_check
      _
    $region42: #{unet_down_forward.1} parent=5 // pred_check_branch
      %244 = sbr.rel (%p241) target = $region44
    $region43: #{unet_down_forward.1} parent=5 // pred_region
      %s245 = ssub.s32 %s14, 1
      %p246 = scmp.lt.s32.totalorder %s19, 1
      %s247 = scalar_select %p246, %s19, 1
      %s248 = smul.addr %s247, 23
      %s249 = smul.addr %s248, 4
      %s250 = scalar_lea.vmem %s0, %s249
      %p251 = pneg %p40
      %p252 = pneg %p37
      %p253 = pneg %p61
      %p254 = pneg %p58
      %p255 = pneg %p82
      %p256 = pneg %p79
      %p257 = pneg %p103
      %p258 = pneg %p100
      %p259 = pneg %p124
      %p260 = pneg %p121
      %p261 = pneg %p145
      %p262 = pneg %p142
      %p263 = pneg %p171
      %p264 = pneg %p168
      %p265 = scmp.lt.s32.totalorder %s19, 1
      %s266 = scalar_select %p265, %s19, 1
      %s267 = smul.addr %s266, 16
      %s268 = smul.addr %s267, 8
      %s269 = scalar_lea.vmem %s6, %s268
      %p270 = pneg %p197
      %p271 = pneg %p194
      %p272 = scmp.lt.s32.totalorder %s19, 1
      %s273 = scalar_select %p272, %s19, 1
      %s274 = smul.addr %s273, 8
      %s275 = smul.addr %s274, 8
      %s276 = scalar_lea.vmem %s7, %s275
      %p277 = scmp.lt.s32.totalorder %s19, 1
      %s278 = scalar_select %p277, %s19, 1
      %s279 = smul.addr %s278, 23
      %s280 = smul.addr %s279, 4
      %s281 = scalar_lea.vmem %s0, %s280
      %p282 = scmp.lt.s32.totalorder %s19, 1
      %s283 = scalar_select %p282, %s19, 1
      %s284 = smul.addr %s283, 16
      %s285 = smul.addr %s284, 8
      %s286 = scalar_lea.vmem %s6, %s285
      %p287 = scmp.lt.s32.totalorder %s19, 1
      %s288 = scalar_select %p287, %s19, 1
      %s289 = smul.addr %s288, 8
      %s290 = smul.addr %s289, 8
      %s291 = scalar_lea.vmem %s7, %s290
      %293 = vst [vmem:[#allocation2] sm:$0xff] 0.0
      %294 = vst [vmem:[#allocation2 + $0x8] sm:$0xff] 0.0
      %295 = vst [vmem:[#allocation2 + $0x10] sm:$0xff] 0.0
      %296 = vst [vmem:[#allocation2 + $0x18] sm:$0xff] 0.0
      %297 = vst [vmem:[#allocation2 + $0x20] sm:$0xff] 0.0
      %298 = vst [vmem:[#allocation2 + $0x28] sm:$0xff] 0.0
      %299 = vst [vmem:[#allocation2 + $0x30] sm:$0xff] 0.0
      %300 = vst [vmem:[#allocation2 + $0x38] sm:$0xff] 0.0
      %301 = vst [vmem:[#allocation2 + $0x40] sm:$0xff] 0.0
      %302 = vst [vmem:[#allocation2 + $0x48] sm:$0xff] 0.0
      %303 = vst [vmem:[#allocation2 + $0x50] sm:$0xff] 0.0
      %304 = vst [vmem:[#allocation2 + $0x58] sm:$0xff] 0.0
      %305 = vst [vmem:[#allocation2 + $0x60] sm:$0xff] 0.0
      %306 = vst [vmem:[#allocation2 + $0x68] sm:$0xff] 0.0
      %307 = vst [vmem:[#allocation2 + $0x70] sm:$0xff] 0.0
      %308 = vst [vmem:[#allocation2 + $0x78] sm:$0xff] 0.0
      %309 = vst [vmem:[#allocation2 + $0x80] sm:$0xff] 0.0
      %310 = vst [vmem:[#allocation2 + $0x88] sm:$0xff] 0.0
      %311 = vst [vmem:[#allocation2 + $0x90] sm:$0xff] 0.0
      %312 = vst [vmem:[#allocation2 + $0x98] sm:$0xff] 0.0
      %313 = vst [vmem:[#allocation2 + $0xa0] sm:$0xff] 0.0
      %314 = vst [vmem:[#allocation2 + $0xa8] sm:$0xff] 0.0
      %315 = vst [vmem:[#allocation2 + $0xb0] sm:$0x3f] 0.0
      %v316 = vld [vmem:[%s281] sm:$0xf]
      %v317 = vld [vmem:[%s281 + $0x4] sm:$0xf]
      %v318 = vld [vmem:[%s281 + $0x8] sm:$0xf]
      %v319 = vld [vmem:[%s281 + $0xc] sm:$0xf]
      %v320 = vld [vmem:[%s281 + $0x10] sm:$0xf]
      %v321 = vld [vmem:[%s281 + $0x14] sm:$0xf]
      %v322 = vld [vmem:[%s281 + $0x18] sm:$0xf]
      %v323 = vld [vmem:[%s281 + $0x1c] sm:$0xf]
      %v324 = vld [vmem:[%s281 + $0x20] sm:$0xf]
      %v325 = vld [vmem:[%s281 + $0x24] sm:$0xf]
      %v326 = vld [vmem:[%s281 + $0x28] sm:$0xf]
      %v327 = vld [vmem:[%s281 + $0x2c] sm:$0xf]
      %v328 = vld [vmem:[%s281 + $0x30] sm:$0xf]
      %v329 = vld [vmem:[%s281 + $0x34] sm:$0xf]
      %v330 = vld [vmem:[%s281 + $0x38] sm:$0xf]
      %v331 = vld [vmem:[%s281 + $0x3c] sm:$0xf]
      %v332 = vld [vmem:[%s281 + $0x40] sm:$0xf]
      %v333 = vld [vmem:[%s281 + $0x44] sm:$0xf]
      %v334 = vld [vmem:[%s1] sm:$0xf]
      %v335 = vld [vmem:[%s1 + $0x4] sm:$0xf]
      %v336 = vld [vmem:[%s1 + $0x8] sm:$0xf]
      %v337 = vld [vmem:[%s1 + $0xc] sm:$0xf]
      %v338 = vld [vmem:[%s1 + $0x10] sm:$0xf]
      %v339 = vld [vmem:[%s1 + $0x14] sm:$0xf]
      %v340 = vld [vmem:[%s1 + $0x18] sm:$0xf]
      %v341 = vld [vmem:[%s1 + $0x1c] sm:$0xf]
      %v342 = vld [vmem:[%s281 + $0x48] sm:$0x1]
      %s343 = scalar_lea.vmem %s1, 32
      %v344 = vld [vmem:[%s343] sm:$0xf]
      %v345 = vld [vmem:[%s343 + $0x4] sm:$0xf]
      %v346 = vld [vmem:[%s343 + $0x8] sm:$0xf]
      %v347 = vld [vmem:[%s343 + $0xc] sm:$0xf]
      %v348 = vld [vmem:[%s343 + $0x10] sm:$0xf]
      %v349 = vld [vmem:[%s343 + $0x14] sm:$0xf]
      %v350 = vld [vmem:[%s343 + $0x18] sm:$0xf]
      %v351 = vld [vmem:[%s343 + $0x1c] sm:$0xf]
      %v371 = vunpack.c.l.b16 %v316
      %v372 = vunpack.c.l.b16 %v317
      %v373 = vunpack.c.l.b16 %v318
      %v374 = vunpack.c.l.b16 %v319
      %v375 = vunpack.c.l.b16 %v320
      %v376 = vunpack.c.l.b16 %v321
      %v377 = vunpack.c.l.b16 %v322
      %v378 = vunpack.c.l.b16 %v323
      %v379 = vunpack.c.l.b16 %v324
      %v380 = vunpack.c.l.b16 %v325
      %v381 = vunpack.c.l.b16 %v326
      %v382 = vunpack.c.l.b16 %v327
      %v383 = vunpack.c.l.b16 %v328
      %v384 = vunpack.c.l.b16 %v329
      %v385 = vunpack.c.l.b16 %v330
      %v386 = vunpack.c.l.b16 %v331
      %v387 = vunpack.c.l.b16 %v332
      %v388 = vunpack.c.l.b16 %v333
      %v389 = vunpack.c.l.b16 %v342
      %v390 = vpack.c.b16 %v372, %v371
      %v391 = vpack.c.b16 %v374, %v373
      %v392 = vpack.c.b16 %v376, %v375
      %v393 = vpack.c.b16 %v378, %v377
      %v394 = vpack.c.b16 %v380, %v379
      %v395 = vpack.c.b16 %v382, %v381
      %v396 = vpack.c.b16 %v384, %v383
      %v397 = vpack.c.b16 %v386, %v385
      %v398 = vpack.c.b16 %v388, %v387
      %v399 = vpack.c.b16 %v389, %v389
      %vm400 = vsmask.f32 7424
      %v402 = vshrl.u32 %v390, 16
      %v404 = vshll.u32 %v390, 16
      %v406 = vrot.slane %v404, 1
      %v407 = vor.u32 %v402, %v406
      %v409 = vshll.u32 %v391, 16
      %v411 = vrot.slane %v409, 1
      %v412 = vsel %vm400, %v407, %v411
      %v413 = vshrl.u32 %v391, 16
      %v415 = vor.u32 %v413, %v411
      %v417 = vshll.u32 %v392, 16
      %v419 = vrot.slane %v417, 1
      %v420 = vsel %vm400, %v415, %v419
      %v421 = vshrl.u32 %v392, 16
      %v423 = vor.u32 %v421, %v419
      %v425 = vshll.u32 %v393, 16
      %v427 = vrot.slane %v425, 1
      %v428 = vsel %vm400, %v423, %v427
      %v429 = vshrl.u32 %v393, 16
      %v431 = vor.u32 %v429, %v427
      %v433 = vshll.u32 %v394, 16
      %v435 = vrot.slane %v433, 1
      %v436 = vsel %vm400, %v431, %v435
      %v437 = vshrl.u32 %v394, 16
      %v439 = vor.u32 %v437, %v435
      %v441 = vshll.u32 %v395, 16
      %v443 = vrot.slane %v441, 1
      %v444 = vsel %vm400, %v439, %v443
      %v445 = vshrl.u32 %v395, 16
      %v447 = vor.u32 %v445, %v443
      %v449 = vshll.u32 %v396, 16
      %v451 = vrot.slane %v449, 1
      %v452 = vsel %vm400, %v447, %v451
      %v453 = vshrl.u32 %v396, 16
      %v455 = vor.u32 %v453, %v451
      %v457 = vshll.u32 %v397, 16
      %v459 = vrot.slane %v457, 1
      %v460 = vsel %vm400, %v455, %v459
      %v461 = vshrl.u32 %v397, 16
      %v463 = vor.u32 %v461, %v459
      %v465 = vshll.u32 %v398, 16
      %v467 = vrot.slane %v465, 1
      %v468 = vsel %vm400, %v463, %v467
      %v469 = vshrl.u32 %v398, 16
      %v471 = vor.u32 %v469, %v467
      %v473 = vshll.u32 %v399, 16
      %v475 = vrot.slane %v473, 1
      %v476 = vsel %vm400, %v471, %v475
      %v485 = vunpack.c.l.b16 %v344
      %v486 = vunpack.c.l.b16 %v345
      %v487 = vunpack.c.l.b16 %v346
      %v488 = vunpack.c.l.b16 %v347
      %v489 = vunpack.c.l.b16 %v348
      %v490 = vunpack.c.l.b16 %v349
      %v491 = vunpack.c.l.b16 %v350
      %v492 = vunpack.c.l.b16 %v351
      %v493 = vpack.c.b16 %v486, %v485
      %v494 = vpack.c.b16 %v488, %v487
      %v495 = vpack.c.b16 %v490, %v489
      %v496 = vpack.c.b16 %v492, %v491
      %vm501 = vcmask 523264
      %v503 = vsel %vm501, %v412, 0
      %v506 = vsel %vm501, %v420, 0
      %v509 = vsel %vm501, %v428, 0
      %v512 = vsel %vm501, %v436, 0
      %v515 = vsel %vm501, %v444, 0
      %v518 = vsel %vm501, %v452, 0
      %v521 = vsel %vm501, %v460, 0
      %v524 = vsel %vm501, %v468, 0
      %v527 = vsel %vm501, %v476, 0
      %529 = vmatprep.subr.bf16.mxu0 0
      %530 = vmatpush1.bf16.msra.mxu0 0
      %531 = vmatprep.subr.bf16.mxu0 0
      %532 = vmatpush1.bf16.msra.mxu0 0
      %533 = vmatprep.subr.bf16.mxu0 0
      %534 = vmatpush1.bf16.msra.mxu0 0
      %535 = vmatprep.subr.bf16.mxu0 0
      %536 = vmatpush1.bf16.msra.mxu0 0
      %537 = vmatprep.subr.bf16.mxu0 0
      %538 = vmatpush1.bf16.msra.mxu0 %v496
      %539 = vmatprep.subr.bf16.mxu0 0
      %540 = vmatpush1.bf16.msra.mxu0 %v495
      %541 = vmatprep.subr.bf16.mxu0 0
      %542 = vmatpush1.bf16.msra.mxu0 %v494
      %543 = vmatprep.subr.bf16.mxu0 0
      %544 = vmatpush1.bf16.msra.mxu0 %v493
      %545 = vmatprep.subr.bf16.mxu0 0
      %546 = vmatpush2.bf16.msra.mxu0 0
      %547 = vmatprep.subr.bf16.mxu0 0
      %548 = vmatpush2.bf16.msra.mxu0 0
      %549 = vmatprep.subr.bf16.mxu0 0
      %550 = vmatpush2.bf16.msra.mxu0 0
      %551 = vmatprep.subr.bf16.mxu0 0
      %552 = vmatpush2.bf16.msra.mxu0 0
      %553 = vmatprep.subr.bf16.mxu0 0
      %554 = vmatpush2.bf16.msra.mxu0 0
      %555 = vmatprep.subr.bf16.mxu0 0
      %556 = vmatpush2.bf16.msra.mxu0 0
      %557 = vmatprep.subr.bf16.mxu0 0
      %558 = vmatpush2.bf16.msra.mxu0 0
      %559 = vmatprep.subr.bf16.mxu0 0
      %560 = vmatpush2.bf16.msra.mxu0 0
      %561 = vmatprep.mubr.bf16.mxu0 0
      %562 = vmatmul.mubr.bf16.gmra.mxu0 %v503
      %v563 = vpop.f32.mrf.mxu0
      %v564 = vadd.f32 0.0, %v563
      %v565 = vpop.f32.mrf.mxu0
      %v566 = vpop.f32.mrf.mxu0
      %v567 = vadd.f32 0.0, %v566
      %v568 = vpop.f32.mrf.mxu0
      %569 = vmatprep.mubr.bf16.mxu0 0
      %570 = vmatmul.mubr.bf16.gmra.mxu0 %v506
      %v571 = vpop.f32.mrf.mxu0
      %v572 = vadd.f32 0.0, %v571
      %v573 = vpop.f32.mrf.mxu0
      %v574 = vpop.f32.mrf.mxu0
      %v575 = vadd.f32 0.0, %v574
      %v576 = vpop.f32.mrf.mxu0
      %577 = vmatprep.mubr.bf16.mxu0 0
      %578 = vmatmul.mubr.bf16.gmra.mxu0 %v509
      %v579 = vpop.f32.mrf.mxu0
      %v580 = vadd.f32 0.0, %v579
      %v581 = vpop.f32.mrf.mxu0
      %v582 = vpop.f32.mrf.mxu0
      %v583 = vadd.f32 0.0, %v582
      %v584 = vpop.f32.mrf.mxu0
      %585 = vmatprep.mubr.bf16.mxu0 0
      %586 = vmatmul.mubr.bf16.gmra.mxu0 %v512
      %v587 = vpop.f32.mrf.mxu0
      %v588 = vadd.f32 0.0, %v587
      %v589 = vpop.f32.mrf.mxu0
      %v590 = vpop.f32.mrf.mxu0
      %v591 = vadd.f32 0.0, %v590
      %v592 = vpop.f32.mrf.mxu0
      %593 = vmatprep.mubr.bf16.mxu0 0
      %594 = vmatmul.mubr.bf16.gmra.mxu0 %v515
      %v595 = vpop.f32.mrf.mxu0
      %v596 = vadd.f32 0.0, %v595
      %v597 = vpop.f32.mrf.mxu0
      %v598 = vpop.f32.mrf.mxu0
      %v599 = vadd.f32 0.0, %v598
      %v600 = vpop.f32.mrf.mxu0
      %601 = vmatprep.mubr.bf16.mxu0 0
      %602 = vmatmul.mubr.bf16.gmra.mxu0 %v518
      %v603 = vpop.f32.mrf.mxu0
      %v604 = vadd.f32 0.0, %v603
      %v605 = vpop.f32.mrf.mxu0
      %v606 = vpop.f32.mrf.mxu0
      %v607 = vadd.f32 0.0, %v606
      %v608 = vpop.f32.mrf.mxu0
      %609 = vmatprep.mubr.bf16.mxu0 0
      %610 = vmatmul.mubr.bf16.gmra.mxu0 %v521
      %v611 = vpop.f32.mrf.mxu0
      %v612 = vadd.f32 0.0, %v611
      %v613 = vpop.f32.mrf.mxu0
      %v614 = vpop.f32.mrf.mxu0
      %v615 = vadd.f32 0.0, %v614
      %v616 = vpop.f32.mrf.mxu0
      %617 = vmatprep.mubr.bf16.mxu0 0
      %618 = vmatmul.mubr.bf16.gmra.mxu0 %v524
      %v619 = vpop.f32.mrf.mxu0
      %v620 = vadd.f32 0.0, %v619
      %v621 = vpop.f32.mrf.mxu0
      %v622 = vpop.f32.mrf.mxu0
      %v623 = vadd.f32 0.0, %v622
      %v624 = vpop.f32.mrf.mxu0
      %625 = vmatprep.mubr.bf16.mxu0 0
      %626 = vmatmul.mubr.bf16.gmra.mxu0 %v527
      %v627 = vpop.f32.mrf.mxu0
      %v628 = vadd.f32 0.0, %v627
      %v629 = vpop.f32.mrf.mxu0
      %v630 = vpop.f32.mrf.mxu0
      %v631 = vadd.f32 0.0, %v630
      %v632 = vpop.f32.mrf.mxu0
      %633 = vdwg.mxu0
      %v642 = vunpack.c.l.b16 %v334
      %v643 = vunpack.c.l.b16 %v335
      %v644 = vunpack.c.l.b16 %v336
      %v645 = vunpack.c.l.b16 %v337
      %v646 = vunpack.c.l.b16 %v338
      %v647 = vunpack.c.l.b16 %v339
      %v648 = vunpack.c.l.b16 %v340
      %v649 = vunpack.c.l.b16 %v341
      %v650 = vpack.c.b16 %v643, %v642
      %v651 = vpack.c.b16 %v645, %v644
      %v652 = vpack.c.b16 %v647, %v646
      %v653 = vpack.c.b16 %v649, %v648
      %v658 = vsel %vm501, %v390, 0
      %v660 = vsel %vm501, %v391, 0
      %v662 = vsel %vm501, %v392, 0
      %v664 = vsel %vm501, %v393, 0
      %v666 = vsel %vm501, %v394, 0
      %v668 = vsel %vm501, %v395, 0
      %v670 = vsel %vm501, %v396, 0
      %v672 = vsel %vm501, %v397, 0
      %v674 = vsel %vm501, %v398, 0
      %676 = vmatprep.subr.bf16.mxu0 0
      %677 = vmatpush1.bf16.msra.mxu0 0
      %678 = vmatprep.subr.bf16.mxu0 0
      %679 = vmatpush1.bf16.msra.mxu0 0
      %680 = vmatprep.subr.bf16.mxu0 0
      %681 = vmatpush1.bf16.msra.mxu0 0
      %682 = vmatprep.subr.bf16.mxu0 0
      %683 = vmatpush1.bf16.msra.mxu0 0
      %684 = vmatprep.subr.bf16.mxu0 0
      %685 = vmatpush1.bf16.msra.mxu0 %v653
      %686 = vmatprep.subr.bf16.mxu0 0
      %687 = vmatpush1.bf16.msra.mxu0 %v652
      %688 = vmatprep.subr.bf16.mxu0 0
      %689 = vmatpush1.bf16.msra.mxu0 %v651
      %690 = vmatprep.subr.bf16.mxu0 0
      %691 = vmatpush1.bf16.msra.mxu0 %v650
      %692 = vmatprep.subr.bf16.mxu0 0
      %693 = vmatpush2.bf16.msra.mxu0 0
      %694 = vmatprep.subr.bf16.mxu0 0
      %695 = vmatpush2.bf16.msra.mxu0 0
      %696 = vmatprep.subr.bf16.mxu0 0
      %697 = vmatpush2.bf16.msra.mxu0 0
      %698 = vmatprep.subr.bf16.mxu0 0
      %699 = vmatpush2.bf16.msra.mxu0 0
      %700 = vmatprep.subr.bf16.mxu0 0
      %701 = vmatpush2.bf16.msra.mxu0 0
      %702 = vmatprep.subr.bf16.mxu0 0
      %703 = vmatpush2.bf16.msra.mxu0 0
      %704 = vmatprep.subr.bf16.mxu0 0
      %705 = vmatpush2.bf16.msra.mxu0 0
      %706 = vmatprep.subr.bf16.mxu0 0
      %707 = vmatpush2.bf16.msra.mxu0 0
      %708 = vmatprep.mubr.bf16.mxu0 0
      %709 = vmatmul.mubr.bf16.gmra.mxu0 %v658
      %v710 = vpop.f32.mrf.mxu0
      %v711 = vadd.f32 %v564, %v710
      %v712 = vpop.f32.mrf.mxu0
      %v713 = vpop.f32.mrf.mxu0
      %v714 = vadd.f32 %v567, %v713
      %v715 = vpop.f32.mrf.mxu0
      %716 = vmatprep.mubr.bf16.mxu0 0
      %717 = vmatmul.mubr.bf16.gmra.mxu0 %v660
      %v718 = vpop.f32.mrf.mxu0
      %v719 = vadd.f32 %v572, %v718
      %v720 = vpop.f32.mrf.mxu0
      %v721 = vpop.f32.mrf.mxu0
      %v722 = vadd.f32 %v575, %v721
      %v723 = vpop.f32.mrf.mxu0
      %724 = vmatprep.mubr.bf16.mxu0 0
      %725 = vmatmul.mubr.bf16.gmra.mxu0 %v662
      %v726 = vpop.f32.mrf.mxu0
      %v727 = vadd.f32 %v580, %v726
      %v728 = vpop.f32.mrf.mxu0
      %v729 = vpop.f32.mrf.mxu0
      %v730 = vadd.f32 %v583, %v729
      %v731 = vpop.f32.mrf.mxu0
      %732 = vmatprep.mubr.bf16.mxu0 0
      %733 = vmatmul.mubr.bf16.gmra.mxu0 %v664
      %v734 = vpop.f32.mrf.mxu0
      %v735 = vadd.f32 %v588, %v734
      %v736 = vpop.f32.mrf.mxu0
      %v737 = vpop.f32.mrf.mxu0
      %v738 = vadd.f32 %v591, %v737
      %v739 = vpop.f32.mrf.mxu0
      %740 = vmatprep.mubr.bf16.mxu0 0
      %741 = vmatmul.mubr.bf16.gmra.mxu0 %v666
      %v742 = vpop.f32.mrf.mxu0
      %v743 = vadd.f32 %v596, %v742
      %v744 = vpop.f32.mrf.mxu0
      %v745 = vpop.f32.mrf.mxu0
      %v746 = vadd.f32 %v599, %v745
      %v747 = vpop.f32.mrf.mxu0
      %748 = vmatprep.mubr.bf16.mxu0 0
      %749 = vmatmul.mubr.bf16.gmra.mxu0 %v668
      %v750 = vpop.f32.mrf.mxu0
      %v751 = vadd.f32 %v604, %v750
      %v752 = vpop.f32.mrf.mxu0
      %v753 = vpop.f32.mrf.mxu0
      %v754 = vadd.f32 %v607, %v753
      %v755 = vpop.f32.mrf.mxu0
      %756 = vmatprep.mubr.bf16.mxu0 0
      %757 = vmatmul.mubr.bf16.gmra.mxu0 %v670
      %v758 = vpop.f32.mrf.mxu0
      %v759 = vadd.f32 %v612, %v758
      %v760 = vpop.f32.mrf.mxu0
      %v761 = vpop.f32.mrf.mxu0
      %v762 = vadd.f32 %v615, %v761
      %v763 = vpop.f32.mrf.mxu0
      %764 = vmatprep.mubr.bf16.mxu0 0
      %765 = vmatmul.mubr.bf16.gmra.mxu0 %v672
      %v766 = vpop.f32.mrf.mxu0
      %v767 = vadd.f32 %v620, %v766
      %v768 = vpop.f32.mrf.mxu0
      %v769 = vpop.f32.mrf.mxu0
      %v770 = vadd.f32 %v623, %v769
      %v771 = vpop.f32.mrf.mxu0
      %772 = vmatprep.mubr.bf16.mxu0 0
      %773 = vmatmul.mubr.bf16.gmra.mxu0 %v674
      %v774 = vpop.f32.mrf.mxu0
      %v775 = vadd.f32 %v628, %v774
      %v776 = vpop.f32.mrf.mxu0
      %v777 = vpop.f32.mrf.mxu0
      %v778 = vadd.f32 %v631, %v777
      %v779 = vpop.f32.mrf.mxu0
      %780 = vdwg.mxu0
      %v781 = vld [vmem:[%s281] sm:$0xe]
      %s782 = scalar_lea.vmem %s1, 64
      %v783 = vld [vmem:[%s782] sm:$0xf]
      %v784 = vld [vmem:[%s782 + $0x4] sm:$0xf]
      %v785 = vld [vmem:[%s782 + $0x8] sm:$0xf]
      %v786 = vld [vmem:[%s782 + $0xc] sm:$0xf]
      %v787 = vld [vmem:[%s782 + $0x10] sm:$0xf]
      %v788 = vld [vmem:[%s782 + $0x14] sm:$0xf]
      %v789 = vld [vmem:[%s782 + $0x18] sm:$0xf]
      %v790 = vld [vmem:[%s782 + $0x1c] sm:$0xf]
      %v792 = vunpack.c.l.b16 %v781
      %v793 = vpack.c.b16 %v372, %v792
      %vm794 = vcmask 1046528
      %v795 = vrot.slane %v793, 1
      %v796 = vrot.slane %v391, 1
      %v797 = vsel %vm794, %v795, %v796
      %v798 = vrot.slane %v392, 1
      %v799 = vsel %vm794, %v796, %v798
      %v800 = vrot.slane %v393, 1
      %v801 = vsel %vm794, %v798, %v800
      %v802 = vrot.slane %v394, 1
      %v803 = vsel %vm794, %v800, %v802
      %v804 = vrot.slane %v395, 1
      %v805 = vsel %vm794, %v802, %v804
      %v806 = vrot.slane %v396, 1
      %v807 = vsel %vm794, %v804, %v806
      %v808 = vrot.slane %v397, 1
      %v809 = vsel %vm794, %v806, %v808
      %v810 = vrot.slane %v398, 1
      %v811 = vsel %vm794, %v808, %v810
      %v812 = vrot.slane %v399, 1
      %v813 = vsel %vm794, %v810, %v812
      %v822 = vunpack.c.l.b16 %v783
      %v823 = vunpack.c.l.b16 %v784
      %v824 = vunpack.c.l.b16 %v785
      %v825 = vunpack.c.l.b16 %v786
      %v826 = vunpack.c.l.b16 %v787
      %v827 = vunpack.c.l.b16 %v788
      %v828 = vunpack.c.l.b16 %v789
      %v829 = vunpack.c.l.b16 %v790
      %v830 = vpack.c.b16 %v823, %v822
      %v831 = vpack.c.b16 %v825, %v824
      %v832 = vpack.c.b16 %v827, %v826
      %v833 = vpack.c.b16 %v829, %v828
      %v839 = vsel %vm501, %v797, 0
      %v842 = vsel %vm501, %v799, 0
      %v845 = vsel %vm501, %v801, 0
      %v848 = vsel %vm501, %v803, 0
      %v851 = vsel %vm501, %v805, 0
      %v854 = vsel %vm501, %v807, 0
      %v857 = vsel %vm501, %v809, 0
      %v860 = vsel %vm501, %v811, 0
      %v863 = vsel %vm501, %v813, 0
      %865 = vmatprep.subr.bf16.mxu0 0
      %866 = vmatpush1.bf16.msra.mxu0 0
      %867 = vmatprep.subr.bf16.mxu0 0
      %868 = vmatpush1.bf16.msra.mxu0 0
      %869 = vmatprep.subr.bf16.mxu0 0
      %870 = vmatpush1.bf16.msra.mxu0 0
      %871 = vmatprep.subr.bf16.mxu0 0
      %872 = vmatpush1.bf16.msra.mxu0 0
      %873 = vmatprep.subr.bf16.mxu0 0
      %874 = vmatpush1.bf16.msra.mxu0 %v833
      %875 = vmatprep.subr.bf16.mxu0 0
      %876 = vmatpush1.bf16.msra.mxu0 %v832
      %877 = vmatprep.subr.bf16.mxu0 0
      %878 = vmatpush1.bf16.msra.mxu0 %v831
      %879 = vmatprep.subr.bf16.mxu0 0
      %880 = vmatpush1.bf16.msra.mxu0 %v830
      %881 = vmatprep.subr.bf16.mxu0 0
      %882 = vmatpush2.bf16.msra.mxu0 0
      %883 = vmatprep.subr.bf16.mxu0 0
      %884 = vmatpush2.bf16.msra.mxu0 0
      %885 = vmatprep.subr.bf16.mxu0 0
      %886 = vmatpush2.bf16.msra.mxu0 0
      %887 = vmatprep.subr.bf16.mxu0 0
      %888 = vmatpush2.bf16.msra.mxu0 0
      %889 = vmatprep.subr.bf16.mxu0 0
      %890 = vmatpush2.bf16.msra.mxu0 0
      %891 = vmatprep.subr.bf16.mxu0 0
      %892 = vmatpush2.bf16.msra.mxu0 0
      %893 = vmatprep.subr.bf16.mxu0 0
      %894 = vmatpush2.bf16.msra.mxu0 0
      %895 = vmatprep.subr.bf16.mxu0 0
      %896 = vmatpush2.bf16.msra.mxu0 0
      %897 = vmatprep.mubr.bf16.mxu0 0
      %898 = vmatmul.mubr.bf16.gmra.mxu0 %v839
      %v899 = vpop.f32.mrf.mxu0
      %v900 = vadd.f32 0.0, %v899
      %v901 = vpop.f32.mrf.mxu0
      %v902 = vpop.f32.mrf.mxu0
      %v903 = vadd.f32 0.0, %v902
      %v904 = vpop.f32.mrf.mxu0
      %905 = vmatprep.mubr.bf16.mxu0 0
      %906 = vmatmul.mubr.bf16.gmra.mxu0 %v842
      %v907 = vpop.f32.mrf.mxu0
      %v908 = vadd.f32 0.0, %v907
      %v909 = vpop.f32.mrf.mxu0
      %v910 = vpop.f32.mrf.mxu0
      %v911 = vadd.f32 0.0, %v910
      %v912 = vpop.f32.mrf.mxu0
      %913 = vmatprep.mubr.bf16.mxu0 0
      %914 = vmatmul.mubr.bf16.gmra.mxu0 %v845
      %v915 = vpop.f32.mrf.mxu0
      %v916 = vadd.f32 0.0, %v915
      %v917 = vpop.f32.mrf.mxu0
      %v918 = vpop.f32.mrf.mxu0
      %v919 = vadd.f32 0.0, %v918
      %v920 = vpop.f32.mrf.mxu0
      %921 = vmatprep.mubr.bf16.mxu0 0
      %922 = vmatmul.mubr.bf16.gmra.mxu0 %v848
      %v923 = vpop.f32.mrf.mxu0
      %v924 = vadd.f32 0.0, %v923
      %v925 = vpop.f32.mrf.mxu0
      %v926 = vpop.f32.mrf.mxu0
      %v927 = vadd.f32 0.0, %v926
      %v928 = vpop.f32.mrf.mxu0
      %929 = vmatprep.mubr.bf16.mxu0 0
      %930 = vmatmul.mubr.bf16.gmra.mxu0 %v851
      %v931 = vpop.f32.mrf.mxu0
      %v932 = vadd.f32 0.0, %v931
      %v933 = vpop.f32.mrf.mxu0
      %v934 = vpop.f32.mrf.mxu0
      %v935 = vadd.f32 0.0, %v934
      %v936 = vpop.f32.mrf.mxu0
      %937 = vmatprep.mubr.bf16.mxu0 0
      %938 = vmatmul.mubr.bf16.gmra.mxu0 %v854
      %v939 = vpop.f32.mrf.mxu0
      %v940 = vadd.f32 0.0, %v939
      %v941 = vpop.f32.mrf.mxu0
      %v942 = vpop.f32.mrf.mxu0
      %v943 = vadd.f32 0.0, %v942
      %v944 = vpop.f32.mrf.mxu0
      %945 = vmatprep.mubr.bf16.mxu0 0
      %946 = vmatmul.mubr.bf16.gmra.mxu0 %v857
      %v947 = vpop.f32.mrf.mxu0
      %v948 = vadd.f32 0.0, %v947
      %v949 = vpop.f32.mrf.mxu0
      %v950 = vpop.f32.mrf.mxu0
      %v951 = vadd.f32 0.0, %v950
      %v952 = vpop.f32.mrf.mxu0
      %953 = vmatprep.mubr.bf16.mxu0 0
      %954 = vmatmul.mubr.bf16.gmra.mxu0 %v860
      %v955 = vpop.f32.mrf.mxu0
      %v956 = vadd.f32 0.0, %v955
      %v957 = vpop.f32.mrf.mxu0
      %v958 = vpop.f32.mrf.mxu0
      %v959 = vadd.f32 0.0, %v958
      %v960 = vpop.f32.mrf.mxu0
      %961 = vmatprep.mubr.bf16.mxu0 0
      %962 = vmatmul.mubr.bf16.gmra.mxu0 %v863
      %v963 = vpop.f32.mrf.mxu0
      %v964 = vadd.f32 0.0, %v963
      %v965 = vpop.f32.mrf.mxu0
      %v966 = vpop.f32.mrf.mxu0
      %v967 = vadd.f32 0.0, %v966
      %v968 = vpop.f32.mrf.mxu0
      %969 = vdwg.mxu0
      %v970 = vadd.f32 %v711, %v900
      %v971 = vadd.f32 %v714, %v903
      %v972 = vadd.f32 %v719, %v908
      %v973 = vadd.f32 %v722, %v911
      %v974 = vadd.f32 %v727, %v916
      %v975 = vadd.f32 %v730, %v919
      %v976 = vadd.f32 %v735, %v924
      %v977 = vadd.f32 %v738, %v927
      %v978 = vadd.f32 %v743, %v932
      %v979 = vadd.f32 %v746, %v935
      %v980 = vadd.f32 %v751, %v940
      %v981 = vadd.f32 %v754, %v943
      %v982 = vadd.f32 %v759, %v948
      %v983 = vadd.f32 %v762, %v951
      %v984 = vadd.f32 %v767, %v956
      %v985 = vadd.f32 %v770, %v959
      %v986 = vadd.f32 %v775, %v964
      %v987 = vadd.f32 %v778, %v967
      %v988 = vld [vmem:[%s281 + $0x8] sm:$0xe]
      %v989 = vld [vmem:[%s281 + $0xc] sm:$0xf]
      %v990 = vld [vmem:[%s281 + $0x10] sm:$0xf]
      %v991 = vld [vmem:[%s281 + $0x14] sm:$0xf]
      %v992 = vld [vmem:[%s281 + $0x18] sm:$0xf]
      %v993 = vld [vmem:[%s281 + $0x1c] sm:$0xf]
      %v994 = vld [vmem:[%s281 + $0x20] sm:$0xf]
      %v995 = vld [vmem:[%s281 + $0x24] sm:$0xf]
      %v996 = vld [vmem:[%s281 + $0x28] sm:$0xf]
      %v997 = vld [vmem:[%s281 + $0x2c] sm:$0xf]
      %v998 = vld [vmem:[%s281 + $0x30] sm:$0xf]
      %v999 = vld [vmem:[%s281 + $0x34] sm:$0xf]
      %v1000 = vld [vmem:[%s281 + $0x38] sm:$0xf]
      %v1001 = vld [vmem:[%s281 + $0x3c] sm:$0xf]
      %v1002 = vld [vmem:[%s281 + $0x40] sm:$0xf]
      %v1003 = vld [vmem:[%s281 + $0x44] sm:$0xf]
      %v1004 = vld [vmem:[%s281 + $0x48] sm:$0xf]
      %v1005 = vld [vmem:[%s281 + $0x4c] sm:$0xf]
      %v1006 = vld [vmem:[%s281 + $0x50] sm:$0x1]
      %s1007 = scalar_lea.vmem %s1, 96
      %v1008 = vld [vmem:[%s1007] sm:$0xf]
      %v1009 = vld [vmem:[%s1007 + $0x4] sm:$0xf]
      %v1010 = vld [vmem:[%s1007 + $0x8] sm:$0xf]
      %v1011 = vld [vmem:[%s1007 + $0xc] sm:$0xf]
      %v1012 = vld [vmem:[%s1007 + $0x10] sm:$0xf]
      %v1013 = vld [vmem:[%s1007 + $0x14] sm:$0xf]
      %v1014 = vld [vmem:[%s1007 + $0x18] sm:$0xf]
      %v1015 = vld [vmem:[%s1007 + $0x1c] sm:$0xf]
      %v1035 = vunpack.c.l.b16 %v988
      %v1036 = vunpack.c.l.b16 %v989
      %v1037 = vunpack.c.l.b16 %v990
      %v1038 = vunpack.c.l.b16 %v991
      %v1039 = vunpack.c.l.b16 %v992
      %v1040 = vunpack.c.l.b16 %v993
      %v1041 = vunpack.c.l.b16 %v994
      %v1042 = vunpack.c.l.b16 %v995
      %v1043 = vunpack.c.l.b16 %v996
      %v1044 = vunpack.c.l.b16 %v997
      %v1045 = vunpack.c.l.b16 %v998
      %v1046 = vunpack.c.l.b16 %v999
      %v1047 = vunpack.c.l.b16 %v1000
      %v1048 = vunpack.c.l.b16 %v1001
      %v1049 = vunpack.c.l.b16 %v1002
      %v1050 = vunpack.c.l.b16 %v1003
      %v1051 = vunpack.c.l.b16 %v1004
      %v1052 = vunpack.c.l.b16 %v1005
      %v1053 = vunpack.c.l.b16 %v1006
      %v1054 = vpack.c.b16 %v1036, %v1035
      %v1055 = vpack.c.b16 %v1038, %v1037
      %v1056 = vpack.c.b16 %v1040, %v1039
      %v1057 = vpack.c.b16 %v1042, %v1041
      %v1058 = vpack.c.b16 %v1044, %v1043
      %v1059 = vpack.c.b16 %v1046, %v1045
      %v1060 = vpack.c.b16 %v1048, %v1047
      %v1061 = vpack.c.b16 %v1050, %v1049
      %v1062 = vpack.c.b16 %v1052, %v1051
      %v1063 = vpack.c.b16 %v1053, %v1053
      %v1064 = vrot.slane %v1054, 1
      %v1065 = vrot.slane %v1055, 1
      %v1066 = vsel %vm794, %v1064, %v1065
      %v1067 = vrot.slane %v1056, 1
      %v1068 = vsel %vm794, %v1065, %v1067
      %v1069 = vrot.slane %v1057, 1
      %v1070 = vsel %vm794, %v1067, %v1069
      %v1071 = vrot.slane %v1058, 1
      %v1072 = vsel %vm794, %v1069, %v1071
      %v1073 = vrot.slane %v1059, 1
      %v1074 = vsel %vm794, %v1071, %v1073
      %v1075 = vrot.slane %v1060, 1
      %v1076 = vsel %vm794, %v1073, %v1075
      %v1077 = vrot.slane %v1061, 1
      %v1078 = vsel %vm794, %v1075, %v1077
      %v1079 = vrot.slane %v1062, 1
      %v1080 = vsel %vm794, %v1077, %v1079
      %v1081 = vrot.slane %v1063, 1
      %v1082 = vsel %vm794, %v1079, %v1081
      %v1091 = vunpack.c.l.b16 %v1008
      %v1092 = vunpack.c.l.b16 %v1009
      %v1093 = vunpack.c.l.b16 %v1010
      %v1094 = vunpack.c.l.b16 %v1011
      %v1095 = vunpack.c.l.b16 %v1012
      %v1096 = vunpack.c.l.b16 %v1013
      %v1097 = vunpack.c.l.b16 %v1014
      %v1098 = vunpack.c.l.b16 %v1015
      %v1099 = vpack.c.b16 %v1092, %v1091
      %v1100 = vpack.c.b16 %v1094, %v1093
      %v1101 = vpack.c.b16 %v1096, %v1095
      %v1102 = vpack.c.b16 %v1098, %v1097
      %v1108 = vsel %vm501, %v1066, 0
      %v1111 = vsel %vm501, %v1068, 0
      %v1114 = vsel %vm501, %v1070, 0
      %v1117 = vsel %vm501, %v1072, 0
      %v1120 = vsel %vm501, %v1074, 0
      %v1123 = vsel %vm501, %v1076, 0
      %v1126 = vsel %vm501, %v1078, 0
      %v1129 = vsel %vm501, %v1080, 0
      %v1132 = vsel %vm501, %v1082, 0
      %1134 = vmatprep.subr.bf16.mxu0 0
      %1135 = vmatpush1.bf16.msra.mxu0 0
      %1136 = vmatprep.subr.bf16.mxu0 0
      %1137 = vmatpush1.bf16.msra.mxu0 0
      %1138 = vmatprep.subr.bf16.mxu0 0
      %1139 = vmatpush1.bf16.msra.mxu0 0
      %1140 = vmatprep.subr.bf16.mxu0 0
      %1141 = vmatpush1.bf16.msra.mxu0 0
      %1142 = vmatprep.subr.bf16.mxu0 0
      %1143 = vmatpush1.bf16.msra.mxu0 %v1102
      %1144 = vmatprep.subr.bf16.mxu0 0
      %1145 = vmatpush1.bf16.msra.mxu0 %v1101
      %1146 = vmatprep.subr.bf16.mxu0 0
      %1147 = vmatpush1.bf16.msra.mxu0 %v1100
      %1148 = vmatprep.subr.bf16.mxu0 0
      %1149 = vmatpush1.bf16.msra.mxu0 %v1099
      %1150 = vmatprep.subr.bf16.mxu0 0
      %1151 = vmatpush2.bf16.msra.mxu0 0
      %1152 = vmatprep.subr.bf16.mxu0 0
      %1153 = vmatpush2.bf16.msra.mxu0 0
      %1154 = vmatprep.subr.bf16.mxu0 0
      %1155 = vmatpush2.bf16.msra.mxu0 0
      %1156 = vmatprep.subr.bf16.mxu0 0
      %1157 = vmatpush2.bf16.msra.mxu0 0
      %1158 = vmatprep.subr.bf16.mxu0 0
      %1159 = vmatpush2.bf16.msra.mxu0 0
      %1160 = vmatprep.subr.bf16.mxu0 0
      %1161 = vmatpush2.bf16.msra.mxu0 0
      %1162 = vmatprep.subr.bf16.mxu0 0
      %1163 = vmatpush2.bf16.msra.mxu0 0
      %1164 = vmatprep.subr.bf16.mxu0 0
      %1165 = vmatpush2.bf16.msra.mxu0 0
      %1166 = vmatprep.mubr.bf16.mxu0 0
      %1167 = vmatmul.mubr.bf16.gmra.mxu0 %v1108
      %v1168 = vpop.f32.mrf.mxu0
      %v1169 = vadd.f32 0.0, %v1168
      %v1170 = vpop.f32.mrf.mxu0
      %v1171 = vpop.f32.mrf.mxu0
      %v1172 = vadd.f32 0.0, %v1171
      %v1173 = vpop.f32.mrf.mxu0
      %1174 = vmatprep.mubr.bf16.mxu0 0
      %1175 = vmatmul.mubr.bf16.gmra.mxu0 %v1111
      %v1176 = vpop.f32.mrf.mxu0
      %v1177 = vadd.f32 0.0, %v1176
      %v1178 = vpop.f32.mrf.mxu0
      %v1179 = vpop.f32.mrf.mxu0
      %v1180 = vadd.f32 0.0, %v1179
      %v1181 = vpop.f32.mrf.mxu0
      %1182 = vmatprep.mubr.bf16.mxu0 0
      %1183 = vmatmul.mubr.bf16.gmra.mxu0 %v1114
      %v1184 = vpop.f32.mrf.mxu0
      %v1185 = vadd.f32 0.0, %v1184
      %v1186 = vpop.f32.mrf.mxu0
      %v1187 = vpop.f32.mrf.mxu0
      %v1188 = vadd.f32 0.0, %v1187
      %v1189 = vpop.f32.mrf.mxu0
      %1190 = vmatprep.mubr.bf16.mxu0 0
      %1191 = vmatmul.mubr.bf16.gmra.mxu0 %v1117
      %v1192 = vpop.f32.mrf.mxu0
      %v1193 = vadd.f32 0.0, %v1192
      %v1194 = vpop.f32.mrf.mxu0
      %v1195 = vpop.f32.mrf.mxu0
      %v1196 = vadd.f32 0.0, %v1195
      %v1197 = vpop.f32.mrf.mxu0
      %1198 = vmatprep.mubr.bf16.mxu0 0
      %1199 = vmatmul.mubr.bf16.gmra.mxu0 %v1120
      %v1200 = vpop.f32.mrf.mxu0
      %v1201 = vadd.f32 0.0, %v1200
      %v1202 = vpop.f32.mrf.mxu0
      %v1203 = vpop.f32.mrf.mxu0
      %v1204 = vadd.f32 0.0, %v1203
      %v1205 = vpop.f32.mrf.mxu0
      %1206 = vmatprep.mubr.bf16.mxu0 0
      %1207 = vmatmul.mubr.bf16.gmra.mxu0 %v1123
      %v1208 = vpop.f32.mrf.mxu0
      %v1209 = vadd.f32 0.0, %v1208
      %v1210 = vpop.f32.mrf.mxu0
      %v1211 = vpop.f32.mrf.mxu0
      %v1212 = vadd.f32 0.0, %v1211
      %v1213 = vpop.f32.mrf.mxu0
      %1214 = vmatprep.mubr.bf16.mxu0 0
      %1215 = vmatmul.mubr.bf16.gmra.mxu0 %v1126
      %v1216 = vpop.f32.mrf.mxu0
      %v1217 = vadd.f32 0.0, %v1216
      %v1218 = vpop.f32.mrf.mxu0
      %v1219 = vpop.f32.mrf.mxu0
      %v1220 = vadd.f32 0.0, %v1219
      %v1221 = vpop.f32.mrf.mxu0
      %1222 = vmatprep.mubr.bf16.mxu0 0
      %1223 = vmatmul.mubr.bf16.gmra.mxu0 %v1129
      %v1224 = vpop.f32.mrf.mxu0
      %v1225 = vadd.f32 0.0, %v1224
      %v1226 = vpop.f32.mrf.mxu0
      %v1227 = vpop.f32.mrf.mxu0
      %v1228 = vadd.f32 0.0, %v1227
      %v1229 = vpop.f32.mrf.mxu0
      %1230 = vmatprep.mubr.bf16.mxu0 0
      %1231 = vmatmul.mubr.bf16.gmra.mxu0 %v1132
      %v1232 = vpop.f32.mrf.mxu0
      %v1233 = vadd.f32 0.0, %v1232
      %v1234 = vpop.f32.mrf.mxu0
      %v1235 = vpop.f32.mrf.mxu0
      %v1236 = vadd.f32 0.0, %v1235
      %v1237 = vpop.f32.mrf.mxu0
      %1238 = vdwg.mxu0
      %v1239 = vadd.f32 %v970, %v1169
      %v1240 = vadd.f32 %v971, %v1172
      %v1241 = vadd.f32 %v972, %v1177
      %v1242 = vadd.f32 %v973, %v1180
      %v1243 = vadd.f32 %v974, %v1185
      %v1244 = vadd.f32 %v975, %v1188
      %v1245 = vadd.f32 %v976, %v1193
      %v1246 = vadd.f32 %v977, %v1196
      %v1247 = vadd.f32 %v978, %v1201
      %v1248 = vadd.f32 %v979, %v1204
      %v1249 = vadd.f32 %v980, %v1209
      %v1250 = vadd.f32 %v981, %v1212
      %v1251 = vadd.f32 %v982, %v1217
      %v1252 = vadd.f32 %v983, %v1220
      %v1253 = vadd.f32 %v984, %v1225
      %v1254 = vadd.f32 %v985, %v1228
      %v1255 = vadd.f32 %v986, %v1233
      %v1256 = vadd.f32 %v987, %v1236
      %v1257 = vld [vmem:[%s281 + $0x50] sm:$0x3]
      %s1258 = scalar_lea.vmem %s1, 128
      %v1259 = vld [vmem:[%s1258] sm:$0xf]
      %v1260 = vld [vmem:[%s1258 + $0x4] sm:$0xf]
      %v1261 = vld [vmem:[%s1258 + $0x8] sm:$0xf]
      %v1262 = vld [vmem:[%s1258 + $0xc] sm:$0xf]
      %v1263 = vld [vmem:[%s1258 + $0x10] sm:$0xf]
      %v1264 = vld [vmem:[%s1258 + $0x14] sm:$0xf]
      %v1265 = vld [vmem:[%s1258 + $0x18] sm:$0xf]
      %v1266 = vld [vmem:[%s1258 + $0x1c] sm:$0xf]
      %v1268 = vunpack.c.l.b16 %v1257
      %v1269 = vpack.c.b16 %v1268, %v1268
      %vm1270 = vsmask.f32 6400
      %v1272 = vshrl.u32 %v1054, 16
      %v1274 = vrot.slane %v1272, 1
      %v1275 = vshll.u32 %v1054, 16
      %v1277 = vrot.slane %v1275, 2
      %v1278 = vor.u32 %v1274, %v1277
      %v1280 = vshrl.u32 %v1055, 16
      %v1282 = vrot.slane %v1280, 1
      %v1283 = vshll.u32 %v1055, 16
      %v1285 = vrot.slane %v1283, 2
      %v1286 = vor.u32 %v1282, %v1285
      %v1287 = vsel %vm1270, %v1278, %v1286
      %v1289 = vshrl.u32 %v1056, 16
      %v1291 = vrot.slane %v1289, 1
      %v1292 = vshll.u32 %v1056, 16
      %v1294 = vrot.slane %v1292, 2
      %v1295 = vor.u32 %v1291, %v1294
      %v1296 = vsel %vm1270, %v1286, %v1295
      %v1298 = vshrl.u32 %v1057, 16
      %v1300 = vrot.slane %v1298, 1
      %v1301 = vshll.u32 %v1057, 16
      %v1303 = vrot.slane %v1301, 2
      %v1304 = vor.u32 %v1300, %v1303
      %v1305 = vsel %vm1270, %v1295, %v1304
      %v1307 = vshrl.u32 %v1058, 16
      %v1309 = vrot.slane %v1307, 1
      %v1310 = vshll.u32 %v1058, 16
      %v1312 = vrot.slane %v1310, 2
      %v1313 = vor.u32 %v1309, %v1312
      %v1314 = vsel %vm1270, %v1304, %v1313
      %v1316 = vshrl.u32 %v1059, 16
      %v1318 = vrot.slane %v1316, 1
      %v1319 = vshll.u32 %v1059, 16
      %v1321 = vrot.slane %v1319, 2
      %v1322 = vor.u32 %v1318, %v1321
      %v1323 = vsel %vm1270, %v1313, %v1322
      %v1325 = vshrl.u32 %v1060, 16
      %v1327 = vrot.slane %v1325, 1
      %v1328 = vshll.u32 %v1060, 16
      %v1330 = vrot.slane %v1328, 2
      %v1331 = vor.u32 %v1327, %v1330
      %v1332 = vsel %vm1270, %v1322, %v1331
      %v1334 = vshrl.u32 %v1061, 16
      %v1336 = vrot.slane %v1334, 1
      %v1337 = vshll.u32 %v1061, 16
      %v1339 = vrot.slane %v1337, 2
      %v1340 = vor.u32 %v1336, %v1339
      %v1341 = vsel %vm1270, %v1331, %v1340
      %v1343 = vshrl.u32 %v1062, 16
      %v1345 = vrot.slane %v1343, 1
      %v1346 = vshll.u32 %v1062, 16
      %v1348 = vrot.slane %v1346, 2
      %v1349 = vor.u32 %v1345, %v1348
      %v1350 = vsel %vm1270, %v1340, %v1349
      %v1352 = vshrl.u32 %v1269, 16
      %v1354 = vrot.slane %v1352, 1
      %v1355 = vshll.u32 %v1269, 16
      %v1357 = vrot.slane %v1355, 2
      %v1358 = vor.u32 %v1354, %v1357
      %v1359 = vsel %vm1270, %v1349, %v1358
      %v1368 = vunpack.c.l.b16 %v1259
      %v1369 = vunpack.c.l.b16 %v1260
      %v1370 = vunpack.c.l.b16 %v1261
      %v1371 = vunpack.c.l.b16 %v1262
      %v1372 = vunpack.c.l.b16 %v1263
      %v1373 = vunpack.c.l.b16 %v1264
      %v1374 = vunpack.c.l.b16 %v1265
      %v1375 = vunpack.c.l.b16 %v1266
      %v1376 = vpack.c.b16 %v1369, %v1368
      %v1377 = vpack.c.b16 %v1371, %v1370
      %v1378 = vpack.c.b16 %v1373, %v1372
      %v1379 = vpack.c.b16 %v1375, %v1374
      %v1385 = vsel %vm501, %v1287, 0
      %v1388 = vsel %vm501, %v1296, 0
      %v1391 = vsel %vm501, %v1305, 0
      %v1394 = vsel %vm501, %v1314, 0
      %v1397 = vsel %vm501, %v1323, 0
      %v1400 = vsel %vm501, %v1332, 0
      %v1403 = vsel %vm501, %v1341, 0
      %v1406 = vsel %vm501, %v1350, 0
      %v1409 = vsel %vm501, %v1359, 0
      %1411 = vmatprep.subr.bf16.mxu0 0
      %1412 = vmatpush1.bf16.msra.mxu0 0
      %1413 = vmatprep.subr.bf16.mxu0 0
      %1414 = vmatpush1.bf16.msra.mxu0 0
      %1415 = vmatprep.subr.bf16.mxu0 0
      %1416 = vmatpush1.bf16.msra.mxu0 0
      %1417 = vmatprep.subr.bf16.mxu0 0
      %1418 = vmatpush1.bf16.msra.mxu0 0
      %1419 = vmatprep.subr.bf16.mxu0 0
      %1420 = vmatpush1.bf16.msra.mxu0 %v1379
      %1421 = vmatprep.subr.bf16.mxu0 0
      %1422 = vmatpush1.bf16.msra.mxu0 %v1378
      %1423 = vmatprep.subr.bf16.mxu0 0
      %1424 = vmatpush1.bf16.msra.mxu0 %v1377
      %1425 = vmatprep.subr.bf16.mxu0 0
      %1426 = vmatpush1.bf16.msra.mxu0 %v1376
      %1427 = vmatprep.subr.bf16.mxu0 0
      %1428 = vmatpush2.bf16.msra.mxu0 0
      %1429 = vmatprep.subr.bf16.mxu0 0
      %1430 = vmatpush2.bf16.msra.mxu0 0
      %1431 = vmatprep.subr.bf16.mxu0 0
      %1432 = vmatpush2.bf16.msra.mxu0 0
      %1433 = vmatprep.subr.bf16.mxu0 0
      %1434 = vmatpush2.bf16.msra.mxu0 0
      %1435 = vmatprep.subr.bf16.mxu0 0
      %1436 = vmatpush2.bf16.msra.mxu0 0
      %1437 = vmatprep.subr.bf16.mxu0 0
      %1438 = vmatpush2.bf16.msra.mxu0 0
      %1439 = vmatprep.subr.bf16.mxu0 0
      %1440 = vmatpush2.bf16.msra.mxu0 0
      %1441 = vmatprep.subr.bf16.mxu0 0
      %1442 = vmatpush2.bf16.msra.mxu0 0
      %1443 = vmatprep.mubr.bf16.mxu0 0
      %1444 = vmatmul.mubr.bf16.gmra.mxu0 %v1385
      %v1445 = vpop.f32.mrf.mxu0
      %v1446 = vadd.f32 0.0, %v1445
      %v1447 = vpop.f32.mrf.mxu0
      %v1448 = vpop.f32.mrf.mxu0
      %v1449 = vadd.f32 0.0, %v1448
      %v1450 = vpop.f32.mrf.mxu0
      %1451 = vmatprep.mubr.bf16.mxu0 0
      %1452 = vmatmul.mubr.bf16.gmra.mxu0 %v1388
      %v1453 = vpop.f32.mrf.mxu0
      %v1454 = vadd.f32 0.0, %v1453
      %v1455 = vpop.f32.mrf.mxu0
      %v1456 = vpop.f32.mrf.mxu0
      %v1457 = vadd.f32 0.0, %v1456
      %v1458 = vpop.f32.mrf.mxu0
      %1459 = vmatprep.mubr.bf16.mxu0 0
      %1460 = vmatmul.mubr.bf16.gmra.mxu0 %v1391
      %v1461 = vpop.f32.mrf.mxu0
      %v1462 = vadd.f32 0.0, %v1461
      %v1463 = vpop.f32.mrf.mxu0
      %v1464 = vpop.f32.mrf.mxu0
      %v1465 = vadd.f32 0.0, %v1464
      %v1466 = vpop.f32.mrf.mxu0
      %1467 = vmatprep.mubr.bf16.mxu0 0
      %1468 = vmatmul.mubr.bf16.gmra.mxu0 %v1394
      %v1469 = vpop.f32.mrf.mxu0
      %v1470 = vadd.f32 0.0, %v1469
      %v1471 = vpop.f32.mrf.mxu0
      %v1472 = vpop.f32.mrf.mxu0
      %v1473 = vadd.f32 0.0, %v1472
      %v1474 = vpop.f32.mrf.mxu0
      %1475 = vmatprep.mubr.bf16.mxu0 0
      %1476 = vmatmul.mubr.bf16.gmra.mxu0 %v1397
      %v1477 = vpop.f32.mrf.mxu0
      %v1478 = vadd.f32 0.0, %v1477
      %v1479 = vpop.f32.mrf.mxu0
      %v1480 = vpop.f32.mrf.mxu0
      %v1481 = vadd.f32 0.0, %v1480
      %v1482 = vpop.f32.mrf.mxu0
      %1483 = vmatprep.mubr.bf16.mxu0 0
      %1484 = vmatmul.mubr.bf16.gmra.mxu0 %v1400
      %v1485 = vpop.f32.mrf.mxu0
      %v1486 = vadd.f32 0.0, %v1485
      %v1487 = vpop.f32.mrf.mxu0
      %v1488 = vpop.f32.mrf.mxu0
      %v1489 = vadd.f32 0.0, %v1488
      %v1490 = vpop.f32.mrf.mxu0
      %1491 = vmatprep.mubr.bf16.mxu0 0
      %1492 = vmatmul.mubr.bf16.gmra.mxu0 %v1403
      %v1493 = vpop.f32.mrf.mxu0
      %v1494 = vadd.f32 0.0, %v1493
      %v1495 = vpop.f32.mrf.mxu0
      %v1496 = vpop.f32.mrf.mxu0
      %v1497 = vadd.f32 0.0, %v1496
      %v1498 = vpop.f32.mrf.mxu0
      %1499 = vmatprep.mubr.bf16.mxu0 0
      %1500 = vmatmul.mubr.bf16.gmra.mxu0 %v1406
      %v1501 = vpop.f32.mrf.mxu0
      %v1502 = vadd.f32 0.0, %v1501
      %v1503 = vpop.f32.mrf.mxu0
      %v1504 = vpop.f32.mrf.mxu0
      %v1505 = vadd.f32 0.0, %v1504
      %v1506 = vpop.f32.mrf.mxu0
      %1507 = vmatprep.mubr.bf16.mxu0 0
      %1508 = vmatmul.mubr.bf16.gmra.mxu0 %v1409
      %v1509 = vpop.f32.mrf.mxu0
      %v1510 = vadd.f32 0.0, %v1509
      %v1511 = vpop.f32.mrf.mxu0
      %v1512 = vpop.f32.mrf.mxu0
      %v1513 = vadd.f32 0.0, %v1512
      %v1514 = vpop.f32.mrf.mxu0
      %1515 = vdwg.mxu0
      %v1516 = vadd.f32 %v1239, %v1446
      %v1517 = vadd.f32 %v1240, %v1449
      %v1518 = vadd.f32 %v1241, %v1454
      %v1519 = vadd.f32 %v1242, %v1457
      %v1520 = vadd.f32 %v1243, %v1462
      %v1521 = vadd.f32 %v1244, %v1465
      %v1522 = vadd.f32 %v1245, %v1470
      %v1523 = vadd.f32 %v1246, %v1473
      %v1524 = vadd.f32 %v1247, %v1478
      %v1525 = vadd.f32 %v1248, %v1481
      %v1526 = vadd.f32 %v1249, %v1486
      %v1527 = vadd.f32 %v1250, %v1489
      %v1528 = vadd.f32 %v1251, %v1494
      %v1529 = vadd.f32 %v1252, %v1497
      %v1530 = vadd.f32 %v1253, %v1502
      %v1531 = vadd.f32 %v1254, %v1505
      %v1532 = vadd.f32 %v1255, %v1510
      %v1533 = vadd.f32 %v1256, %v1513
      %v1534 = vld [vmem:[%s281 + $0x8] sm:$0xc]
      %s1535 = scalar_lea.vmem %s1, 160
      %v1536 = vld [vmem:[%s1535] sm:$0xf]
      %v1537 = vld [vmem:[%s1535 + $0x4] sm:$0xf]
      %v1538 = vld [vmem:[%s1535 + $0x8] sm:$0xf]
      %v1539 = vld [vmem:[%s1535 + $0xc] sm:$0xf]
      %v1540 = vld [vmem:[%s1535 + $0x10] sm:$0xf]
      %v1541 = vld [vmem:[%s1535 + $0x14] sm:$0xf]
      %v1542 = vld [vmem:[%s1535 + $0x18] sm:$0xf]
      %v1543 = vld [vmem:[%s1535 + $0x1c] sm:$0xf]
      %v1545 = vunpack.c.l.b16 %v1534
      %v1546 = vpack.c.b16 %v1036, %v1545
      %vm1547 = vcmask 1045504
      %v1548 = vrot.slane %v1546, 2
      %v1549 = vrot.slane %v1055, 2
      %v1550 = vsel %vm1547, %v1548, %v1549
      %v1551 = vrot.slane %v1056, 2
      %v1552 = vsel %vm1547, %v1549, %v1551
      %v1553 = vrot.slane %v1057, 2
      %v1554 = vsel %vm1547, %v1551, %v1553
      %v1555 = vrot.slane %v1058, 2
      %v1556 = vsel %vm1547, %v1553, %v1555
      %v1557 = vrot.slane %v1059, 2
      %v1558 = vsel %vm1547, %v1555, %v1557
      %v1559 = vrot.slane %v1060, 2
      %v1560 = vsel %vm1547, %v1557, %v1559
      %v1561 = vrot.slane %v1061, 2
      %v1562 = vsel %vm1547, %v1559, %v1561
      %v1563 = vrot.slane %v1062, 2
      %v1564 = vsel %vm1547, %v1561, %v1563
      %v1565 = vrot.slane %v1269, 2
      %v1566 = vsel %vm1547, %v1563, %v1565
      %v1575 = vunpack.c.l.b16 %v1536
      %v1576 = vunpack.c.l.b16 %v1537
      %v1577 = vunpack.c.l.b16 %v1538
      %v1578 = vunpack.c.l.b16 %v1539
      %v1579 = vunpack.c.l.b16 %v1540
      %v1580 = vunpack.c.l.b16 %v1541
      %v1581 = vunpack.c.l.b16 %v1542
      %v1582 = vunpack.c.l.b16 %v1543
      %v1583 = vpack.c.b16 %v1576, %v1575
      %v1584 = vpack.c.b16 %v1578, %v1577
      %v1585 = vpack.c.b16 %v1580, %v1579
      %v1586 = vpack.c.b16 %v1582, %v1581
      %v1592 = vsel %vm501, %v1550, 0
      %v1595 = vsel %vm501, %v1552, 0
      %v1598 = vsel %vm501, %v1554, 0
      %v1601 = vsel %vm501, %v1556, 0
      %v1604 = vsel %vm501, %v1558, 0
      %v1607 = vsel %vm501, %v1560, 0
      %v1610 = vsel %vm501, %v1562, 0
      %v1613 = vsel %vm501, %v1564, 0
      %v1616 = vsel %vm501, %v1566, 0
      %1618 = vmatprep.subr.bf16.mxu0 0
      %1619 = vmatpush1.bf16.msra.mxu0 0
      %1620 = vmatprep.subr.bf16.mxu0 0
      %1621 = vmatpush1.bf16.msra.mxu0 0
      %1622 = vmatprep.subr.bf16.mxu0 0
      %1623 = vmatpush1.bf16.msra.mxu0 0
      %1624 = vmatprep.subr.bf16.mxu0 0
      %1625 = vmatpush1.bf16.msra.mxu0 0
      %1626 = vmatprep.subr.bf16.mxu0 0
      %1627 = vmatpush1.bf16.msra.mxu0 %v1586
      %1628 = vmatprep.subr.bf16.mxu0 0
      %1629 = vmatpush1.bf16.msra.mxu0 %v1585
      %1630 = vmatprep.subr.bf16.mxu0 0
      %1631 = vmatpush1.bf16.msra.mxu0 %v1584
      %1632 = vmatprep.subr.bf16.mxu0 0
      %1633 = vmatpush1.bf16.msra.mxu0 %v1583
      %1634 = vmatprep.subr.bf16.mxu0 0
      %1635 = vmatpush2.bf16.msra.mxu0 0
      %1636 = vmatprep.subr.bf16.mxu0 0
      %1637 = vmatpush2.bf16.msra.mxu0 0
      %1638 = vmatprep.subr.bf16.mxu0 0
      %1639 = vmatpush2.bf16.msra.mxu0 0
      %1640 = vmatprep.subr.bf16.mxu0 0
      %1641 = vmatpush2.bf16.msra.mxu0 0
      %1642 = vmatprep.subr.bf16.mxu0 0
      %1643 = vmatpush2.bf16.msra.mxu0 0
      %1644 = vmatprep.subr.bf16.mxu0 0
      %1645 = vmatpush2.bf16.msra.mxu0 0
      %1646 = vmatprep.subr.bf16.mxu0 0
      %1647 = vmatpush2.bf16.msra.mxu0 0
      %1648 = vmatprep.subr.bf16.mxu0 0
      %1649 = vmatpush2.bf16.msra.mxu0 0
      %1650 = vmatprep.mubr.bf16.mxu0 0
      %1651 = vmatmul.mubr.bf16.gmra.mxu0 %v1592
      %v1652 = vpop.f32.mrf.mxu0
      %v1653 = vadd.f32 0.0, %v1652
      %v1654 = vpop.f32.mrf.mxu0
      %v1655 = vpop.f32.mrf.mxu0
      %v1656 = vadd.f32 0.0, %v1655
      %v1657 = vpop.f32.mrf.mxu0
      %1658 = vmatprep.mubr.bf16.mxu0 0
      %1659 = vmatmul.mubr.bf16.gmra.mxu0 %v1595
      %v1660 = vpop.f32.mrf.mxu0
      %v1661 = vadd.f32 0.0, %v1660
      %v1662 = vpop.f32.mrf.mxu0
      %v1663 = vpop.f32.mrf.mxu0
      %v1664 = vadd.f32 0.0, %v1663
      %v1665 = vpop.f32.mrf.mxu0
      %1666 = vmatprep.mubr.bf16.mxu0 0
      %1667 = vmatmul.mubr.bf16.gmra.mxu0 %v1598
      %v1668 = vpop.f32.mrf.mxu0
      %v1669 = vadd.f32 0.0, %v1668
      %v1670 = vpop.f32.mrf.mxu0
      %v1671 = vpop.f32.mrf.mxu0
      %v1672 = vadd.f32 0.0, %v1671
      %v1673 = vpop.f32.mrf.mxu0
      %1674 = vmatprep.mubr.bf16.mxu0 0
      %1675 = vmatmul.mubr.bf16.gmra.mxu0 %v1601
      %v1676 = vpop.f32.mrf.mxu0
      %v1677 = vadd.f32 0.0, %v1676
      %v1678 = vpop.f32.mrf.mxu0
      %v1679 = vpop.f32.mrf.mxu0
      %v1680 = vadd.f32 0.0, %v1679
      %v1681 = vpop.f32.mrf.mxu0
      %1682 = vmatprep.mubr.bf16.mxu0 0
      %1683 = vmatmul.mubr.bf16.gmra.mxu0 %v1604
      %v1684 = vpop.f32.mrf.mxu0
      %v1685 = vadd.f32 0.0, %v1684
      %v1686 = vpop.f32.mrf.mxu0
      %v1687 = vpop.f32.mrf.mxu0
      %v1688 = vadd.f32 0.0, %v1687
      %v1689 = vpop.f32.mrf.mxu0
      %1690 = vmatprep.mubr.bf16.mxu0 0
      %1691 = vmatmul.mubr.bf16.gmra.mxu0 %v1607
      %v1692 = vpop.f32.mrf.mxu0
      %v1693 = vadd.f32 0.0, %v1692
      %v1694 = vpop.f32.mrf.mxu0
      %v1695 = vpop.f32.mrf.mxu0
      %v1696 = vadd.f32 0.0, %v1695
      %v1697 = vpop.f32.mrf.mxu0
      %1698 = vmatprep.mubr.bf16.mxu0 0
      %1699 = vmatmul.mubr.bf16.gmra.mxu0 %v1610
      %v1700 = vpop.f32.mrf.mxu0
      %v1701 = vadd.f32 0.0, %v1700
      %v1702 = vpop.f32.mrf.mxu0
      %v1703 = vpop.f32.mrf.mxu0
      %v1704 = vadd.f32 0.0, %v1703
      %v1705 = vpop.f32.mrf.mxu0
      %1706 = vmatprep.mubr.bf16.mxu0 0
      %1707 = vmatmul.mubr.bf16.gmra.mxu0 %v1613
      %v1708 = vpop.f32.mrf.mxu0
      %v1709 = vadd.f32 0.0, %v1708
      %v1710 = vpop.f32.mrf.mxu0
      %v1711 = vpop.f32.mrf.mxu0
      %v1712 = vadd.f32 0.0, %v1711
      %v1713 = vpop.f32.mrf.mxu0
      %1714 = vmatprep.mubr.bf16.mxu0 0
      %1715 = vmatmul.mubr.bf16.gmra.mxu0 %v1616
      %v1716 = vpop.f32.mrf.mxu0
      %v1717 = vadd.f32 0.0, %v1716
      %v1718 = vpop.f32.mrf.mxu0
      %v1719 = vpop.f32.mrf.mxu0
      %v1720 = vadd.f32 0.0, %v1719
      %v1721 = vpop.f32.mrf.mxu0
      %1722 = vdwg.mxu0
      %v1723 = vadd.f32 %v1516, %v1653
      %v1724 = vadd.f32 %v1517, %v1656
      %v1725 = vadd.f32 %v1518, %v1661
      %v1726 = vadd.f32 %v1519, %v1664
      %v1727 = vadd.f32 %v1520, %v1669
      %v1728 = vadd.f32 %v1521, %v1672
      %v1729 = vadd.f32 %v1522, %v1677
      %v1730 = vadd.f32 %v1523, %v1680
      %v1731 = vadd.f32 %v1524, %v1685
      %v1732 = vadd.f32 %v1525, %v1688
      %v1733 = vadd.f32 %v1526, %v1693
      %v1734 = vadd.f32 %v1527, %v1696
      %v1735 = vadd.f32 %v1528, %v1701
      %v1736 = vadd.f32 %v1529, %v1704
      %v1737 = vadd.f32 %v1530, %v1709
      %v1738 = vadd.f32 %v1531, %v1712
      %v1739 = vadd.f32 %v1532, %v1717
      %v1740 = vadd.f32 %v1533, %v1720
      %v1741 = vld [vmem:[%s281 + $0x10] sm:$0xc]
      %v1742 = vld [vmem:[%s281 + $0x14] sm:$0xf]
      %v1743 = vld [vmem:[%s281 + $0x18] sm:$0xf]
      %v1744 = vld [vmem:[%s281 + $0x1c] sm:$0xf]
      %v1745 = vld [vmem:[%s281 + $0x20] sm:$0xf]
      %v1746 = vld [vmem:[%s281 + $0x24] sm:$0xf]
      %v1747 = vld [vmem:[%s281 + $0x28] sm:$0xf]
      %v1748 = vld [vmem:[%s281 + $0x2c] sm:$0xf]
      %v1749 = vld [vmem:[%s281 + $0x30] sm:$0xf]
      %v1750 = vld [vmem:[%s281 + $0x34] sm:$0xf]
      %v1751 = vld [vmem:[%s281 + $0x38] sm:$0xf]
      %v1752 = vld [vmem:[%s281 + $0x3c] sm:$0xf]
      %v1753 = vld [vmem:[%s281 + $0x40] sm:$0xf]
      %v1754 = vld [vmem:[%s281 + $0x44] sm:$0xf]
      %v1755 = vld [vmem:[%s281 + $0x48] sm:$0xf]
      %v1756 = vld [vmem:[%s281 + $0x4c] sm:$0xf]
      %v1757 = vld [vmem:[%s281 + $0x50] sm:$0xf]
      %v1758 = vld [vmem:[%s281 + $0x54] sm:$0xf]
      %v1759 = vld [vmem:[%s281 + $0x58] sm:$0x3]
      %s1760 = scalar_lea.vmem %s1, 192
      %v1761 = vld [vmem:[%s1760] sm:$0xf]
      %v1762 = vld [vmem:[%s1760 + $0x4] sm:$0xf]
      %v1763 = vld [vmem:[%s1760 + $0x8] sm:$0xf]
      %v1764 = vld [vmem:[%s1760 + $0xc] sm:$0xf]
      %v1765 = vld [vmem:[%s1760 + $0x10] sm:$0xf]
      %v1766 = vld [vmem:[%s1760 + $0x14] sm:$0xf]
      %v1767 = vld [vmem:[%s1760 + $0x18] sm:$0xf]
      %v1768 = vld [vmem:[%s1760 + $0x1c] sm:$0xf]
      %v1788 = vunpack.c.l.b16 %v1741
      %v1789 = vunpack.c.l.b16 %v1742
      %v1790 = vunpack.c.l.b16 %v1743
      %v1791 = vunpack.c.l.b16 %v1744
      %v1792 = vunpack.c.l.b16 %v1745
      %v1793 = vunpack.c.l.b16 %v1746
      %v1794 = vunpack.c.l.b16 %v1747
      %v1795 = vunpack.c.l.b16 %v1748
      %v1796 = vunpack.c.l.b16 %v1749
      %v1797 = vunpack.c.l.b16 %v1750
      %v1798 = vunpack.c.l.b16 %v1751
      %v1799 = vunpack.c.l.b16 %v1752
      %v1800 = vunpack.c.l.b16 %v1753
      %v1801 = vunpack.c.l.b16 %v1754
      %v1802 = vunpack.c.l.b16 %v1755
      %v1803 = vunpack.c.l.b16 %v1756
      %v1804 = vunpack.c.l.b16 %v1757
      %v1805 = vunpack.c.l.b16 %v1758
      %v1806 = vunpack.c.l.b16 %v1759
      %v1807 = vpack.c.b16 %v1789, %v1788
      %v1808 = vpack.c.b16 %v1791, %v1790
      %v1809 = vpack.c.b16 %v1793, %v1792
      %v1810 = vpack.c.b16 %v1795, %v1794
      %v1811 = vpack.c.b16 %v1797, %v1796
      %v1812 = vpack.c.b16 %v1799, %v1798
      %v1813 = vpack.c.b16 %v1801, %v1800
      %v1814 = vpack.c.b16 %v1803, %v1802
      %v1815 = vpack.c.b16 %v1805, %v1804
      %v1816 = vpack.c.b16 %v1806, %v1806
      %v1817 = vrot.slane %v1807, 2
      %v1818 = vrot.slane %v1808, 2
      %v1819 = vsel %vm1547, %v1817, %v1818
      %v1820 = vrot.slane %v1809, 2
      %v1821 = vsel %vm1547, %v1818, %v1820
      %v1822 = vrot.slane %v1810, 2
      %v1823 = vsel %vm1547, %v1820, %v1822
      %v1824 = vrot.slane %v1811, 2
      %v1825 = vsel %vm1547, %v1822, %v1824
      %v1826 = vrot.slane %v1812, 2
      %v1827 = vsel %vm1547, %v1824, %v1826
      %v1828 = vrot.slane %v1813, 2
      %v1829 = vsel %vm1547, %v1826, %v1828
      %v1830 = vrot.slane %v1814, 2
      %v1831 = vsel %vm1547, %v1828, %v1830
      %v1832 = vrot.slane %v1815, 2
      %v1833 = vsel %vm1547, %v1830, %v1832
      %v1834 = vrot.slane %v1816, 2
      %v1835 = vsel %vm1547, %v1832, %v1834
      %v1844 = vunpack.c.l.b16 %v1761
      %v1845 = vunpack.c.l.b16 %v1762
      %v1846 = vunpack.c.l.b16 %v1763
      %v1847 = vunpack.c.l.b16 %v1764
      %v1848 = vunpack.c.l.b16 %v1765
      %v1849 = vunpack.c.l.b16 %v1766
      %v1850 = vunpack.c.l.b16 %v1767
      %v1851 = vunpack.c.l.b16 %v1768
      %v1852 = vpack.c.b16 %v1845, %v1844
      %v1853 = vpack.c.b16 %v1847, %v1846
      %v1854 = vpack.c.b16 %v1849, %v1848
      %v1855 = vpack.c.b16 %v1851, %v1850
      %v1861 = vsel %vm501, %v1819, 0
      %v1864 = vsel %vm501, %v1821, 0
      %v1867 = vsel %vm501, %v1823, 0
      %v1870 = vsel %vm501, %v1825, 0
      %v1873 = vsel %vm501, %v1827, 0
      %v1876 = vsel %vm501, %v1829, 0
      %v1879 = vsel %vm501, %v1831, 0
      %v1882 = vsel %vm501, %v1833, 0
      %v1885 = vsel %vm501, %v1835, 0
      %1887 = vmatprep.subr.bf16.mxu0 0
      %1888 = vmatpush1.bf16.msra.mxu0 0
      %1889 = vmatprep.subr.bf16.mxu0 0
      %1890 = vmatpush1.bf16.msra.mxu0 0
      %1891 = vmatprep.subr.bf16.mxu0 0
      %1892 = vmatpush1.bf16.msra.mxu0 0
      %1893 = vmatprep.subr.bf16.mxu0 0
      %1894 = vmatpush1.bf16.msra.mxu0 0
      %1895 = vmatprep.subr.bf16.mxu0 0
      %1896 = vmatpush1.bf16.msra.mxu0 %v1855
      %1897 = vmatprep.subr.bf16.mxu0 0
      %1898 = vmatpush1.bf16.msra.mxu0 %v1854
      %1899 = vmatprep.subr.bf16.mxu0 0
      %1900 = vmatpush1.bf16.msra.mxu0 %v1853
      %1901 = vmatprep.subr.bf16.mxu0 0
      %1902 = vmatpush1.bf16.msra.mxu0 %v1852
      %1903 = vmatprep.subr.bf16.mxu0 0
      %1904 = vmatpush2.bf16.msra.mxu0 0
      %1905 = vmatprep.subr.bf16.mxu0 0
      %1906 = vmatpush2.bf16.msra.mxu0 0
      %1907 = vmatprep.subr.bf16.mxu0 0
      %1908 = vmatpush2.bf16.msra.mxu0 0
      %1909 = vmatprep.subr.bf16.mxu0 0
      %1910 = vmatpush2.bf16.msra.mxu0 0
      %1911 = vmatprep.subr.bf16.mxu0 0
      %1912 = vmatpush2.bf16.msra.mxu0 0
      %1913 = vmatprep.subr.bf16.mxu0 0
      %1914 = vmatpush2.bf16.msra.mxu0 0
      %1915 = vmatprep.subr.bf16.mxu0 0
      %1916 = vmatpush2.bf16.msra.mxu0 0
      %1917 = vmatprep.subr.bf16.mxu0 0
      %1918 = vmatpush2.bf16.msra.mxu0 0
      %1919 = vmatprep.mubr.bf16.mxu0 0
      %1920 = vmatmul.mubr.bf16.gmra.mxu0 %v1861
      %v1921 = vpop.f32.mrf.mxu0
      %v1922 = vadd.f32 0.0, %v1921
      %v1923 = vpop.f32.mrf.mxu0
      %v1924 = vpop.f32.mrf.mxu0
      %v1925 = vadd.f32 0.0, %v1924
      %v1926 = vpop.f32.mrf.mxu0
      %1927 = vmatprep.mubr.bf16.mxu0 0
      %1928 = vmatmul.mubr.bf16.gmra.mxu0 %v1864
      %v1929 = vpop.f32.mrf.mxu0
      %v1930 = vadd.f32 0.0, %v1929
      %v1931 = vpop.f32.mrf.mxu0
      %v1932 = vpop.f32.mrf.mxu0
      %v1933 = vadd.f32 0.0, %v1932
      %v1934 = vpop.f32.mrf.mxu0
      %1935 = vmatprep.mubr.bf16.mxu0 0
      %1936 = vmatmul.mubr.bf16.gmra.mxu0 %v1867
      %v1937 = vpop.f32.mrf.mxu0
      %v1938 = vadd.f32 0.0, %v1937
      %v1939 = vpop.f32.mrf.mxu0
      %v1940 = vpop.f32.mrf.mxu0
      %v1941 = vadd.f32 0.0, %v1940
      %v1942 = vpop.f32.mrf.mxu0
      %1943 = vmatprep.mubr.bf16.mxu0 0
      %1944 = vmatmul.mubr.bf16.gmra.mxu0 %v1870
      %v1945 = vpop.f32.mrf.mxu0
      %v1946 = vadd.f32 0.0, %v1945
      %v1947 = vpop.f32.mrf.mxu0
      %v1948 = vpop.f32.mrf.mxu0
      %v1949 = vadd.f32 0.0, %v1948
      %v1950 = vpop.f32.mrf.mxu0
      %1951 = vmatprep.mubr.bf16.mxu0 0
      %1952 = vmatmul.mubr.bf16.gmra.mxu0 %v1873
      %v1953 = vpop.f32.mrf.mxu0
      %v1954 = vadd.f32 0.0, %v1953
      %v1955 = vpop.f32.mrf.mxu0
      %v1956 = vpop.f32.mrf.mxu0
      %v1957 = vadd.f32 0.0, %v1956
      %v1958 = vpop.f32.mrf.mxu0
      %1959 = vmatprep.mubr.bf16.mxu0 0
      %1960 = vmatmul.mubr.bf16.gmra.mxu0 %v1876
      %v1961 = vpop.f32.mrf.mxu0
      %v1962 = vadd.f32 0.0, %v1961
      %v1963 = vpop.f32.mrf.mxu0
      %v1964 = vpop.f32.mrf.mxu0
      %v1965 = vadd.f32 0.0, %v1964
      %v1966 = vpop.f32.mrf.mxu0
      %1967 = vmatprep.mubr.bf16.mxu0 0
      %1968 = vmatmul.mubr.bf16.gmra.mxu0 %v1879
      %v1969 = vpop.f32.mrf.mxu0
      %v1970 = vadd.f32 0.0, %v1969
      %v1971 = vpop.f32.mrf.mxu0
      %v1972 = vpop.f32.mrf.mxu0
      %v1973 = vadd.f32 0.0, %v1972
      %v1974 = vpop.f32.mrf.mxu0
      %1975 = vmatprep.mubr.bf16.mxu0 0
      %1976 = vmatmul.mubr.bf16.gmra.mxu0 %v1882
      %v1977 = vpop.f32.mrf.mxu0
      %v1978 = vadd.f32 0.0, %v1977
      %v1979 = vpop.f32.mrf.mxu0
      %v1980 = vpop.f32.mrf.mxu0
      %v1981 = vadd.f32 0.0, %v1980
      %v1982 = vpop.f32.mrf.mxu0
      %1983 = vmatprep.mubr.bf16.mxu0 0
      %1984 = vmatmul.mubr.bf16.gmra.mxu0 %v1885
      %v1985 = vpop.f32.mrf.mxu0
      %v1986 = vadd.f32 0.0, %v1985
      %v1987 = vpop.f32.mrf.mxu0
      %v1988 = vpop.f32.mrf.mxu0
      %v1989 = vadd.f32 0.0, %v1988
      %v1990 = vpop.f32.mrf.mxu0
      %1991 = vdwg.mxu0
      %v1992 = vadd.f32 %v1723, %v1922
      %v1993 = vadd.f32 %v1724, %v1925
      %v1994 = vadd.f32 %v1725, %v1930
      %v1995 = vadd.f32 %v1726, %v1933
      %v1996 = vadd.f32 %v1727, %v1938
      %v1997 = vadd.f32 %v1728, %v1941
      %v1998 = vadd.f32 %v1729, %v1946
      %v1999 = vadd.f32 %v1730, %v1949
      %v2000 = vadd.f32 %v1731, %v1954
      %v2001 = vadd.f32 %v1732, %v1957
      %v2002 = vadd.f32 %v1733, %v1962
      %v2003 = vadd.f32 %v1734, %v1965
      %v2004 = vadd.f32 %v1735, %v1970
      %v2005 = vadd.f32 %v1736, %v1973
      %v2006 = vadd.f32 %v1737, %v1978
      %v2007 = vadd.f32 %v1738, %v1981
      %v2008 = vadd.f32 %v1739, %v1986
      %v2009 = vadd.f32 %v1740, %v1989
      %v2010 = vld [vmem:[%s281 + $0x58] sm:$0x7]
      %s2011 = scalar_lea.vmem %s1, 224
      %v2012 = vld [vmem:[%s2011] sm:$0xf]
      %v2013 = vld [vmem:[%s2011 + $0x4] sm:$0xf]
      %v2014 = vld [vmem:[%s2011 + $0x8] sm:$0xf]
      %v2015 = vld [vmem:[%s2011 + $0xc] sm:$0xf]
      %v2016 = vld [vmem:[%s2011 + $0x10] sm:$0xf]
      %v2017 = vld [vmem:[%s2011 + $0x14] sm:$0xf]
      %v2018 = vld [vmem:[%s2011 + $0x18] sm:$0xf]
      %v2019 = vld [vmem:[%s2011 + $0x1c] sm:$0xf]
      %v2021 = vunpack.c.l.b16 %v2010
      %v2022 = vpack.c.b16 %v2021, %v2021
      %vm2023 = vsmask.f32 5376
      %v2025 = vshrl.u32 %v1807, 16
      %v2027 = vrot.slane %v2025, 2
      %v2028 = vshll.u32 %v1807, 16
      %v2030 = vrot.slane %v2028, 3
      %v2031 = vor.u32 %v2027, %v2030
      %v2033 = vshrl.u32 %v1808, 16
      %v2035 = vrot.slane %v2033, 2
      %v2036 = vshll.u32 %v1808, 16
      %v2038 = vrot.slane %v2036, 3
      %v2039 = vor.u32 %v2035, %v2038
      %v2040 = vsel %vm2023, %v2031, %v2039
      %v2042 = vshrl.u32 %v1809, 16
      %v2044 = vrot.slane %v2042, 2
      %v2045 = vshll.u32 %v1809, 16
      %v2047 = vrot.slane %v2045, 3
      %v2048 = vor.u32 %v2044, %v2047
      %v2049 = vsel %vm2023, %v2039, %v2048
      %v2051 = vshrl.u32 %v1810, 16
      %v2053 = vrot.slane %v2051, 2
      %v2054 = vshll.u32 %v1810, 16
      %v2056 = vrot.slane %v2054, 3
      %v2057 = vor.u32 %v2053, %v2056
      %v2058 = vsel %vm2023, %v2048, %v2057
      %v2060 = vshrl.u32 %v1811, 16
      %v2062 = vrot.slane %v2060, 2
      %v2063 = vshll.u32 %v1811, 16
      %v2065 = vrot.slane %v2063, 3
      %v2066 = vor.u32 %v2062, %v2065
      %v2067 = vsel %vm2023, %v2057, %v2066
      %v2069 = vshrl.u32 %v1812, 16
      %v2071 = vrot.slane %v2069, 2
      %v2072 = vshll.u32 %v1812, 16
      %v2074 = vrot.slane %v2072, 3
      %v2075 = vor.u32 %v2071, %v2074
      %v2076 = vsel %vm2023, %v2066, %v2075
      %v2078 = vshrl.u32 %v1813, 16
      %v2080 = vrot.slane %v2078, 2
      %v2081 = vshll.u32 %v1813, 16
      %v2083 = vrot.slane %v2081, 3
      %v2084 = vor.u32 %v2080, %v2083
      %v2085 = vsel %vm2023, %v2075, %v2084
      %v2087 = vshrl.u32 %v1814, 16
      %v2089 = vrot.slane %v2087, 2
      %v2090 = vshll.u32 %v1814, 16
      %v2092 = vrot.slane %v2090, 3
      %v2093 = vor.u32 %v2089, %v2092
      %v2094 = vsel %vm2023, %v2084, %v2093
      %v2096 = vshrl.u32 %v1815, 16
      %v2098 = vrot.slane %v2096, 2
      %v2099 = vshll.u32 %v1815, 16
      %v2101 = vrot.slane %v2099, 3
      %v2102 = vor.u32 %v2098, %v2101
      %v2103 = vsel %vm2023, %v2093, %v2102
      %v2105 = vshrl.u32 %v2022, 16
      %v2107 = vrot.slane %v2105, 2
      %v2108 = vshll.u32 %v2022, 16
      %v2110 = vrot.slane %v2108, 3
      %v2111 = vor.u32 %v2107, %v2110
      %v2112 = vsel %vm2023, %v2102, %v2111
      %v2121 = vunpack.c.l.b16 %v2012
      %v2122 = vunpack.c.l.b16 %v2013
      %v2123 = vunpack.c.l.b16 %v2014
      %v2124 = vunpack.c.l.b16 %v2015
      %v2125 = vunpack.c.l.b16 %v2016
      %v2126 = vunpack.c.l.b16 %v2017
      %v2127 = vunpack.c.l.b16 %v2018
      %v2128 = vunpack.c.l.b16 %v2019
      %v2129 = vpack.c.b16 %v2122, %v2121
      %v2130 = vpack.c.b16 %v2124, %v2123
      %v2131 = vpack.c.b16 %v2126, %v2125
      %v2132 = vpack.c.b16 %v2128, %v2127
      %v2138 = vsel %vm501, %v2040, 0
      %v2141 = vsel %vm501, %v2049, 0
      %v2144 = vsel %vm501, %v2058, 0
      %v2147 = vsel %vm501, %v2067, 0
      %v2150 = vsel %vm501, %v2076, 0
      %v2153 = vsel %vm501, %v2085, 0
      %v2156 = vsel %vm501, %v2094, 0
      %v2159 = vsel %vm501, %v2103, 0
      %v2162 = vsel %vm501, %v2112, 0
      %2164 = vmatprep.subr.bf16.mxu0 0
      %2165 = vmatpush1.bf16.msra.mxu0 0
      %2166 = vmatprep.subr.bf16.mxu0 0
      %2167 = vmatpush1.bf16.msra.mxu0 0
      %2168 = vmatprep.subr.bf16.mxu0 0
      %2169 = vmatpush1.bf16.msra.mxu0 0
      %2170 = vmatprep.subr.bf16.mxu0 0
      %2171 = vmatpush1.bf16.msra.mxu0 0
      %2172 = vmatprep.subr.bf16.mxu0 0
      %2173 = vmatpush1.bf16.msra.mxu0 %v2132
      %2174 = vmatprep.subr.bf16.mxu0 0
      %2175 = vmatpush1.bf16.msra.mxu0 %v2131
      %2176 = vmatprep.subr.bf16.mxu0 0
      %2177 = vmatpush1.bf16.msra.mxu0 %v2130
      %2178 = vmatprep.subr.bf16.mxu0 0
      %2179 = vmatpush1.bf16.msra.mxu0 %v2129
      %2180 = vmatprep.subr.bf16.mxu0 0
      %2181 = vmatpush2.bf16.msra.mxu0 0
      %2182 = vmatprep.subr.bf16.mxu0 0
      %2183 = vmatpush2.bf16.msra.mxu0 0
      %2184 = vmatprep.subr.bf16.mxu0 0
      %2185 = vmatpush2.bf16.msra.mxu0 0
      %2186 = vmatprep.subr.bf16.mxu0 0
      %2187 = vmatpush2.bf16.msra.mxu0 0
      %2188 = vmatprep.subr.bf16.mxu0 0
      %2189 = vmatpush2.bf16.msra.mxu0 0
      %2190 = vmatprep.subr.bf16.mxu0 0
      %2191 = vmatpush2.bf16.msra.mxu0 0
      %2192 = vmatprep.subr.bf16.mxu0 0
      %2193 = vmatpush2.bf16.msra.mxu0 0
      %2194 = vmatprep.subr.bf16.mxu0 0
      %2195 = vmatpush2.bf16.msra.mxu0 0
      %2196 = vmatprep.mubr.bf16.mxu0 0
      %2197 = vmatmul.mubr.bf16.gmra.mxu0 %v2138
      %v2198 = vpop.f32.mrf.mxu0
      %v2199 = vadd.f32 0.0, %v2198
      %v2200 = vpop.f32.mrf.mxu0
      %v2201 = vpop.f32.mrf.mxu0
      %v2202 = vadd.f32 0.0, %v2201
      %v2203 = vpop.f32.mrf.mxu0
      %2204 = vmatprep.mubr.bf16.mxu0 0
      %2205 = vmatmul.mubr.bf16.gmra.mxu0 %v2141
      %v2206 = vpop.f32.mrf.mxu0
      %v2207 = vadd.f32 0.0, %v2206
      %v2208 = vpop.f32.mrf.mxu0
      %v2209 = vpop.f32.mrf.mxu0
      %v2210 = vadd.f32 0.0, %v2209
      %v2211 = vpop.f32.mrf.mxu0
      %2212 = vmatprep.mubr.bf16.mxu0 0
      %2213 = vmatmul.mubr.bf16.gmra.mxu0 %v2144
      %v2214 = vpop.f32.mrf.mxu0
      %v2215 = vadd.f32 0.0, %v2214
      %v2216 = vpop.f32.mrf.mxu0
      %v2217 = vpop.f32.mrf.mxu0
      %v2218 = vadd.f32 0.0, %v2217
      %v2219 = vpop.f32.mrf.mxu0
      %2220 = vmatprep.mubr.bf16.mxu0 0
      %2221 = vmatmul.mubr.bf16.gmra.mxu0 %v2147
      %v2222 = vpop.f32.mrf.mxu0
      %v2223 = vadd.f32 0.0, %v2222
      %v2224 = vpop.f32.mrf.mxu0
      %v2225 = vpop.f32.mrf.mxu0
      %v2226 = vadd.f32 0.0, %v2225
      %v2227 = vpop.f32.mrf.mxu0
      %2228 = vmatprep.mubr.bf16.mxu0 0
      %2229 = vmatmul.mubr.bf16.gmra.mxu0 %v2150
      %v2230 = vpop.f32.mrf.mxu0
      %v2231 = vadd.f32 0.0, %v2230
      %v2232 = vpop.f32.mrf.mxu0
      %v2233 = vpop.f32.mrf.mxu0
      %v2234 = vadd.f32 0.0, %v2233
      %v2235 = vpop.f32.mrf.mxu0
      %2236 = vmatprep.mubr.bf16.mxu0 0
      %2237 = vmatmul.mubr.bf16.gmra.mxu0 %v2153
      %v2238 = vpop.f32.mrf.mxu0
      %v2239 = vadd.f32 0.0, %v2238
      %v2240 = vpop.f32.mrf.mxu0
      %v2241 = vpop.f32.mrf.mxu0
      %v2242 = vadd.f32 0.0, %v2241
      %v2243 = vpop.f32.mrf.mxu0
      %2244 = vmatprep.mubr.bf16.mxu0 0
      %2245 = vmatmul.mubr.bf16.gmra.mxu0 %v2156
      %v2246 = vpop.f32.mrf.mxu0
      %v2247 = vadd.f32 0.0, %v2246
      %v2248 = vpop.f32.mrf.mxu0
      %v2249 = vpop.f32.mrf.mxu0
      %v2250 = vadd.f32 0.0, %v2249
      %v2251 = vpop.f32.mrf.mxu0
      %2252 = vmatprep.mubr.bf16.mxu0 0
      %2253 = vmatmul.mubr.bf16.gmra.mxu0 %v2159
      %v2254 = vpop.f32.mrf.mxu0
      %v2255 = vadd.f32 0.0, %v2254
      %v2256 = vpop.f32.mrf.mxu0
      %v2257 = vpop.f32.mrf.mxu0
      %v2258 = vadd.f32 0.0, %v2257
      %v2259 = vpop.f32.mrf.mxu0
      %2260 = vmatprep.mubr.bf16.mxu0 0
      %2261 = vmatmul.mubr.bf16.gmra.mxu0 %v2162
      %v2262 = vpop.f32.mrf.mxu0
      %v2263 = vadd.f32 0.0, %v2262
      %v2264 = vpop.f32.mrf.mxu0
      %v2265 = vpop.f32.mrf.mxu0
      %v2266 = vadd.f32 0.0, %v2265
      %v2267 = vpop.f32.mrf.mxu0
      %2268 = vdwg.mxu0
      %v2269 = vadd.f32 %v1992, %v2199
      %v2270 = vadd.f32 %v1993, %v2202
      %v2271 = vadd.f32 %v1994, %v2207
      %v2272 = vadd.f32 %v1995, %v2210
      %v2273 = vadd.f32 %v1996, %v2215
      %v2274 = vadd.f32 %v1997, %v2218
      %v2275 = vadd.f32 %v1998, %v2223
      %v2276 = vadd.f32 %v1999, %v2226
      %v2277 = vadd.f32 %v2000, %v2231
      %v2278 = vadd.f32 %v2001, %v2234
      %v2279 = vadd.f32 %v2002, %v2239
      %v2280 = vadd.f32 %v2003, %v2242
      %v2281 = vadd.f32 %v2004, %v2247
      %v2282 = vadd.f32 %v2005, %v2250
      %v2283 = vadd.f32 %v2006, %v2255
      %v2284 = vadd.f32 %v2007, %v2258
      %v2285 = vadd.f32 %v2008, %v2263
      %v2286 = vadd.f32 %v2009, %v2266
      %v2287 = vld [vmem:[%s281 + $0x10] sm:$0x8]
      %s2288 = scalar_lea.vmem %s1, 256
      %v2289 = vld [vmem:[%s2288] sm:$0xf]
      %v2290 = vld [vmem:[%s2288 + $0x4] sm:$0xf]
      %v2291 = vld [vmem:[%s2288 + $0x8] sm:$0xf]
      %v2292 = vld [vmem:[%s2288 + $0xc] sm:$0xf]
      %v2293 = vld [vmem:[%s2288 + $0x10] sm:$0xf]
      %v2294 = vld [vmem:[%s2288 + $0x14] sm:$0xf]
      %v2295 = vld [vmem:[%s2288 + $0x18] sm:$0xf]
      %v2296 = vld [vmem:[%s2288 + $0x1c] sm:$0xf]
      %v2298 = vunpack.c.l.b16 %v2287
      %v2299 = vpack.c.b16 %v1789, %v2298
      %vm2300 = vcmask 1044480
      %v2301 = vrot.slane %v2299, 3
      %v2302 = vrot.slane %v1808, 3
      %v2303 = vsel %vm2300, %v2301, %v2302
      %v2304 = vrot.slane %v1809, 3
      %v2305 = vsel %vm2300, %v2302, %v2304
      %v2306 = vrot.slane %v1810, 3
      %v2307 = vsel %vm2300, %v2304, %v2306
      %v2308 = vrot.slane %v1811, 3
      %v2309 = vsel %vm2300, %v2306, %v2308
      %v2310 = vrot.slane %v1812, 3
      %v2311 = vsel %vm2300, %v2308, %v2310
      %v2312 = vrot.slane %v1813, 3
      %v2313 = vsel %vm2300, %v2310, %v2312
      %v2314 = vrot.slane %v1814, 3
      %v2315 = vsel %vm2300, %v2312, %v2314
      %v2316 = vrot.slane %v1815, 3
      %v2317 = vsel %vm2300, %v2314, %v2316
      %v2318 = vrot.slane %v2022, 3
      %v2319 = vsel %vm2300, %v2316, %v2318
      %v2328 = vunpack.c.l.b16 %v2289
      %v2329 = vunpack.c.l.b16 %v2290
      %v2330 = vunpack.c.l.b16 %v2291
      %v2331 = vunpack.c.l.b16 %v2292
      %v2332 = vunpack.c.l.b16 %v2293
      %v2333 = vunpack.c.l.b16 %v2294
      %v2334 = vunpack.c.l.b16 %v2295
      %v2335 = vunpack.c.l.b16 %v2296
      %v2336 = vpack.c.b16 %v2329, %v2328
      %v2337 = vpack.c.b16 %v2331, %v2330
      %v2338 = vpack.c.b16 %v2333, %v2332
      %v2339 = vpack.c.b16 %v2335, %v2334
      %v2345 = vsel %vm501, %v2303, 0
      %v2348 = vsel %vm501, %v2305, 0
      %v2351 = vsel %vm501, %v2307, 0
      %v2354 = vsel %vm501, %v2309, 0
      %v2357 = vsel %vm501, %v2311, 0
      %v2360 = vsel %vm501, %v2313, 0
      %v2363 = vsel %vm501, %v2315, 0
      %v2366 = vsel %vm501, %v2317, 0
      %v2369 = vsel %vm501, %v2319, 0
      %2371 = vmatprep.subr.bf16.mxu0 0
      %2372 = vmatpush1.bf16.msra.mxu0 0
      %2373 = vmatprep.subr.bf16.mxu0 0
      %2374 = vmatpush1.bf16.msra.mxu0 0
      %2375 = vmatprep.subr.bf16.mxu0 0
      %2376 = vmatpush1.bf16.msra.mxu0 0
      %2377 = vmatprep.subr.bf16.mxu0 0
      %2378 = vmatpush1.bf16.msra.mxu0 0
      %2379 = vmatprep.subr.bf16.mxu0 0
      %2380 = vmatpush1.bf16.msra.mxu0 %v2339
      %2381 = vmatprep.subr.bf16.mxu0 0
      %2382 = vmatpush1.bf16.msra.mxu0 %v2338
      %2383 = vmatprep.subr.bf16.mxu0 0
      %2384 = vmatpush1.bf16.msra.mxu0 %v2337
      %2385 = vmatprep.subr.bf16.mxu0 0
      %2386 = vmatpush1.bf16.msra.mxu0 %v2336
      %2387 = vmatprep.subr.bf16.mxu0 0
      %2388 = vmatpush2.bf16.msra.mxu0 0
      %2389 = vmatprep.subr.bf16.mxu0 0
      %2390 = vmatpush2.bf16.msra.mxu0 0
      %2391 = vmatprep.subr.bf16.mxu0 0
      %2392 = vmatpush2.bf16.msra.mxu0 0
      %2393 = vmatprep.subr.bf16.mxu0 0
      %2394 = vmatpush2.bf16.msra.mxu0 0
      %2395 = vmatprep.subr.bf16.mxu0 0
      %2396 = vmatpush2.bf16.msra.mxu0 0
      %2397 = vmatprep.subr.bf16.mxu0 0
      %2398 = vmatpush2.bf16.msra.mxu0 0
      %2399 = vmatprep.subr.bf16.mxu0 0
      %2400 = vmatpush2.bf16.msra.mxu0 0
      %2401 = vmatprep.subr.bf16.mxu0 0
      %2402 = vmatpush2.bf16.msra.mxu0 0
      %2403 = vmatprep.mubr.bf16.mxu0 0
      %2404 = vmatmul.mubr.bf16.gmra.mxu0 %v2345
      %v2405 = vpop.f32.mrf.mxu0
      %v2406 = vadd.f32 0.0, %v2405
      %v2407 = vpop.f32.mrf.mxu0
      %v2408 = vpop.f32.mrf.mxu0
      %v2409 = vadd.f32 0.0, %v2408
      %v2410 = vpop.f32.mrf.mxu0
      %2411 = vmatprep.mubr.bf16.mxu0 0
      %2412 = vmatmul.mubr.bf16.gmra.mxu0 %v2348
      %v2413 = vpop.f32.mrf.mxu0
      %v2414 = vadd.f32 0.0, %v2413
      %v2415 = vpop.f32.mrf.mxu0
      %v2416 = vpop.f32.mrf.mxu0
      %v2417 = vadd.f32 0.0, %v2416
      %v2418 = vpop.f32.mrf.mxu0
      %2419 = vmatprep.mubr.bf16.mxu0 0
      %2420 = vmatmul.mubr.bf16.gmra.mxu0 %v2351
      %v2421 = vpop.f32.mrf.mxu0
      %v2422 = vadd.f32 0.0, %v2421
      %v2423 = vpop.f32.mrf.mxu0
      %v2424 = vpop.f32.mrf.mxu0
      %v2425 = vadd.f32 0.0, %v2424
      %v2426 = vpop.f32.mrf.mxu0
      %2427 = vmatprep.mubr.bf16.mxu0 0
      %2428 = vmatmul.mubr.bf16.gmra.mxu0 %v2354
      %v2429 = vpop.f32.mrf.mxu0
      %v2430 = vadd.f32 0.0, %v2429
      %v2431 = vpop.f32.mrf.mxu0
      %v2432 = vpop.f32.mrf.mxu0
      %v2433 = vadd.f32 0.0, %v2432
      %v2434 = vpop.f32.mrf.mxu0
      %2435 = vmatprep.mubr.bf16.mxu0 0
      %2436 = vmatmul.mubr.bf16.gmra.mxu0 %v2357
      %v2437 = vpop.f32.mrf.mxu0
      %v2438 = vadd.f32 0.0, %v2437
      %v2439 = vpop.f32.mrf.mxu0
      %v2440 = vpop.f32.mrf.mxu0
      %v2441 = vadd.f32 0.0, %v2440
      %v2442 = vpop.f32.mrf.mxu0
      %2443 = vmatprep.mubr.bf16.mxu0 0
      %2444 = vmatmul.mubr.bf16.gmra.mxu0 %v2360
      %v2445 = vpop.f32.mrf.mxu0
      %v2446 = vadd.f32 0.0, %v2445
      %v2447 = vpop.f32.mrf.mxu0
      %v2448 = vpop.f32.mrf.mxu0
      %v2449 = vadd.f32 0.0, %v2448
      %v2450 = vpop.f32.mrf.mxu0
      %2451 = vmatprep.mubr.bf16.mxu0 0
      %2452 = vmatmul.mubr.bf16.gmra.mxu0 %v2363
      %v2453 = vpop.f32.mrf.mxu0
      %v2454 = vadd.f32 0.0, %v2453
      %v2455 = vpop.f32.mrf.mxu0
      %v2456 = vpop.f32.mrf.mxu0
      %v2457 = vadd.f32 0.0, %v2456
      %v2458 = vpop.f32.mrf.mxu0
      %2459 = vmatprep.mubr.bf16.mxu0 0
      %2460 = vmatmul.mubr.bf16.gmra.mxu0 %v2366
      %v2461 = vpop.f32.mrf.mxu0
      %v2462 = vadd.f32 0.0, %v2461
      %v2463 = vpop.f32.mrf.mxu0
      %v2464 = vpop.f32.mrf.mxu0
      %v2465 = vadd.f32 0.0, %v2464
      %v2466 = vpop.f32.mrf.mxu0
      %2467 = vmatprep.mubr.bf16.mxu0 0
      %2468 = vmatmul.mubr.bf16.gmra.mxu0 %v2369
      %v2469 = vpop.f32.mrf.mxu0
      %v2470 = vadd.f32 0.0, %v2469
      %v2471 = vpop.f32.mrf.mxu0
      %v2472 = vpop.f32.mrf.mxu0
      %v2473 = vadd.f32 0.0, %v2472
      %v2474 = vpop.f32.mrf.mxu0
      %2475 = vdwg.mxu0
      %v2476 = vadd.f32 %v2269, %v2406
      %v2477 = vadd.f32 %v2270, %v2409
      %v2478 = vadd.f32 %v2271, %v2414
      %v2479 = vadd.f32 %v2272, %v2417
      %v2480 = vadd.f32 %v2273, %v2422
      %v2481 = vadd.f32 %v2274, %v2425
      %v2482 = vadd.f32 %v2275, %v2430
      %v2483 = vadd.f32 %v2276, %v2433
      %v2484 = vadd.f32 %v2277, %v2438
      %v2485 = vadd.f32 %v2278, %v2441
      %v2486 = vadd.f32 %v2279, %v2446
      %v2487 = vadd.f32 %v2280, %v2449
      %v2488 = vadd.f32 %v2281, %v2454
      %v2489 = vadd.f32 %v2282, %v2457
      %v2490 = vadd.f32 %v2283, %v2462
      %v2491 = vadd.f32 %v2284, %v2465
      %v2492 = vadd.f32 %v2285, %v2470
      %v2493 = vadd.f32 %v2286, %v2473
      %v2494 = vld [vmem:[%s3] sm:$0x1]
      %v2495 = vld [vmem:[%s3 + $0x1] sm:$0x1]
      %v2496 = vlaneseq
      %v2497 = vshrl.u32 %v2496, 7
      %v2498 = vsub.s32 0, %v2497
      %v2499 = vrot.slane %v2494, %v2498
      %v2500 = vmul.f32 %v2476, %v2499
      %v2501 = vmul.f32 %v2477, %v2499
      %v2502 = vmul.f32 %v2478, %v2499
      %v2503 = vmul.f32 %v2479, %v2499
      %v2504 = vmul.f32 %v2480, %v2499
      %v2505 = vmul.f32 %v2481, %v2499
      %v2506 = vmul.f32 %v2482, %v2499
      %v2507 = vmul.f32 %v2483, %v2499
      %v2508 = vmul.f32 %v2484, %v2499
      %v2509 = vmul.f32 %v2485, %v2499
      %v2510 = vmul.f32 %v2486, %v2499
      %v2511 = vmul.f32 %v2487, %v2499
      %v2512 = vmul.f32 %v2488, %v2499
      %v2513 = vmul.f32 %v2489, %v2499
      %v2514 = vmul.f32 %v2490, %v2499
      %v2515 = vmul.f32 %v2491, %v2499
      %v2516 = vmul.f32 %v2492, %v2499
      %v2517 = vmul.f32 %v2493, %v2499
      %v2518 = vlaneseq
      %v2519 = vshrl.u32 %v2518, 7
      %v2520 = vsub.s32 0, %v2519
      %v2521 = vrot.slane %v2495, %v2520
      %v2522 = vadd.f32 %v2500, %v2521
      %v2523 = vadd.f32 %v2501, %v2521
      %v2524 = vadd.f32 %v2502, %v2521
      %v2525 = vadd.f32 %v2503, %v2521
      %v2526 = vadd.f32 %v2504, %v2521
      %v2527 = vadd.f32 %v2505, %v2521
      %v2528 = vadd.f32 %v2506, %v2521
      %v2529 = vadd.f32 %v2507, %v2521
      %v2530 = vadd.f32 %v2508, %v2521
      %v2531 = vadd.f32 %v2509, %v2521
      %v2532 = vadd.f32 %v2510, %v2521
      %v2533 = vadd.f32 %v2511, %v2521
      %v2534 = vadd.f32 %v2512, %v2521
      %v2535 = vadd.f32 %v2513, %v2521
      %v2536 = vadd.f32 %v2514, %v2521
      %v2537 = vadd.f32 %v2515, %v2521
      %v2538 = vadd.f32 %v2516, %v2521
      %v2539 = vadd.f32 %v2517, %v2521
      %vm2540 = vcmp.ge.f32.partialorder %v2522, 0.0
      %vm2541 = vcmp.ge.f32.partialorder %v2523, 0.0
      %vm2542 = vcmp.ge.f32.partialorder %v2524, 0.0
      %vm2543 = vcmp.ge.f32.partialorder %v2525, 0.0
      %vm2544 = vcmp.ge.f32.partialorder %v2526, 0.0
      %vm2545 = vcmp.ge.f32.partialorder %v2527, 0.0
      %vm2546 = vcmp.ge.f32.partialorder %v2528, 0.0
      %vm2547 = vcmp.ge.f32.partialorder %v2529, 0.0
      %vm2548 = vcmp.ge.f32.partialorder %v2530, 0.0
      %vm2549 = vcmp.ge.f32.partialorder %v2531, 0.0
      %vm2550 = vcmp.ge.f32.partialorder %v2532, 0.0
      %vm2551 = vcmp.ge.f32.partialorder %v2533, 0.0
      %vm2552 = vcmp.ge.f32.partialorder %v2534, 0.0
      %vm2553 = vcmp.ge.f32.partialorder %v2535, 0.0
      %vm2554 = vcmp.ge.f32.partialorder %v2536, 0.0
      %vm2555 = vcmp.ge.f32.partialorder %v2537, 0.0
      %vm2556 = vcmp.ge.f32.partialorder %v2538, 0.0
      %vm2557 = vcmp.ge.f32.partialorder %v2539, 0.0
      %v2558 = vmul.f32 %v2522, 0.005
      %v2559 = vmul.f32 %v2523, 0.005
      %v2560 = vmul.f32 %v2524, 0.005
      %v2561 = vmul.f32 %v2525, 0.005
      %v2562 = vmul.f32 %v2526, 0.005
      %v2563 = vmul.f32 %v2527, 0.005
      %v2564 = vmul.f32 %v2528, 0.005
      %v2565 = vmul.f32 %v2529, 0.005
      %v2566 = vmul.f32 %v2530, 0.005
      %v2567 = vmul.f32 %v2531, 0.005
      %v2568 = vmul.f32 %v2532, 0.005
      %v2569 = vmul.f32 %v2533, 0.005
      %v2570 = vmul.f32 %v2534, 0.005
      %v2571 = vmul.f32 %v2535, 0.005
      %v2572 = vmul.f32 %v2536, 0.005
      %v2573 = vmul.f32 %v2537, 0.005
      %v2574 = vmul.f32 %v2538, 0.005
      %v2575 = vmul.f32 %v2539, 0.005
      %v2576 = vsel %vm2540, %v2522, %v2558
      %v2577 = vsel %vm2541, %v2523, %v2559
      %v2578 = vsel %vm2542, %v2524, %v2560
      %v2579 = vsel %vm2543, %v2525, %v2561
      %v2580 = vsel %vm2544, %v2526, %v2562
      %v2581 = vsel %vm2545, %v2527, %v2563
      %v2582 = vsel %vm2546, %v2528, %v2564
      %v2583 = vsel %vm2547, %v2529, %v2565
      %v2584 = vsel %vm2548, %v2530, %v2566
      %v2585 = vsel %vm2549, %v2531, %v2567
      %v2586 = vsel %vm2550, %v2532, %v2568
      %v2587 = vsel %vm2551, %v2533, %v2569
      %v2588 = vsel %vm2552, %v2534, %v2570
      %v2589 = vsel %vm2553, %v2535, %v2571
      %v2590 = vsel %vm2554, %v2536, %v2572
      %v2591 = vsel %vm2555, %v2537, %v2573
      %v2592 = vsel %vm2556, %v2538, %v2574
      %v2593 = vsel %vm2557, %v2539, %v2575
      %2594 = vst [vmem:[#allocation2 + $0x13] sm:$0xff] %v2576
      %2595 = vst [vmem:[#allocation2 + $0x1b] sm:$0xff] %v2577
      %2596 = vst [vmem:[#allocation2 + $0x23] sm:$0xfc] %v2578
      %2597 = vst [vmem:[#allocation2 + $0x2b] sm:$0xff] %v2579
      %2598 = vst [vmem:[#allocation2 + $0x33] sm:$0x3] %v2580
      %2599 = vst [vmem:[#allocation2 + $0x33] sm:$0xf0] %v2580
      %2600 = vst [vmem:[#allocation2 + $0x3b] sm:$0xff] %v2581
      %2601 = vst [vmem:[#allocation2 + $0x43] sm:$0xf] %v2582
      %2602 = vst [vmem:[#allocation2 + $0x43] sm:$0xc0] %v2582
      %2603 = vst [vmem:[#allocation2 + $0x4b] sm:$0xff] %v2583
      %2604 = vst [vmem:[#allocation2 + $0x53] sm:$0x3f] %v2584
      %2605 = vst [vmem:[#allocation2 + $0x5b] sm:$0xff] %v2585
      %2606 = vst [vmem:[#allocation2 + $0x63] sm:$0xff] %v2586
      %2607 = vst [vmem:[#allocation2 + $0x6b] sm:$0xfc] %v2587
      %2608 = vst [vmem:[#allocation2 + $0x73] sm:$0xff] %v2588
      %2609 = vst [vmem:[#allocation2 + $0x7b] sm:$0x3] %v2589
      %2610 = vst [vmem:[#allocation2 + $0x7b] sm:$0xf0] %v2589
      %2611 = vst [vmem:[#allocation2 + $0x83] sm:$0xff] %v2590
      %2612 = vst [vmem:[#allocation2 + $0x8b] sm:$0xf] %v2591
      %2613 = vst [vmem:[#allocation2 + $0x8b] sm:$0xc0] %v2591
      %2614 = vst [vmem:[#allocation2 + $0x93] sm:$0xff] %v2592
      %2615 = vst [vmem:[#allocation2 + $0x9b] sm:$0x3f] %v2593
      %v2616 = vld [vmem:[#allocation2] sm:$0xff]
      %v2617 = vld [vmem:[#allocation2 + $0x8] sm:$0xff]
      %v2618 = vld [vmem:[#allocation2 + $0x10] sm:$0xff]
      %v2619 = vld [vmem:[#allocation2 + $0x18] sm:$0xff]
      %v2620 = vld [vmem:[#allocation2 + $0x20] sm:$0xff]
      %v2621 = vld [vmem:[#allocation2 + $0x28] sm:$0xff]
      %v2622 = vld [vmem:[#allocation2 + $0x30] sm:$0xff]
      %v2623 = vld [vmem:[#allocation2 + $0x38] sm:$0xff]
      %v2624 = vld [vmem:[#allocation2 + $0x40] sm:$0xff]
      %v2625 = vld [vmem:[#allocation2 + $0x48] sm:$0xff]
      %v2626 = vld [vmem:[#allocation2 + $0x50] sm:$0xff]
      %v2627 = vld [vmem:[#allocation2 + $0x58] sm:$0xff]
      %v2628 = vld [vmem:[#allocation2 + $0x60] sm:$0xff]
      %v2629 = vld [vmem:[#allocation2 + $0x68] sm:$0xff]
      %v2630 = vld [vmem:[#allocation2 + $0x70] sm:$0xff]
      %v2631 = vld [vmem:[#allocation2 + $0x78] sm:$0xff]
      %v2632 = vld [vmem:[#allocation2 + $0x80] sm:$0xff]
      %v2633 = vld [vmem:[#allocation2 + $0x88] sm:$0xff]
      %v2634 = vpack.c.bf16 %v2617, %v2616
      %v2635 = vpack.c.bf16 %v2619, %v2618
      %v2636 = vpack.c.bf16 %v2621, %v2620
      %v2637 = vpack.c.bf16 %v2623, %v2622
      %v2638 = vpack.c.bf16 %v2625, %v2624
      %v2639 = vpack.c.bf16 %v2627, %v2626
      %v2640 = vpack.c.bf16 %v2629, %v2628
      %v2641 = vpack.c.bf16 %v2631, %v2630
      %v2642 = vpack.c.bf16 %v2633, %v2632
      %v2643 = vld [vmem:[%s2] sm:$0xf]
      %v2644 = vld [vmem:[%s2 + $0x4] sm:$0xf]
      %v2645 = vld [vmem:[%s2 + $0x8] sm:$0xf]
      %v2646 = vld [vmem:[%s2 + $0xc] sm:$0xf]
      %v2647 = vld [vmem:[%s2 + $0x10] sm:$0xf]
      %v2648 = vld [vmem:[%s2 + $0x14] sm:$0xf]
      %v2649 = vld [vmem:[%s2 + $0x18] sm:$0xf]
      %v2650 = vld [vmem:[%s2 + $0x1c] sm:$0xf]
      %v2651 = vld [vmem:[%s2 + $0x20] sm:$0xf]
      %v2652 = vld [vmem:[%s2 + $0x24] sm:$0xf]
      %v2653 = vld [vmem:[%s2 + $0x28] sm:$0xf]
      %v2654 = vld [vmem:[%s2 + $0x2c] sm:$0xf]
      %v2655 = vld [vmem:[%s2 + $0x30] sm:$0xf]
      %v2656 = vld [vmem:[%s2 + $0x34] sm:$0xf]
      %v2657 = vld [vmem:[%s2 + $0x38] sm:$0xf]
      %v2658 = vld [vmem:[%s2 + $0x3c] sm:$0xf]
      %v2659 = vld [vmem:[#allocation2 + $0x1] sm:$0xff]
      %v2660 = vld [vmem:[#allocation2 + $0x9] sm:$0xff]
      %v2661 = vld [vmem:[#allocation2 + $0x11] sm:$0xff]
      %v2662 = vld [vmem:[#allocation2 + $0x19] sm:$0xff]
      %v2663 = vld [vmem:[#allocation2 + $0x21] sm:$0xff]
      %v2664 = vld [vmem:[#allocation2 + $0x29] sm:$0xff]
      %v2665 = vld [vmem:[#allocation2 + $0x31] sm:$0xff]
      %v2666 = vld [vmem:[#allocation2 + $0x39] sm:$0xff]
      %v2667 = vld [vmem:[#allocation2 + $0x41] sm:$0xff]
      %v2668 = vld [vmem:[#allocation2 + $0x49] sm:$0xff]
      %v2669 = vld [vmem:[#allocation2 + $0x51] sm:$0xff]
      %v2670 = vld [vmem:[#allocation2 + $0x59] sm:$0xff]
      %v2671 = vld [vmem:[#allocation2 + $0x61] sm:$0xff]
      %v2672 = vld [vmem:[#allocation2 + $0x69] sm:$0xff]
      %v2673 = vld [vmem:[#allocation2 + $0x71] sm:$0xff]
      %v2674 = vld [vmem:[#allocation2 + $0x79] sm:$0xff]
      %v2675 = vld [vmem:[#allocation2 + $0x81] sm:$0xff]
      %v2676 = vld [vmem:[#allocation2 + $0x89] sm:$0xff]
      %v2677 = vpack.c.bf16 %v2660, %v2659
      %v2678 = vpack.c.bf16 %v2662, %v2661
      %v2679 = vpack.c.bf16 %v2664, %v2663
      %v2680 = vpack.c.bf16 %v2666, %v2665
      %v2681 = vpack.c.bf16 %v2668, %v2667
      %v2682 = vpack.c.bf16 %v2670, %v2669
      %v2683 = vpack.c.bf16 %v2672, %v2671
      %v2684 = vpack.c.bf16 %v2674, %v2673
      %v2685 = vpack.c.bf16 %v2676, %v2675
      %s2686 = scalar_lea.vmem %s2, 64
      %v2687 = vld [vmem:[%s2686] sm:$0xf]
      %v2688 = vld [vmem:[%s2686 + $0x4] sm:$0xf]
      %v2689 = vld [vmem:[%s2686 + $0x8] sm:$0xf]
      %v2690 = vld [vmem:[%s2686 + $0xc] sm:$0xf]
      %v2691 = vld [vmem:[%s2686 + $0x10] sm:$0xf]
      %v2692 = vld [vmem:[%s2686 + $0x14] sm:$0xf]
      %v2693 = vld [vmem:[%s2686 + $0x18] sm:$0xf]
      %v2694 = vld [vmem:[%s2686 + $0x1c] sm:$0xf]
      %v2695 = vld [vmem:[%s2686 + $0x20] sm:$0xf]
      %v2696 = vld [vmem:[%s2686 + $0x24] sm:$0xf]
      %v2697 = vld [vmem:[%s2686 + $0x28] sm:$0xf]
      %v2698 = vld [vmem:[%s2686 + $0x2c] sm:$0xf]
      %v2699 = vld [vmem:[%s2686 + $0x30] sm:$0xf]
      %v2700 = vld [vmem:[%s2686 + $0x34] sm:$0xf]
      %v2701 = vld [vmem:[%s2686 + $0x38] sm:$0xf]
      %v2702 = vld [vmem:[%s2686 + $0x3c] sm:$0xf]
      %v2719 = vunpack.c.l.b16 %v2687
      %v2720 = vunpack.c.l.b16 %v2688
      %v2721 = vunpack.c.l.b16 %v2689
      %v2722 = vunpack.c.l.b16 %v2690
      %v2723 = vunpack.c.l.b16 %v2691
      %v2724 = vunpack.c.l.b16 %v2692
      %v2725 = vunpack.c.l.b16 %v2693
      %v2726 = vunpack.c.l.b16 %v2694
      %v2727 = vunpack.c.l.b16 %v2695
      %v2728 = vunpack.c.l.b16 %v2696
      %v2729 = vunpack.c.l.b16 %v2697
      %v2730 = vunpack.c.l.b16 %v2698
      %v2731 = vunpack.c.l.b16 %v2699
      %v2732 = vunpack.c.l.b16 %v2700
      %v2733 = vunpack.c.l.b16 %v2701
      %v2734 = vunpack.c.l.b16 %v2702
      %v2735 = vpack.c.b16 %v2720, %v2719
      %v2736 = vpack.c.b16 %v2722, %v2721
      %v2737 = vpack.c.b16 %v2724, %v2723
      %v2738 = vpack.c.b16 %v2726, %v2725
      %v2739 = vpack.c.b16 %v2728, %v2727
      %v2740 = vpack.c.b16 %v2730, %v2729
      %v2741 = vpack.c.b16 %v2732, %v2731
      %v2742 = vpack.c.b16 %v2734, %v2733
      %2751 = vmatprep.subr.bf16.mxu0 0
      %2752 = vmatpush1.bf16.msra.mxu0 %v2742
      %2753 = vmatprep.subr.bf16.mxu0 0
      %2754 = vmatpush1.bf16.msra.mxu0 %v2741
      %2755 = vmatprep.subr.bf16.mxu0 0
      %2756 = vmatpush1.bf16.msra.mxu0 %v2740
      %2757 = vmatprep.subr.bf16.mxu0 0
      %2758 = vmatpush1.bf16.msra.mxu0 %v2739
      %2759 = vmatprep.subr.bf16.mxu0 0
      %2760 = vmatpush1.bf16.msra.mxu0 %v2738
      %2761 = vmatprep.subr.bf16.mxu0 0
      %2762 = vmatpush1.bf16.msra.mxu0 %v2737
      %2763 = vmatprep.subr.bf16.mxu0 0
      %2764 = vmatpush1.bf16.msra.mxu0 %v2736
      %2765 = vmatprep.subr.bf16.mxu0 0
      %2766 = vmatpush1.bf16.msra.mxu0 %v2735
      %2767 = vmatprep.subr.bf16.mxu0 0
      %2768 = vmatpush2.bf16.msra.mxu0 0
      %2769 = vmatprep.subr.bf16.mxu0 0
      %2770 = vmatpush2.bf16.msra.mxu0 0
      %2771 = vmatprep.subr.bf16.mxu0 0
      %2772 = vmatpush2.bf16.msra.mxu0 0
      %2773 = vmatprep.subr.bf16.mxu0 0
      %2774 = vmatpush2.bf16.msra.mxu0 0
      %2775 = vmatprep.subr.bf16.mxu0 0
      %2776 = vmatpush2.bf16.msra.mxu0 0
      %2777 = vmatprep.subr.bf16.mxu0 0
      %2778 = vmatpush2.bf16.msra.mxu0 0
      %2779 = vmatprep.subr.bf16.mxu0 0
      %2780 = vmatpush2.bf16.msra.mxu0 0
      %2781 = vmatprep.subr.bf16.mxu0 0
      %2782 = vmatpush2.bf16.msra.mxu0 0
      %2783 = vmatprep.mubr.bf16.mxu0 0
      %2784 = vmatmul.mubr.bf16.gmra.mxu0 %v2677
      %v2785 = vpop.f32.mrf.mxu0
      %v2786 = vadd.f32 0.0, %v2785
      %v2787 = vpop.f32.mrf.mxu0
      %v2788 = vpop.f32.mrf.mxu0
      %v2789 = vadd.f32 0.0, %v2788
      %v2790 = vpop.f32.mrf.mxu0
      %2791 = vmatprep.mubr.bf16.mxu0 0
      %2792 = vmatmul.mubr.bf16.gmra.mxu0 %v2678
      %v2793 = vpop.f32.mrf.mxu0
      %v2794 = vadd.f32 0.0, %v2793
      %v2795 = vpop.f32.mrf.mxu0
      %v2796 = vpop.f32.mrf.mxu0
      %v2797 = vadd.f32 0.0, %v2796
      %v2798 = vpop.f32.mrf.mxu0
      %2799 = vmatprep.mubr.bf16.mxu0 0
      %2800 = vmatmul.mubr.bf16.gmra.mxu0 %v2679
      %v2801 = vpop.f32.mrf.mxu0
      %v2802 = vadd.f32 0.0, %v2801
      %v2803 = vpop.f32.mrf.mxu0
      %v2804 = vpop.f32.mrf.mxu0
      %v2805 = vadd.f32 0.0, %v2804
      %v2806 = vpop.f32.mrf.mxu0
      %2807 = vmatprep.mubr.bf16.mxu0 0
      %2808 = vmatmul.mubr.bf16.gmra.mxu0 %v2680
      %v2809 = vpop.f32.mrf.mxu0
      %v2810 = vadd.f32 0.0, %v2809
      %v2811 = vpop.f32.mrf.mxu0
      %v2812 = vpop.f32.mrf.mxu0
      %v2813 = vadd.f32 0.0, %v2812
      %v2814 = vpop.f32.mrf.mxu0
      %2815 = vmatprep.mubr.bf16.mxu0 0
      %2816 = vmatmul.mubr.bf16.gmra.mxu0 %v2681
      %v2817 = vpop.f32.mrf.mxu0
      %v2818 = vadd.f32 0.0, %v2817
      %v2819 = vpop.f32.mrf.mxu0
      %v2820 = vpop.f32.mrf.mxu0
      %v2821 = vadd.f32 0.0, %v2820
      %v2822 = vpop.f32.mrf.mxu0
      %2823 = vmatprep.mubr.bf16.mxu0 0
      %2824 = vmatmul.mubr.bf16.gmra.mxu0 %v2682
      %v2825 = vpop.f32.mrf.mxu0
      %v2826 = vadd.f32 0.0, %v2825
      %v2827 = vpop.f32.mrf.mxu0
      %v2828 = vpop.f32.mrf.mxu0
      %v2829 = vadd.f32 0.0, %v2828
      %v2830 = vpop.f32.mrf.mxu0
      %2831 = vmatprep.mubr.bf16.mxu0 0
      %2832 = vmatmul.mubr.bf16.gmra.mxu0 %v2683
      %v2833 = vpop.f32.mrf.mxu0
      %v2834 = vadd.f32 0.0, %v2833
      %v2835 = vpop.f32.mrf.mxu0
      %v2836 = vpop.f32.mrf.mxu0
      %v2837 = vadd.f32 0.0, %v2836
      %v2838 = vpop.f32.mrf.mxu0
      %2839 = vmatprep.mubr.bf16.mxu0 0
      %2840 = vmatmul.mubr.bf16.gmra.mxu0 %v2684
      %v2841 = vpop.f32.mrf.mxu0
      %v2842 = vadd.f32 0.0, %v2841
      %v2843 = vpop.f32.mrf.mxu0
      %v2844 = vpop.f32.mrf.mxu0
      %v2845 = vadd.f32 0.0, %v2844
      %v2846 = vpop.f32.mrf.mxu0
      %2847 = vmatprep.mubr.bf16.mxu0 0
      %2848 = vmatmul.mubr.bf16.gmra.mxu0 %v2685
      %v2849 = vpop.f32.mrf.mxu0
      %v2850 = vadd.f32 0.0, %v2849
      %v2851 = vpop.f32.mrf.mxu0
      %v2852 = vpop.f32.mrf.mxu0
      %v2853 = vadd.f32 0.0, %v2852
      %v2854 = vpop.f32.mrf.mxu0
      %2855 = vdwg.mxu0
      %v2872 = vunpack.c.l.b16 %v2643
      %v2873 = vunpack.c.l.b16 %v2644
      %v2874 = vunpack.c.l.b16 %v2645
      %v2875 = vunpack.c.l.b16 %v2646
      %v2876 = vunpack.c.l.b16 %v2647
      %v2877 = vunpack.c.l.b16 %v2648
      %v2878 = vunpack.c.l.b16 %v2649
      %v2879 = vunpack.c.l.b16 %v2650
      %v2880 = vunpack.c.l.b16 %v2651
      %v2881 = vunpack.c.l.b16 %v2652
      %v2882 = vunpack.c.l.b16 %v2653
      %v2883 = vunpack.c.l.b16 %v2654
      %v2884 = vunpack.c.l.b16 %v2655
      %v2885 = vunpack.c.l.b16 %v2656
      %v2886 = vunpack.c.l.b16 %v2657
      %v2887 = vunpack.c.l.b16 %v2658
      %v2888 = vpack.c.b16 %v2873, %v2872
      %v2889 = vpack.c.b16 %v2875, %v2874
      %v2890 = vpack.c.b16 %v2877, %v2876
      %v2891 = vpack.c.b16 %v2879, %v2878
      %v2892 = vpack.c.b16 %v2881, %v2880
      %v2893 = vpack.c.b16 %v2883, %v2882
      %v2894 = vpack.c.b16 %v2885, %v2884
      %v2895 = vpack.c.b16 %v2887, %v2886
      %2904 = vmatprep.subr.bf16.mxu0 0
      %2905 = vmatpush1.bf16.msra.mxu0 %v2895
      %2906 = vmatprep.subr.bf16.mxu0 0
      %2907 = vmatpush1.bf16.msra.mxu0 %v2894
      %2908 = vmatprep.subr.bf16.mxu0 0
      %2909 = vmatpush1.bf16.msra.mxu0 %v2893
      %2910 = vmatprep.subr.bf16.mxu0 0
      %2911 = vmatpush1.bf16.msra.mxu0 %v2892
      %2912 = vmatprep.subr.bf16.mxu0 0
      %2913 = vmatpush1.bf16.msra.mxu0 %v2891
      %2914 = vmatprep.subr.bf16.mxu0 0
      %2915 = vmatpush1.bf16.msra.mxu0 %v2890
      %2916 = vmatprep.subr.bf16.mxu0 0
      %2917 = vmatpush1.bf16.msra.mxu0 %v2889
      %2918 = vmatprep.subr.bf16.mxu0 0
      %2919 = vmatpush1.bf16.msra.mxu0 %v2888
      %2920 = vmatprep.subr.bf16.mxu0 0
      %2921 = vmatpush2.bf16.msra.mxu0 0
      %2922 = vmatprep.subr.bf16.mxu0 0
      %2923 = vmatpush2.bf16.msra.mxu0 0
      %2924 = vmatprep.subr.bf16.mxu0 0
      %2925 = vmatpush2.bf16.msra.mxu0 0
      %2926 = vmatprep.subr.bf16.mxu0 0
      %2927 = vmatpush2.bf16.msra.mxu0 0
      %2928 = vmatprep.subr.bf16.mxu0 0
      %2929 = vmatpush2.bf16.msra.mxu0 0
      %2930 = vmatprep.subr.bf16.mxu0 0
      %2931 = vmatpush2.bf16.msra.mxu0 0
      %2932 = vmatprep.subr.bf16.mxu0 0
      %2933 = vmatpush2.bf16.msra.mxu0 0
      %2934 = vmatprep.subr.bf16.mxu0 0
      %2935 = vmatpush2.bf16.msra.mxu0 0
      %2936 = vmatprep.mubr.bf16.mxu0 0
      %2937 = vmatmul.mubr.bf16.gmra.mxu0 %v2634
      %v2938 = vpop.f32.mrf.mxu0
      %v2939 = vadd.f32 %v2786, %v2938
      %v2940 = vpop.f32.mrf.mxu0
      %v2941 = vpop.f32.mrf.mxu0
      %v2942 = vadd.f32 %v2789, %v2941
      %v2943 = vpop.f32.mrf.mxu0
      %2944 = vmatprep.mubr.bf16.mxu0 0
      %2945 = vmatmul.mubr.bf16.gmra.mxu0 %v2635
      %v2946 = vpop.f32.mrf.mxu0
      %v2947 = vadd.f32 %v2794, %v2946
      %v2948 = vpop.f32.mrf.mxu0
      %v2949 = vpop.f32.mrf.mxu0
      %v2950 = vadd.f32 %v2797, %v2949
      %v2951 = vpop.f32.mrf.mxu0
      %2952 = vmatprep.mubr.bf16.mxu0 0
      %2953 = vmatmul.mubr.bf16.gmra.mxu0 %v2636
      %v2954 = vpop.f32.mrf.mxu0
      %v2955 = vadd.f32 %v2802, %v2954
      %v2956 = vpop.f32.mrf.mxu0
      %v2957 = vpop.f32.mrf.mxu0
      %v2958 = vadd.f32 %v2805, %v2957
      %v2959 = vpop.f32.mrf.mxu0
      %2960 = vmatprep.mubr.bf16.mxu0 0
      %2961 = vmatmul.mubr.bf16.gmra.mxu0 %v2637
      %v2962 = vpop.f32.mrf.mxu0
      %v2963 = vadd.f32 %v2810, %v2962
      %v2964 = vpop.f32.mrf.mxu0
      %v2965 = vpop.f32.mrf.mxu0
      %v2966 = vadd.f32 %v2813, %v2965
      %v2967 = vpop.f32.mrf.mxu0
      %2968 = vmatprep.mubr.bf16.mxu0 0
      %2969 = vmatmul.mubr.bf16.gmra.mxu0 %v2638
      %v2970 = vpop.f32.mrf.mxu0
      %v2971 = vadd.f32 %v2818, %v2970
      %v2972 = vpop.f32.mrf.mxu0
      %v2973 = vpop.f32.mrf.mxu0
      %v2974 = vadd.f32 %v2821, %v2973
      %v2975 = vpop.f32.mrf.mxu0
      %2976 = vmatprep.mubr.bf16.mxu0 0
      %2977 = vmatmul.mubr.bf16.gmra.mxu0 %v2639
      %v2978 = vpop.f32.mrf.mxu0
      %v2979 = vadd.f32 %v2826, %v2978
      %v2980 = vpop.f32.mrf.mxu0
      %v2981 = vpop.f32.mrf.mxu0
      %v2982 = vadd.f32 %v2829, %v2981
      %v2983 = vpop.f32.mrf.mxu0
      %2984 = vmatprep.mubr.bf16.mxu0 0
      %2985 = vmatmul.mubr.bf16.gmra.mxu0 %v2640
      %v2986 = vpop.f32.mrf.mxu0
      %v2987 = vadd.f32 %v2834, %v2986
      %v2988 = vpop.f32.mrf.mxu0
      %v2989 = vpop.f32.mrf.mxu0
      %v2990 = vadd.f32 %v2837, %v2989
      %v2991 = vpop.f32.mrf.mxu0
      %2992 = vmatprep.mubr.bf16.mxu0 0
      %2993 = vmatmul.mubr.bf16.gmra.mxu0 %v2641
      %v2994 = vpop.f32.mrf.mxu0
      %v2995 = vadd.f32 %v2842, %v2994
      %v2996 = vpop.f32.mrf.mxu0
      %v2997 = vpop.f32.mrf.mxu0
      %v2998 = vadd.f32 %v2845, %v2997
      %v2999 = vpop.f32.mrf.mxu0
      %3000 = vmatprep.mubr.bf16.mxu0 0
      %3001 = vmatmul.mubr.bf16.gmra.mxu0 %v2642
      %v3002 = vpop.f32.mrf.mxu0
      %v3003 = vadd.f32 %v2850, %v3002
      %v3004 = vpop.f32.mrf.mxu0
      %v3005 = vpop.f32.mrf.mxu0
      %v3006 = vadd.f32 %v2853, %v3005
      %v3007 = vpop.f32.mrf.mxu0
      %3008 = vdwg.mxu0
      %v3009 = vld [vmem:[#allocation2 + $0x2] sm:$0xff]
      %v3010 = vld [vmem:[#allocation2 + $0xa] sm:$0xff]
      %v3011 = vld [vmem:[#allocation2 + $0x12] sm:$0xff]
      %v3012 = vld [vmem:[#allocation2 + $0x1a] sm:$0xff]
      %v3013 = vld [vmem:[#allocation2 + $0x22] sm:$0xff]
      %v3014 = vld [vmem:[#allocation2 + $0x2a] sm:$0xff]
      %v3015 = vld [vmem:[#allocation2 + $0x32] sm:$0xff]
      %v3016 = vld [vmem:[#allocation2 + $0x3a] sm:$0xff]
      %v3017 = vld [vmem:[#allocation2 + $0x42] sm:$0xff]
      %v3018 = vld [vmem:[#allocation2 + $0x4a] sm:$0xff]
      %v3019 = vld [vmem:[#allocation2 + $0x52] sm:$0xff]
      %v3020 = vld [vmem:[#allocation2 + $0x5a] sm:$0xff]
      %v3021 = vld [vmem:[#allocation2 + $0x62] sm:$0xff]
      %v3022 = vld [vmem:[#allocation2 + $0x6a] sm:$0xff]
      %v3023 = vld [vmem:[#allocation2 + $0x72] sm:$0xff]
      %v3024 = vld [vmem:[#allocation2 + $0x7a] sm:$0xff]
      %v3025 = vld [vmem:[#allocation2 + $0x82] sm:$0xff]
      %v3026 = vld [vmem:[#allocation2 + $0x8a] sm:$0xff]
      %v3027 = vpack.c.bf16 %v3010, %v3009
      %v3028 = vpack.c.bf16 %v3012, %v3011
      %v3029 = vpack.c.bf16 %v3014, %v3013
      %v3030 = vpack.c.bf16 %v3016, %v3015
      %v3031 = vpack.c.bf16 %v3018, %v3017
      %v3032 = vpack.c.bf16 %v3020, %v3019
      %v3033 = vpack.c.bf16 %v3022, %v3021
      %v3034 = vpack.c.bf16 %v3024, %v3023
      %v3035 = vpack.c.bf16 %v3026, %v3025
      %s3036 = scalar_lea.vmem %s2, 128
      %v3037 = vld [vmem:[%s3036] sm:$0xf]
      %v3038 = vld [vmem:[%s3036 + $0x4] sm:$0xf]
      %v3039 = vld [vmem:[%s3036 + $0x8] sm:$0xf]
      %v3040 = vld [vmem:[%s3036 + $0xc] sm:$0xf]
      %v3041 = vld [vmem:[%s3036 + $0x10] sm:$0xf]
      %v3042 = vld [vmem:[%s3036 + $0x14] sm:$0xf]
      %v3043 = vld [vmem:[%s3036 + $0x18] sm:$0xf]
      %v3044 = vld [vmem:[%s3036 + $0x1c] sm:$0xf]
      %v3045 = vld [vmem:[%s3036 + $0x20] sm:$0xf]
      %v3046 = vld [vmem:[%s3036 + $0x24] sm:$0xf]
      %v3047 = vld [vmem:[%s3036 + $0x28] sm:$0xf]
      %v3048 = vld [vmem:[%s3036 + $0x2c] sm:$0xf]
      %v3049 = vld [vmem:[%s3036 + $0x30] sm:$0xf]
      %v3050 = vld [vmem:[%s3036 + $0x34] sm:$0xf]
      %v3051 = vld [vmem:[%s3036 + $0x38] sm:$0xf]
      %v3052 = vld [vmem:[%s3036 + $0x3c] sm:$0xf]
      %v3069 = vunpack.c.l.b16 %v3037
      %v3070 = vunpack.c.l.b16 %v3038
      %v3071 = vunpack.c.l.b16 %v3039
      %v3072 = vunpack.c.l.b16 %v3040
      %v3073 = vunpack.c.l.b16 %v3041
      %v3074 = vunpack.c.l.b16 %v3042
      %v3075 = vunpack.c.l.b16 %v3043
      %v3076 = vunpack.c.l.b16 %v3044
      %v3077 = vunpack.c.l.b16 %v3045
      %v3078 = vunpack.c.l.b16 %v3046
      %v3079 = vunpack.c.l.b16 %v3047
      %v3080 = vunpack.c.l.b16 %v3048
      %v3081 = vunpack.c.l.b16 %v3049
      %v3082 = vunpack.c.l.b16 %v3050
      %v3083 = vunpack.c.l.b16 %v3051
      %v3084 = vunpack.c.l.b16 %v3052
      %v3085 = vpack.c.b16 %v3070, %v3069
      %v3086 = vpack.c.b16 %v3072, %v3071
      %v3087 = vpack.c.b16 %v3074, %v3073
      %v3088 = vpack.c.b16 %v3076, %v3075
      %v3089 = vpack.c.b16 %v3078, %v3077
      %v3090 = vpack.c.b16 %v3080, %v3079
      %v3091 = vpack.c.b16 %v3082, %v3081
      %v3092 = vpack.c.b16 %v3084, %v3083
      %3101 = vmatprep.subr.bf16.mxu0 0
      %3102 = vmatpush1.bf16.msra.mxu0 %v3092
      %3103 = vmatprep.subr.bf16.mxu0 0
      %3104 = vmatpush1.bf16.msra.mxu0 %v3091
      %3105 = vmatprep.subr.bf16.mxu0 0
      %3106 = vmatpush1.bf16.msra.mxu0 %v3090
      %3107 = vmatprep.subr.bf16.mxu0 0
      %3108 = vmatpush1.bf16.msra.mxu0 %v3089
      %3109 = vmatprep.subr.bf16.mxu0 0
      %3110 = vmatpush1.bf16.msra.mxu0 %v3088
      %3111 = vmatprep.subr.bf16.mxu0 0
      %3112 = vmatpush1.bf16.msra.mxu0 %v3087
      %3113 = vmatprep.subr.bf16.mxu0 0
      %3114 = vmatpush1.bf16.msra.mxu0 %v3086
      %3115 = vmatprep.subr.bf16.mxu0 0
      %3116 = vmatpush1.bf16.msra.mxu0 %v3085
      %3117 = vmatprep.subr.bf16.mxu0 0
      %3118 = vmatpush2.bf16.msra.mxu0 0
      %3119 = vmatprep.subr.bf16.mxu0 0
      %3120 = vmatpush2.bf16.msra.mxu0 0
      %3121 = vmatprep.subr.bf16.mxu0 0
      %3122 = vmatpush2.bf16.msra.mxu0 0
      %3123 = vmatprep.subr.bf16.mxu0 0
      %3124 = vmatpush2.bf16.msra.mxu0 0
      %3125 = vmatprep.subr.bf16.mxu0 0
      %3126 = vmatpush2.bf16.msra.mxu0 0
      %3127 = vmatprep.subr.bf16.mxu0 0
      %3128 = vmatpush2.bf16.msra.mxu0 0
      %3129 = vmatprep.subr.bf16.mxu0 0
      %3130 = vmatpush2.bf16.msra.mxu0 0
      %3131 = vmatprep.subr.bf16.mxu0 0
      %3132 = vmatpush2.bf16.msra.mxu0 0
      %3133 = vmatprep.mubr.bf16.mxu0 0
      %3134 = vmatmul.mubr.bf16.gmra.mxu0 %v3027
      %v3135 = vpop.f32.mrf.mxu0
      %v3136 = vadd.f32 0.0, %v3135
      %v3137 = vpop.f32.mrf.mxu0
      %v3138 = vpop.f32.mrf.mxu0
      %v3139 = vadd.f32 0.0, %v3138
      %v3140 = vpop.f32.mrf.mxu0
      %3141 = vmatprep.mubr.bf16.mxu0 0
      %3142 = vmatmul.mubr.bf16.gmra.mxu0 %v3028
      %v3143 = vpop.f32.mrf.mxu0
      %v3144 = vadd.f32 0.0, %v3143
      %v3145 = vpop.f32.mrf.mxu0
      %v3146 = vpop.f32.mrf.mxu0
      %v3147 = vadd.f32 0.0, %v3146
      %v3148 = vpop.f32.mrf.mxu0
      %3149 = vmatprep.mubr.bf16.mxu0 0
      %3150 = vmatmul.mubr.bf16.gmra.mxu0 %v3029
      %v3151 = vpop.f32.mrf.mxu0
      %v3152 = vadd.f32 0.0, %v3151
      %v3153 = vpop.f32.mrf.mxu0
      %v3154 = vpop.f32.mrf.mxu0
      %v3155 = vadd.f32 0.0, %v3154
      %v3156 = vpop.f32.mrf.mxu0
      %3157 = vmatprep.mubr.bf16.mxu0 0
      %3158 = vmatmul.mubr.bf16.gmra.mxu0 %v3030
      %v3159 = vpop.f32.mrf.mxu0
      %v3160 = vadd.f32 0.0, %v3159
      %v3161 = vpop.f32.mrf.mxu0
      %v3162 = vpop.f32.mrf.mxu0
      %v3163 = vadd.f32 0.0, %v3162
      %v3164 = vpop.f32.mrf.mxu0
      %3165 = vmatprep.mubr.bf16.mxu0 0
      %3166 = vmatmul.mubr.bf16.gmra.mxu0 %v3031
      %v3167 = vpop.f32.mrf.mxu0
      %v3168 = vadd.f32 0.0, %v3167
      %v3169 = vpop.f32.mrf.mxu0
      %v3170 = vpop.f32.mrf.mxu0
      %v3171 = vadd.f32 0.0, %v3170
      %v3172 = vpop.f32.mrf.mxu0
      %3173 = vmatprep.mubr.bf16.mxu0 0
      %3174 = vmatmul.mubr.bf16.gmra.mxu0 %v3032
      %v3175 = vpop.f32.mrf.mxu0
      %v3176 = vadd.f32 0.0, %v3175
      %v3177 = vpop.f32.mrf.mxu0
      %v3178 = vpop.f32.mrf.mxu0
      %v3179 = vadd.f32 0.0, %v3178
      %v3180 = vpop.f32.mrf.mxu0
      %3181 = vmatprep.mubr.bf16.mxu0 0
      %3182 = vmatmul.mubr.bf16.gmra.mxu0 %v3033
      %v3183 = vpop.f32.mrf.mxu0
      %v3184 = vadd.f32 0.0, %v3183
      %v3185 = vpop.f32.mrf.mxu0
      %v3186 = vpop.f32.mrf.mxu0
      %v3187 = vadd.f32 0.0, %v3186
      %v3188 = vpop.f32.mrf.mxu0
      %3189 = vmatprep.mubr.bf16.mxu0 0
      %3190 = vmatmul.mubr.bf16.gmra.mxu0 %v3034
      %v3191 = vpop.f32.mrf.mxu0
      %v3192 = vadd.f32 0.0, %v3191
      %v3193 = vpop.f32.mrf.mxu0
      %v3194 = vpop.f32.mrf.mxu0
      %v3195 = vadd.f32 0.0, %v3194
      %v3196 = vpop.f32.mrf.mxu0
      %3197 = vmatprep.mubr.bf16.mxu0 0
      %3198 = vmatmul.mubr.bf16.gmra.mxu0 %v3035
      %v3199 = vpop.f32.mrf.mxu0
      %v3200 = vadd.f32 0.0, %v3199
      %v3201 = vpop.f32.mrf.mxu0
      %v3202 = vpop.f32.mrf.mxu0
      %v3203 = vadd.f32 0.0, %v3202
      %v3204 = vpop.f32.mrf.mxu0
      %3205 = vdwg.mxu0
      %v3206 = vadd.f32 %v2939, %v3136
      %v3207 = vadd.f32 %v2942, %v3139
      %v3208 = vadd.f32 %v2947, %v3144
      %v3209 = vadd.f32 %v2950, %v3147
      %v3210 = vadd.f32 %v2955, %v3152
      %v3211 = vadd.f32 %v2958, %v3155
      %v3212 = vadd.f32 %v2963, %v3160
      %v3213 = vadd.f32 %v2966, %v3163
      %v3214 = vadd.f32 %v2971, %v3168
      %v3215 = vadd.f32 %v2974, %v3171
      %v3216 = vadd.f32 %v2979, %v3176
      %v3217 = vadd.f32 %v2982, %v3179
      %v3218 = vadd.f32 %v2987, %v3184
      %v3219 = vadd.f32 %v2990, %v3187
      %v3220 = vadd.f32 %v2995, %v3192
      %v3221 = vadd.f32 %v2998, %v3195
      %v3222 = vadd.f32 %v3003, %v3200
      %v3223 = vadd.f32 %v3006, %v3203
      %v3224 = vld [vmem:[#allocation2 + $0x12] sm:$0xff]
      %v3225 = vld [vmem:[#allocation2 + $0x1a] sm:$0xff]
      %v3226 = vld [vmem:[#allocation2 + $0x22] sm:$0xff]
      %v3227 = vld [vmem:[#allocation2 + $0x2a] sm:$0xff]
      %v3228 = vld [vmem:[#allocation2 + $0x32] sm:$0xff]
      %v3229 = vld [vmem:[#allocation2 + $0x3a] sm:$0xff]
      %v3230 = vld [vmem:[#allocation2 + $0x42] sm:$0xff]
      %v3231 = vld [vmem:[#allocation2 + $0x4a] sm:$0xff]
      %v3232 = vld [vmem:[#allocation2 + $0x52] sm:$0xff]
      %v3233 = vld [vmem:[#allocation2 + $0x5a] sm:$0xff]
      %v3234 = vld [vmem:[#allocation2 + $0x62] sm:$0xff]
      %v3235 = vld [vmem:[#allocation2 + $0x6a] sm:$0xff]
      %v3236 = vld [vmem:[#allocation2 + $0x72] sm:$0xff]
      %v3237 = vld [vmem:[#allocation2 + $0x7a] sm:$0xff]
      %v3238 = vld [vmem:[#allocation2 + $0x82] sm:$0xff]
      %v3239 = vld [vmem:[#allocation2 + $0x8a] sm:$0xff]
      %v3240 = vld [vmem:[#allocation2 + $0x92] sm:$0xff]
      %v3241 = vld [vmem:[#allocation2 + $0x9a] sm:$0xff]
      %v3242 = vpack.c.bf16 %v3225, %v3224
      %v3243 = vpack.c.bf16 %v3227, %v3226
      %v3244 = vpack.c.bf16 %v3229, %v3228
      %v3245 = vpack.c.bf16 %v3231, %v3230
      %v3246 = vpack.c.bf16 %v3233, %v3232
      %v3247 = vpack.c.bf16 %v3235, %v3234
      %v3248 = vpack.c.bf16 %v3237, %v3236
      %v3249 = vpack.c.bf16 %v3239, %v3238
      %v3250 = vpack.c.bf16 %v3241, %v3240
      %s3251 = scalar_lea.vmem %s2, 192
      %v3252 = vld [vmem:[%s3251] sm:$0xf]
      %v3253 = vld [vmem:[%s3251 + $0x4] sm:$0xf]
      %v3254 = vld [vmem:[%s3251 + $0x8] sm:$0xf]
      %v3255 = vld [vmem:[%s3251 + $0xc] sm:$0xf]
      %v3256 = vld [vmem:[%s3251 + $0x10] sm:$0xf]
      %v3257 = vld [vmem:[%s3251 + $0x14] sm:$0xf]
      %v3258 = vld [vmem:[%s3251 + $0x18] sm:$0xf]
      %v3259 = vld [vmem:[%s3251 + $0x1c] sm:$0xf]
      %v3260 = vld [vmem:[%s3251 + $0x20] sm:$0xf]
      %v3261 = vld [vmem:[%s3251 + $0x24] sm:$0xf]
      %v3262 = vld [vmem:[%s3251 + $0x28] sm:$0xf]
      %v3263 = vld [vmem:[%s3251 + $0x2c] sm:$0xf]
      %v3264 = vld [vmem:[%s3251 + $0x30] sm:$0xf]
      %v3265 = vld [vmem:[%s3251 + $0x34] sm:$0xf]
      %v3266 = vld [vmem:[%s3251 + $0x38] sm:$0xf]
      %v3267 = vld [vmem:[%s3251 + $0x3c] sm:$0xf]
      %v3284 = vunpack.c.l.b16 %v3252
      %v3285 = vunpack.c.l.b16 %v3253
      %v3286 = vunpack.c.l.b16 %v3254
      %v3287 = vunpack.c.l.b16 %v3255
      %v3288 = vunpack.c.l.b16 %v3256
      %v3289 = vunpack.c.l.b16 %v3257
      %v3290 = vunpack.c.l.b16 %v3258
      %v3291 = vunpack.c.l.b16 %v3259
      %v3292 = vunpack.c.l.b16 %v3260
      %v3293 = vunpack.c.l.b16 %v3261
      %v3294 = vunpack.c.l.b16 %v3262
      %v3295 = vunpack.c.l.b16 %v3263
      %v3296 = vunpack.c.l.b16 %v3264
      %v3297 = vunpack.c.l.b16 %v3265
      %v3298 = vunpack.c.l.b16 %v3266
      %v3299 = vunpack.c.l.b16 %v3267
      %v3300 = vpack.c.b16 %v3285, %v3284
      %v3301 = vpack.c.b16 %v3287, %v3286
      %v3302 = vpack.c.b16 %v3289, %v3288
      %v3303 = vpack.c.b16 %v3291, %v3290
      %v3304 = vpack.c.b16 %v3293, %v3292
      %v3305 = vpack.c.b16 %v3295, %v3294
      %v3306 = vpack.c.b16 %v3297, %v3296
      %v3307 = vpack.c.b16 %v3299, %v3298
      %3316 = vmatprep.subr.bf16.mxu0 0
      %3317 = vmatpush1.bf16.msra.mxu0 %v3307
      %3318 = vmatprep.subr.bf16.mxu0 0
      %3319 = vmatpush1.bf16.msra.mxu0 %v3306
      %3320 = vmatprep.subr.bf16.mxu0 0
      %3321 = vmatpush1.bf16.msra.mxu0 %v3305
      %3322 = vmatprep.subr.bf16.mxu0 0
      %3323 = vmatpush1.bf16.msra.mxu0 %v3304
      %3324 = vmatprep.subr.bf16.mxu0 0
      %3325 = vmatpush1.bf16.msra.mxu0 %v3303
      %3326 = vmatprep.subr.bf16.mxu0 0
      %3327 = vmatpush1.bf16.msra.mxu0 %v3302
      %3328 = vmatprep.subr.bf16.mxu0 0
      %3329 = vmatpush1.bf16.msra.mxu0 %v3301
      %3330 = vmatprep.subr.bf16.mxu0 0
      %3331 = vmatpush1.bf16.msra.mxu0 %v3300
      %3332 = vmatprep.subr.bf16.mxu0 0
      %3333 = vmatpush2.bf16.msra.mxu0 0
      %3334 = vmatprep.subr.bf16.mxu0 0
      %3335 = vmatpush2.bf16.msra.mxu0 0
      %3336 = vmatprep.subr.bf16.mxu0 0
      %3337 = vmatpush2.bf16.msra.mxu0 0
      %3338 = vmatprep.subr.bf16.mxu0 0
      %3339 = vmatpush2.bf16.msra.mxu0 0
      %3340 = vmatprep.subr.bf16.mxu0 0
      %3341 = vmatpush2.bf16.msra.mxu0 0
      %3342 = vmatprep.subr.bf16.mxu0 0
      %3343 = vmatpush2.bf16.msra.mxu0 0
      %3344 = vmatprep.subr.bf16.mxu0 0
      %3345 = vmatpush2.bf16.msra.mxu0 0
      %3346 = vmatprep.subr.bf16.mxu0 0
      %3347 = vmatpush2.bf16.msra.mxu0 0
      %3348 = vmatprep.mubr.bf16.mxu0 0
      %3349 = vmatmul.mubr.bf16.gmra.mxu0 %v3242
      %v3350 = vpop.f32.mrf.mxu0
      %v3351 = vadd.f32 0.0, %v3350
      %v3352 = vpop.f32.mrf.mxu0
      %v3353 = vpop.f32.mrf.mxu0
      %v3354 = vadd.f32 0.0, %v3353
      %v3355 = vpop.f32.mrf.mxu0
      %3356 = vmatprep.mubr.bf16.mxu0 0
      %3357 = vmatmul.mubr.bf16.gmra.mxu0 %v3243
      %v3358 = vpop.f32.mrf.mxu0
      %v3359 = vadd.f32 0.0, %v3358
      %v3360 = vpop.f32.mrf.mxu0
      %v3361 = vpop.f32.mrf.mxu0
      %v3362 = vadd.f32 0.0, %v3361
      %v3363 = vpop.f32.mrf.mxu0
      %3364 = vmatprep.mubr.bf16.mxu0 0
      %3365 = vmatmul.mubr.bf16.gmra.mxu0 %v3244
      %v3366 = vpop.f32.mrf.mxu0
      %v3367 = vadd.f32 0.0, %v3366
      %v3368 = vpop.f32.mrf.mxu0
      %v3369 = vpop.f32.mrf.mxu0
      %v3370 = vadd.f32 0.0, %v3369
      %v3371 = vpop.f32.mrf.mxu0
      %3372 = vmatprep.mubr.bf16.mxu0 0
      %3373 = vmatmul.mubr.bf16.gmra.mxu0 %v3245
      %v3374 = vpop.f32.mrf.mxu0
      %v3375 = vadd.f32 0.0, %v3374
      %v3376 = vpop.f32.mrf.mxu0
      %v3377 = vpop.f32.mrf.mxu0
      %v3378 = vadd.f32 0.0, %v3377
      %v3379 = vpop.f32.mrf.mxu0
      %3380 = vmatprep.mubr.bf16.mxu0 0
      %3381 = vmatmul.mubr.bf16.gmra.mxu0 %v3246
      %v3382 = vpop.f32.mrf.mxu0
      %v3383 = vadd.f32 0.0, %v3382
      %v3384 = vpop.f32.mrf.mxu0
      %v3385 = vpop.f32.mrf.mxu0
      %v3386 = vadd.f32 0.0, %v3385
      %v3387 = vpop.f32.mrf.mxu0
      %3388 = vmatprep.mubr.bf16.mxu0 0
      %3389 = vmatmul.mubr.bf16.gmra.mxu0 %v3247
      %v3390 = vpop.f32.mrf.mxu0
      %v3391 = vadd.f32 0.0, %v3390
      %v3392 = vpop.f32.mrf.mxu0
      %v3393 = vpop.f32.mrf.mxu0
      %v3394 = vadd.f32 0.0, %v3393
      %v3395 = vpop.f32.mrf.mxu0
      %3396 = vmatprep.mubr.bf16.mxu0 0
      %3397 = vmatmul.mubr.bf16.gmra.mxu0 %v3248
      %v3398 = vpop.f32.mrf.mxu0
      %v3399 = vadd.f32 0.0, %v3398
      %v3400 = vpop.f32.mrf.mxu0
      %v3401 = vpop.f32.mrf.mxu0
      %v3402 = vadd.f32 0.0, %v3401
      %v3403 = vpop.f32.mrf.mxu0
      %3404 = vmatprep.mubr.bf16.mxu0 0
      %3405 = vmatmul.mubr.bf16.gmra.mxu0 %v3249
      %v3406 = vpop.f32.mrf.mxu0
      %v3407 = vadd.f32 0.0, %v3406
      %v3408 = vpop.f32.mrf.mxu0
      %v3409 = vpop.f32.mrf.mxu0
      %v3410 = vadd.f32 0.0, %v3409
      %v3411 = vpop.f32.mrf.mxu0
      %3412 = vmatprep.mubr.bf16.mxu0 0
      %3413 = vmatmul.mubr.bf16.gmra.mxu0 %v3250
      %v3414 = vpop.f32.mrf.mxu0
      %v3415 = vadd.f32 0.0, %v3414
      %v3416 = vpop.f32.mrf.mxu0
      %v3417 = vpop.f32.mrf.mxu0
      %v3418 = vadd.f32 0.0, %v3417
      %v3419 = vpop.f32.mrf.mxu0
      %3420 = vdwg.mxu0
      %v3421 = vadd.f32 %v3206, %v3351
      %v3422 = vadd.f32 %v3207, %v3354
      %v3423 = vadd.f32 %v3208, %v3359
      %v3424 = vadd.f32 %v3209, %v3362
      %v3425 = vadd.f32 %v3210, %v3367
      %v3426 = vadd.f32 %v3211, %v3370
      %v3427 = vadd.f32 %v3212, %v3375
      %v3428 = vadd.f32 %v3213, %v3378
      %v3429 = vadd.f32 %v3214, %v3383
      %v3430 = vadd.f32 %v3215, %v3386
      %v3431 = vadd.f32 %v3216, %v3391
      %v3432 = vadd.f32 %v3217, %v3394
      %v3433 = vadd.f32 %v3218, %v3399
      %v3434 = vadd.f32 %v3219, %v3402
      %v3435 = vadd.f32 %v3220, %v3407
      %v3436 = vadd.f32 %v3221, %v3410
      %v3437 = vadd.f32 %v3222, %v3415
      %v3438 = vadd.f32 %v3223, %v3418
      %v3439 = vld [vmem:[#allocation2 + $0x13] sm:$0xff]
      %v3440 = vld [vmem:[#allocation2 + $0x1b] sm:$0xff]
      %v3441 = vld [vmem:[#allocation2 + $0x23] sm:$0xff]
      %v3442 = vld [vmem:[#allocation2 + $0x2b] sm:$0xff]
      %v3443 = vld [vmem:[#allocation2 + $0x33] sm:$0xff]
      %v3444 = vld [vmem:[#allocation2 + $0x3b] sm:$0xff]
      %v3445 = vld [vmem:[#allocation2 + $0x43] sm:$0xff]
      %v3446 = vld [vmem:[#allocation2 + $0x4b] sm:$0xff]
      %v3447 = vld [vmem:[#allocation2 + $0x53] sm:$0xff]
      %v3448 = vld [vmem:[#allocation2 + $0x5b] sm:$0xff]
      %v3449 = vld [vmem:[#allocation2 + $0x63] sm:$0xff]
      %v3450 = vld [vmem:[#allocation2 + $0x6b] sm:$0xff]
      %v3451 = vld [vmem:[#allocation2 + $0x73] sm:$0xff]
      %v3452 = vld [vmem:[#allocation2 + $0x7b] sm:$0xff]
      %v3453 = vld [vmem:[#allocation2 + $0x83] sm:$0xff]
      %v3454 = vld [vmem:[#allocation2 + $0x8b] sm:$0xff]
      %v3455 = vld [vmem:[#allocation2 + $0x93] sm:$0xff]
      %v3456 = vld [vmem:[#allocation2 + $0x9b] sm:$0xff]
      %v3457 = vpack.c.bf16 %v3440, %v3439
      %v3458 = vpack.c.bf16 %v3442, %v3441
      %v3459 = vpack.c.bf16 %v3444, %v3443
      %v3460 = vpack.c.bf16 %v3446, %v3445
      %v3461 = vpack.c.bf16 %v3448, %v3447
      %v3462 = vpack.c.bf16 %v3450, %v3449
      %v3463 = vpack.c.bf16 %v3452, %v3451
      %v3464 = vpack.c.bf16 %v3454, %v3453
      %v3465 = vpack.c.bf16 %v3456, %v3455
      %s3466 = scalar_lea.vmem %s2, 256
      %v3467 = vld [vmem:[%s3466] sm:$0xf]
      %v3468 = vld [vmem:[%s3466 + $0x4] sm:$0xf]
      %v3469 = vld [vmem:[%s3466 + $0x8] sm:$0xf]
      %v3470 = vld [vmem:[%s3466 + $0xc] sm:$0xf]
      %v3471 = vld [vmem:[%s3466 + $0x10] sm:$0xf]
      %v3472 = vld [vmem:[%s3466 + $0x14] sm:$0xf]
      %v3473 = vld [vmem:[%s3466 + $0x18] sm:$0xf]
      %v3474 = vld [vmem:[%s3466 + $0x1c] sm:$0xf]
      %v3475 = vld [vmem:[%s3466 + $0x20] sm:$0xf]
      %v3476 = vld [vmem:[%s3466 + $0x24] sm:$0xf]
      %v3477 = vld [vmem:[%s3466 + $0x28] sm:$0xf]
      %v3478 = vld [vmem:[%s3466 + $0x2c] sm:$0xf]
      %v3479 = vld [vmem:[%s3466 + $0x30] sm:$0xf]
      %v3480 = vld [vmem:[%s3466 + $0x34] sm:$0xf]
      %v3481 = vld [vmem:[%s3466 + $0x38] sm:$0xf]
      %v3482 = vld [vmem:[%s3466 + $0x3c] sm:$0xf]
      %v3499 = vunpack.c.l.b16 %v3467
      %v3500 = vunpack.c.l.b16 %v3468
      %v3501 = vunpack.c.l.b16 %v3469
      %v3502 = vunpack.c.l.b16 %v3470
      %v3503 = vunpack.c.l.b16 %v3471
      %v3504 = vunpack.c.l.b16 %v3472
      %v3505 = vunpack.c.l.b16 %v3473
      %v3506 = vunpack.c.l.b16 %v3474
      %v3507 = vunpack.c.l.b16 %v3475
      %v3508 = vunpack.c.l.b16 %v3476
      %v3509 = vunpack.c.l.b16 %v3477
      %v3510 = vunpack.c.l.b16 %v3478
      %v3511 = vunpack.c.l.b16 %v3479
      %v3512 = vunpack.c.l.b16 %v3480
      %v3513 = vunpack.c.l.b16 %v3481
      %v3514 = vunpack.c.l.b16 %v3482
      %v3515 = vpack.c.b16 %v3500, %v3499
      %v3516 = vpack.c.b16 %v3502, %v3501
      %v3517 = vpack.c.b16 %v3504, %v3503
      %v3518 = vpack.c.b16 %v3506, %v3505
      %v3519 = vpack.c.b16 %v3508, %v3507
      %v3520 = vpack.c.b16 %v3510, %v3509
      %v3521 = vpack.c.b16 %v3512, %v3511
      %v3522 = vpack.c.b16 %v3514, %v3513
      %3531 = vmatprep.subr.bf16.mxu0 0
      %3532 = vmatpush1.bf16.msra.mxu0 %v3522
      %3533 = vmatprep.subr.bf16.mxu0 0
      %3534 = vmatpush1.bf16.msra.mxu0 %v3521
      %3535 = vmatprep.subr.bf16.mxu0 0
      %3536 = vmatpush1.bf16.msra.mxu0 %v3520
      %3537 = vmatprep.subr.bf16.mxu0 0
      %3538 = vmatpush1.bf16.msra.mxu0 %v3519
      %3539 = vmatprep.subr.bf16.mxu0 0
      %3540 = vmatpush1.bf16.msra.mxu0 %v3518
      %3541 = vmatprep.subr.bf16.mxu0 0
      %3542 = vmatpush1.bf16.msra.mxu0 %v3517
      %3543 = vmatprep.subr.bf16.mxu0 0
      %3544 = vmatpush1.bf16.msra.mxu0 %v3516
      %3545 = vmatprep.subr.bf16.mxu0 0
      %3546 = vmatpush1.bf16.msra.mxu0 %v3515
      %3547 = vmatprep.subr.bf16.mxu0 0
      %3548 = vmatpush2.bf16.msra.mxu0 0
      %3549 = vmatprep.subr.bf16.mxu0 0
      %3550 = vmatpush2.bf16.msra.mxu0 0
      %3551 = vmatprep.subr.bf16.mxu0 0
      %3552 = vmatpush2.bf16.msra.mxu0 0
      %3553 = vmatprep.subr.bf16.mxu0 0
      %3554 = vmatpush2.bf16.msra.mxu0 0
      %3555 = vmatprep.subr.bf16.mxu0 0
      %3556 = vmatpush2.bf16.msra.mxu0 0
      %3557 = vmatprep.subr.bf16.mxu0 0
      %3558 = vmatpush2.bf16.msra.mxu0 0
      %3559 = vmatprep.subr.bf16.mxu0 0
      %3560 = vmatpush2.bf16.msra.mxu0 0
      %3561 = vmatprep.subr.bf16.mxu0 0
      %3562 = vmatpush2.bf16.msra.mxu0 0
      %3563 = vmatprep.mubr.bf16.mxu0 0
      %3564 = vmatmul.mubr.bf16.gmra.mxu0 %v3457
      %v3565 = vpop.f32.mrf.mxu0
      %v3566 = vadd.f32 0.0, %v3565
      %v3567 = vpop.f32.mrf.mxu0
      %v3568 = vpop.f32.mrf.mxu0
      %v3569 = vadd.f32 0.0, %v3568
      %v3570 = vpop.f32.mrf.mxu0
      %3571 = vmatprep.mubr.bf16.mxu0 0
      %3572 = vmatmul.mubr.bf16.gmra.mxu0 %v3458
      %v3573 = vpop.f32.mrf.mxu0
      %v3574 = vadd.f32 0.0, %v3573
      %v3575 = vpop.f32.mrf.mxu0
      %v3576 = vpop.f32.mrf.mxu0
      %v3577 = vadd.f32 0.0, %v3576
      %v3578 = vpop.f32.mrf.mxu0
      %3579 = vmatprep.mubr.bf16.mxu0 0
      %3580 = vmatmul.mubr.bf16.gmra.mxu0 %v3459
      %v3581 = vpop.f32.mrf.mxu0
      %v3582 = vadd.f32 0.0, %v3581
      %v3583 = vpop.f32.mrf.mxu0
      %v3584 = vpop.f32.mrf.mxu0
      %v3585 = vadd.f32 0.0, %v3584
      %v3586 = vpop.f32.mrf.mxu0
      %3587 = vmatprep.mubr.bf16.mxu0 0
      %3588 = vmatmul.mubr.bf16.gmra.mxu0 %v3460
      %v3589 = vpop.f32.mrf.mxu0
      %v3590 = vadd.f32 0.0, %v3589
      %v3591 = vpop.f32.mrf.mxu0
      %v3592 = vpop.f32.mrf.mxu0
      %v3593 = vadd.f32 0.0, %v3592
      %v3594 = vpop.f32.mrf.mxu0
      %3595 = vmatprep.mubr.bf16.mxu0 0
      %3596 = vmatmul.mubr.bf16.gmra.mxu0 %v3461
      %v3597 = vpop.f32.mrf.mxu0
      %v3598 = vadd.f32 0.0, %v3597
      %v3599 = vpop.f32.mrf.mxu0
      %v3600 = vpop.f32.mrf.mxu0
      %v3601 = vadd.f32 0.0, %v3600
      %v3602 = vpop.f32.mrf.mxu0
      %3603 = vmatprep.mubr.bf16.mxu0 0
      %3604 = vmatmul.mubr.bf16.gmra.mxu0 %v3462
      %v3605 = vpop.f32.mrf.mxu0
      %v3606 = vadd.f32 0.0, %v3605
      %v3607 = vpop.f32.mrf.mxu0
      %v3608 = vpop.f32.mrf.mxu0
      %v3609 = vadd.f32 0.0, %v3608
      %v3610 = vpop.f32.mrf.mxu0
      %3611 = vmatprep.mubr.bf16.mxu0 0
      %3612 = vmatmul.mubr.bf16.gmra.mxu0 %v3463
      %v3613 = vpop.f32.mrf.mxu0
      %v3614 = vadd.f32 0.0, %v3613
      %v3615 = vpop.f32.mrf.mxu0
      %v3616 = vpop.f32.mrf.mxu0
      %v3617 = vadd.f32 0.0, %v3616
      %v3618 = vpop.f32.mrf.mxu0
      %3619 = vmatprep.mubr.bf16.mxu0 0
      %3620 = vmatmul.mubr.bf16.gmra.mxu0 %v3464
      %v3621 = vpop.f32.mrf.mxu0
      %v3622 = vadd.f32 0.0, %v3621
      %v3623 = vpop.f32.mrf.mxu0
      %v3624 = vpop.f32.mrf.mxu0
      %v3625 = vadd.f32 0.0, %v3624
      %v3626 = vpop.f32.mrf.mxu0
      %3627 = vmatprep.mubr.bf16.mxu0 0
      %3628 = vmatmul.mubr.bf16.gmra.mxu0 %v3465
      %v3629 = vpop.f32.mrf.mxu0
      %v3630 = vadd.f32 0.0, %v3629
      %v3631 = vpop.f32.mrf.mxu0
      %v3632 = vpop.f32.mrf.mxu0
      %v3633 = vadd.f32 0.0, %v3632
      %v3634 = vpop.f32.mrf.mxu0
      %3635 = vdwg.mxu0
      %v3636 = vadd.f32 %v3421, %v3566
      %v3637 = vadd.f32 %v3422, %v3569
      %v3638 = vadd.f32 %v3423, %v3574
      %v3639 = vadd.f32 %v3424, %v3577
      %v3640 = vadd.f32 %v3425, %v3582
      %v3641 = vadd.f32 %v3426, %v3585
      %v3642 = vadd.f32 %v3427, %v3590
      %v3643 = vadd.f32 %v3428, %v3593
      %v3644 = vadd.f32 %v3429, %v3598
      %v3645 = vadd.f32 %v3430, %v3601
      %v3646 = vadd.f32 %v3431, %v3606
      %v3647 = vadd.f32 %v3432, %v3609
      %v3648 = vadd.f32 %v3433, %v3614
      %v3649 = vadd.f32 %v3434, %v3617
      %v3650 = vadd.f32 %v3435, %v3622
      %v3651 = vadd.f32 %v3436, %v3625
      %v3652 = vadd.f32 %v3437, %v3630
      %v3653 = vadd.f32 %v3438, %v3633
      %v3654 = vld [vmem:[#allocation2 + $0x14] sm:$0xff]
      %v3655 = vld [vmem:[#allocation2 + $0x1c] sm:$0xff]
      %v3656 = vld [vmem:[#allocation2 + $0x24] sm:$0xff]
      %v3657 = vld [vmem:[#allocation2 + $0x2c] sm:$0xff]
      %v3658 = vld [vmem:[#allocation2 + $0x34] sm:$0xff]
      %v3659 = vld [vmem:[#allocation2 + $0x3c] sm:$0xff]
      %v3660 = vld [vmem:[#allocation2 + $0x44] sm:$0xff]
      %v3661 = vld [vmem:[#allocation2 + $0x4c] sm:$0xff]
      %v3662 = vld [vmem:[#allocation2 + $0x54] sm:$0xff]
      %v3663 = vld [vmem:[#allocation2 + $0x5c] sm:$0xff]
      %v3664 = vld [vmem:[#allocation2 + $0x64] sm:$0xff]
      %v3665 = vld [vmem:[#allocation2 + $0x6c] sm:$0xff]
      %v3666 = vld [vmem:[#allocation2 + $0x74] sm:$0xff]
      %v3667 = vld [vmem:[#allocation2 + $0x7c] sm:$0xff]
      %v3668 = vld [vmem:[#allocation2 + $0x84] sm:$0xff]
      %v3669 = vld [vmem:[#allocation2 + $0x8c] sm:$0xff]
      %v3670 = vld [vmem:[#allocation2 + $0x94] sm:$0xff]
      %v3671 = vld [vmem:[#allocation2 + $0x9c] sm:$0xff]
      %v3672 = vpack.c.bf16 %v3655, %v3654
      %v3673 = vpack.c.bf16 %v3657, %v3656
      %v3674 = vpack.c.bf16 %v3659, %v3658
      %v3675 = vpack.c.bf16 %v3661, %v3660
      %v3676 = vpack.c.bf16 %v3663, %v3662
      %v3677 = vpack.c.bf16 %v3665, %v3664
      %v3678 = vpack.c.bf16 %v3667, %v3666
      %v3679 = vpack.c.bf16 %v3669, %v3668
      %v3680 = vpack.c.bf16 %v3671, %v3670
      %s3681 = scalar_lea.vmem %s2, 320
      %v3682 = vld [vmem:[%s3681] sm:$0xf]
      %v3683 = vld [vmem:[%s3681 + $0x4] sm:$0xf]
      %v3684 = vld [vmem:[%s3681 + $0x8] sm:$0xf]
      %v3685 = vld [vmem:[%s3681 + $0xc] sm:$0xf]
      %v3686 = vld [vmem:[%s3681 + $0x10] sm:$0xf]
      %v3687 = vld [vmem:[%s3681 + $0x14] sm:$0xf]
      %v3688 = vld [vmem:[%s3681 + $0x18] sm:$0xf]
      %v3689 = vld [vmem:[%s3681 + $0x1c] sm:$0xf]
      %v3690 = vld [vmem:[%s3681 + $0x20] sm:$0xf]
      %v3691 = vld [vmem:[%s3681 + $0x24] sm:$0xf]
      %v3692 = vld [vmem:[%s3681 + $0x28] sm:$0xf]
      %v3693 = vld [vmem:[%s3681 + $0x2c] sm:$0xf]
      %v3694 = vld [vmem:[%s3681 + $0x30] sm:$0xf]
      %v3695 = vld [vmem:[%s3681 + $0x34] sm:$0xf]
      %v3696 = vld [vmem:[%s3681 + $0x38] sm:$0xf]
      %v3697 = vld [vmem:[%s3681 + $0x3c] sm:$0xf]
      %v3714 = vunpack.c.l.b16 %v3682
      %v3715 = vunpack.c.l.b16 %v3683
      %v3716 = vunpack.c.l.b16 %v3684
      %v3717 = vunpack.c.l.b16 %v3685
      %v3718 = vunpack.c.l.b16 %v3686
      %v3719 = vunpack.c.l.b16 %v3687
      %v3720 = vunpack.c.l.b16 %v3688
      %v3721 = vunpack.c.l.b16 %v3689
      %v3722 = vunpack.c.l.b16 %v3690
      %v3723 = vunpack.c.l.b16 %v3691
      %v3724 = vunpack.c.l.b16 %v3692
      %v3725 = vunpack.c.l.b16 %v3693
      %v3726 = vunpack.c.l.b16 %v3694
      %v3727 = vunpack.c.l.b16 %v3695
      %v3728 = vunpack.c.l.b16 %v3696
      %v3729 = vunpack.c.l.b16 %v3697
      %v3730 = vpack.c.b16 %v3715, %v3714
      %v3731 = vpack.c.b16 %v3717, %v3716
      %v3732 = vpack.c.b16 %v3719, %v3718
      %v3733 = vpack.c.b16 %v3721, %v3720
      %v3734 = vpack.c.b16 %v3723, %v3722
      %v3735 = vpack.c.b16 %v3725, %v3724
      %v3736 = vpack.c.b16 %v3727, %v3726
      %v3737 = vpack.c.b16 %v3729, %v3728
      %3746 = vmatprep.subr.bf16.mxu0 0
      %3747 = vmatpush1.bf16.msra.mxu0 %v3737
      %3748 = vmatprep.subr.bf16.mxu0 0
      %3749 = vmatpush1.bf16.msra.mxu0 %v3736
      %3750 = vmatprep.subr.bf16.mxu0 0
      %3751 = vmatpush1.bf16.msra.mxu0 %v3735
      %3752 = vmatprep.subr.bf16.mxu0 0
      %3753 = vmatpush1.bf16.msra.mxu0 %v3734
      %3754 = vmatprep.subr.bf16.mxu0 0
      %3755 = vmatpush1.bf16.msra.mxu0 %v3733
      %3756 = vmatprep.subr.bf16.mxu0 0
      %3757 = vmatpush1.bf16.msra.mxu0 %v3732
      %3758 = vmatprep.subr.bf16.mxu0 0
      %3759 = vmatpush1.bf16.msra.mxu0 %v3731
      %3760 = vmatprep.subr.bf16.mxu0 0
      %3761 = vmatpush1.bf16.msra.mxu0 %v3730
      %3762 = vmatprep.subr.bf16.mxu0 0
      %3763 = vmatpush2.bf16.msra.mxu0 0
      %3764 = vmatprep.subr.bf16.mxu0 0
      %3765 = vmatpush2.bf16.msra.mxu0 0
      %3766 = vmatprep.subr.bf16.mxu0 0
      %3767 = vmatpush2.bf16.msra.mxu0 0
      %3768 = vmatprep.subr.bf16.mxu0 0
      %3769 = vmatpush2.bf16.msra.mxu0 0
      %3770 = vmatprep.subr.bf16.mxu0 0
      %3771 = vmatpush2.bf16.msra.mxu0 0
      %3772 = vmatprep.subr.bf16.mxu0 0
      %3773 = vmatpush2.bf16.msra.mxu0 0
      %3774 = vmatprep.subr.bf16.mxu0 0
      %3775 = vmatpush2.bf16.msra.mxu0 0
      %3776 = vmatprep.subr.bf16.mxu0 0
      %3777 = vmatpush2.bf16.msra.mxu0 0
      %3778 = vmatprep.mubr.bf16.mxu0 0
      %3779 = vmatmul.mubr.bf16.gmra.mxu0 %v3672
      %v3780 = vpop.f32.mrf.mxu0
      %v3781 = vadd.f32 0.0, %v3780
      %v3782 = vpop.f32.mrf.mxu0
      %v3783 = vpop.f32.mrf.mxu0
      %v3784 = vadd.f32 0.0, %v3783
      %v3785 = vpop.f32.mrf.mxu0
      %3786 = vmatprep.mubr.bf16.mxu0 0
      %3787 = vmatmul.mubr.bf16.gmra.mxu0 %v3673
      %v3788 = vpop.f32.mrf.mxu0
      %v3789 = vadd.f32 0.0, %v3788
      %v3790 = vpop.f32.mrf.mxu0
      %v3791 = vpop.f32.mrf.mxu0
      %v3792 = vadd.f32 0.0, %v3791
      %v3793 = vpop.f32.mrf.mxu0
      %3794 = vmatprep.mubr.bf16.mxu0 0
      %3795 = vmatmul.mubr.bf16.gmra.mxu0 %v3674
      %v3796 = vpop.f32.mrf.mxu0
      %v3797 = vadd.f32 0.0, %v3796
      %v3798 = vpop.f32.mrf.mxu0
      %v3799 = vpop.f32.mrf.mxu0
      %v3800 = vadd.f32 0.0, %v3799
      %v3801 = vpop.f32.mrf.mxu0
      %3802 = vmatprep.mubr.bf16.mxu0 0
      %3803 = vmatmul.mubr.bf16.gmra.mxu0 %v3675
      %v3804 = vpop.f32.mrf.mxu0
      %v3805 = vadd.f32 0.0, %v3804
      %v3806 = vpop.f32.mrf.mxu0
      %v3807 = vpop.f32.mrf.mxu0
      %v3808 = vadd.f32 0.0, %v3807
      %v3809 = vpop.f32.mrf.mxu0
      %3810 = vmatprep.mubr.bf16.mxu0 0
      %3811 = vmatmul.mubr.bf16.gmra.mxu0 %v3676
      %v3812 = vpop.f32.mrf.mxu0
      %v3813 = vadd.f32 0.0, %v3812
      %v3814 = vpop.f32.mrf.mxu0
      %v3815 = vpop.f32.mrf.mxu0
      %v3816 = vadd.f32 0.0, %v3815
      %v3817 = vpop.f32.mrf.mxu0
      %3818 = vmatprep.mubr.bf16.mxu0 0
      %3819 = vmatmul.mubr.bf16.gmra.mxu0 %v3677
      %v3820 = vpop.f32.mrf.mxu0
      %v3821 = vadd.f32 0.0, %v3820
      %v3822 = vpop.f32.mrf.mxu0
      %v3823 = vpop.f32.mrf.mxu0
      %v3824 = vadd.f32 0.0, %v3823
      %v3825 = vpop.f32.mrf.mxu0
      %3826 = vmatprep.mubr.bf16.mxu0 0
      %3827 = vmatmul.mubr.bf16.gmra.mxu0 %v3678
      %v3828 = vpop.f32.mrf.mxu0
      %v3829 = vadd.f32 0.0, %v3828
      %v3830 = vpop.f32.mrf.mxu0
      %v3831 = vpop.f32.mrf.mxu0
      %v3832 = vadd.f32 0.0, %v3831
      %v3833 = vpop.f32.mrf.mxu0
      %3834 = vmatprep.mubr.bf16.mxu0 0
      %3835 = vmatmul.mubr.bf16.gmra.mxu0 %v3679
      %v3836 = vpop.f32.mrf.mxu0
      %v3837 = vadd.f32 0.0, %v3836
      %v3838 = vpop.f32.mrf.mxu0
      %v3839 = vpop.f32.mrf.mxu0
      %v3840 = vadd.f32 0.0, %v3839
      %v3841 = vpop.f32.mrf.mxu0
      %3842 = vmatprep.mubr.bf16.mxu0 0
      %3843 = vmatmul.mubr.bf16.gmra.mxu0 %v3680
      %v3844 = vpop.f32.mrf.mxu0
      %v3845 = vadd.f32 0.0, %v3844
      %v3846 = vpop.f32.mrf.mxu0
      %v3847 = vpop.f32.mrf.mxu0
      %v3848 = vadd.f32 0.0, %v3847
      %v3849 = vpop.f32.mrf.mxu0
      %3850 = vdwg.mxu0
      %v3851 = vadd.f32 %v3636, %v3781
      %v3852 = vadd.f32 %v3637, %v3784
      %v3853 = vadd.f32 %v3638, %v3789
      %v3854 = vadd.f32 %v3639, %v3792
      %v3855 = vadd.f32 %v3640, %v3797
      %v3856 = vadd.f32 %v3641, %v3800
      %v3857 = vadd.f32 %v3642, %v3805
      %v3858 = vadd.f32 %v3643, %v3808
      %v3859 = vadd.f32 %v3644, %v3813
      %v3860 = vadd.f32 %v3645, %v3816
      %v3861 = vadd.f32 %v3646, %v3821
      %v3862 = vadd.f32 %v3647, %v3824
      %v3863 = vadd.f32 %v3648, %v3829
      %v3864 = vadd.f32 %v3649, %v3832
      %v3865 = vadd.f32 %v3650, %v3837
      %v3866 = vadd.f32 %v3651, %v3840
      %v3867 = vadd.f32 %v3652, %v3845
      %v3868 = vadd.f32 %v3653, %v3848
      %v3869 = vld [vmem:[#allocation2 + $0x24] sm:$0xff]
      %v3870 = vld [vmem:[#allocation2 + $0x2c] sm:$0xff]
      %v3871 = vld [vmem:[#allocation2 + $0x34] sm:$0xff]
      %v3872 = vld [vmem:[#allocation2 + $0x3c] sm:$0xff]
      %v3873 = vld [vmem:[#allocation2 + $0x44] sm:$0xff]
      %v3874 = vld [vmem:[#allocation2 + $0x4c] sm:$0xff]
      %v3875 = vld [vmem:[#allocation2 + $0x54] sm:$0xff]
      %v3876 = vld [vmem:[#allocation2 + $0x5c] sm:$0xff]
      %v3877 = vld [vmem:[#allocation2 + $0x64] sm:$0xff]
      %v3878 = vld [vmem:[#allocation2 + $0x6c] sm:$0xff]
      %v3879 = vld [vmem:[#allocation2 + $0x74] sm:$0xff]
      %v3880 = vld [vmem:[#allocation2 + $0x7c] sm:$0xff]
      %v3881 = vld [vmem:[#allocation2 + $0x84] sm:$0xff]
      %v3882 = vld [vmem:[#allocation2 + $0x8c] sm:$0xff]
      %v3883 = vld [vmem:[#allocation2 + $0x94] sm:$0xff]
      %v3884 = vld [vmem:[#allocation2 + $0x9c] sm:$0xff]
      %v3885 = vld [vmem:[#allocation2 + $0xa4] sm:$0xff]
      %v3886 = vld [vmem:[#allocation2 + $0xac] sm:$0xff]
      %v3887 = vpack.c.bf16 %v3870, %v3869
      %v3888 = vpack.c.bf16 %v3872, %v3871
      %v3889 = vpack.c.bf16 %v3874, %v3873
      %v3890 = vpack.c.bf16 %v3876, %v3875
      %v3891 = vpack.c.bf16 %v3878, %v3877
      %v3892 = vpack.c.bf16 %v3880, %v3879
      %v3893 = vpack.c.bf16 %v3882, %v3881
      %v3894 = vpack.c.bf16 %v3884, %v3883
      %v3895 = vpack.c.bf16 %v3886, %v3885
      %s3896 = scalar_lea.vmem %s2, 384
      %v3897 = vld [vmem:[%s3896] sm:$0xf]
      %v3898 = vld [vmem:[%s3896 + $0x4] sm:$0xf]
      %v3899 = vld [vmem:[%s3896 + $0x8] sm:$0xf]
      %v3900 = vld [vmem:[%s3896 + $0xc] sm:$0xf]
      %v3901 = vld [vmem:[%s3896 + $0x10] sm:$0xf]
      %v3902 = vld [vmem:[%s3896 + $0x14] sm:$0xf]
      %v3903 = vld [vmem:[%s3896 + $0x18] sm:$0xf]
      %v3904 = vld [vmem:[%s3896 + $0x1c] sm:$0xf]
      %v3905 = vld [vmem:[%s3896 + $0x20] sm:$0xf]
      %v3906 = vld [vmem:[%s3896 + $0x24] sm:$0xf]
      %v3907 = vld [vmem:[%s3896 + $0x28] sm:$0xf]
      %v3908 = vld [vmem:[%s3896 + $0x2c] sm:$0xf]
      %v3909 = vld [vmem:[%s3896 + $0x30] sm:$0xf]
      %v3910 = vld [vmem:[%s3896 + $0x34] sm:$0xf]
      %v3911 = vld [vmem:[%s3896 + $0x38] sm:$0xf]
      %v3912 = vld [vmem:[%s3896 + $0x3c] sm:$0xf]
      %v3929 = vunpack.c.l.b16 %v3897
      %v3930 = vunpack.c.l.b16 %v3898
      %v3931 = vunpack.c.l.b16 %v3899
      %v3932 = vunpack.c.l.b16 %v3900
      %v3933 = vunpack.c.l.b16 %v3901
      %v3934 = vunpack.c.l.b16 %v3902
      %v3935 = vunpack.c.l.b16 %v3903
      %v3936 = vunpack.c.l.b16 %v3904
      %v3937 = vunpack.c.l.b16 %v3905
      %v3938 = vunpack.c.l.b16 %v3906
      %v3939 = vunpack.c.l.b16 %v3907
      %v3940 = vunpack.c.l.b16 %v3908
      %v3941 = vunpack.c.l.b16 %v3909
      %v3942 = vunpack.c.l.b16 %v3910
      %v3943 = vunpack.c.l.b16 %v3911
      %v3944 = vunpack.c.l.b16 %v3912
      %v3945 = vpack.c.b16 %v3930, %v3929
      %v3946 = vpack.c.b16 %v3932, %v3931
      %v3947 = vpack.c.b16 %v3934, %v3933
      %v3948 = vpack.c.b16 %v3936, %v3935
      %v3949 = vpack.c.b16 %v3938, %v3937
      %v3950 = vpack.c.b16 %v3940, %v3939
      %v3951 = vpack.c.b16 %v3942, %v3941
      %v3952 = vpack.c.b16 %v3944, %v3943
      %3961 = vmatprep.subr.bf16.mxu0 0
      %3962 = vmatpush1.bf16.msra.mxu0 %v3952
      %3963 = vmatprep.subr.bf16.mxu0 0
      %3964 = vmatpush1.bf16.msra.mxu0 %v3951
      %3965 = vmatprep.subr.bf16.mxu0 0
      %3966 = vmatpush1.bf16.msra.mxu0 %v3950
      %3967 = vmatprep.subr.bf16.mxu0 0
      %3968 = vmatpush1.bf16.msra.mxu0 %v3949
      %3969 = vmatprep.subr.bf16.mxu0 0
      %3970 = vmatpush1.bf16.msra.mxu0 %v3948
      %3971 = vmatprep.subr.bf16.mxu0 0
      %3972 = vmatpush1.bf16.msra.mxu0 %v3947
      %3973 = vmatprep.subr.bf16.mxu0 0
      %3974 = vmatpush1.bf16.msra.mxu0 %v3946
      %3975 = vmatprep.subr.bf16.mxu0 0
      %3976 = vmatpush1.bf16.msra.mxu0 %v3945
      %3977 = vmatprep.subr.bf16.mxu0 0
      %3978 = vmatpush2.bf16.msra.mxu0 0
      %3979 = vmatprep.subr.bf16.mxu0 0
      %3980 = vmatpush2.bf16.msra.mxu0 0
      %3981 = vmatprep.subr.bf16.mxu0 0
      %3982 = vmatpush2.bf16.msra.mxu0 0
      %3983 = vmatprep.subr.bf16.mxu0 0
      %3984 = vmatpush2.bf16.msra.mxu0 0
      %3985 = vmatprep.subr.bf16.mxu0 0
      %3986 = vmatpush2.bf16.msra.mxu0 0
      %3987 = vmatprep.subr.bf16.mxu0 0
      %3988 = vmatpush2.bf16.msra.mxu0 0
      %3989 = vmatprep.subr.bf16.mxu0 0
      %3990 = vmatpush2.bf16.msra.mxu0 0
      %3991 = vmatprep.subr.bf16.mxu0 0
      %3992 = vmatpush2.bf16.msra.mxu0 0
      %3993 = vmatprep.mubr.bf16.mxu0 0
      %3994 = vmatmul.mubr.bf16.gmra.mxu0 %v3887
      %v3995 = vpop.f32.mrf.mxu0
      %v3996 = vadd.f32 0.0, %v3995
      %v3997 = vpop.f32.mrf.mxu0
      %v3998 = vpop.f32.mrf.mxu0
      %v3999 = vadd.f32 0.0, %v3998
      %v4000 = vpop.f32.mrf.mxu0
      %4001 = vmatprep.mubr.bf16.mxu0 0
      %4002 = vmatmul.mubr.bf16.gmra.mxu0 %v3888
      %v4003 = vpop.f32.mrf.mxu0
      %v4004 = vadd.f32 0.0, %v4003
      %v4005 = vpop.f32.mrf.mxu0
      %v4006 = vpop.f32.mrf.mxu0
      %v4007 = vadd.f32 0.0, %v4006
      %v4008 = vpop.f32.mrf.mxu0
      %4009 = vmatprep.mubr.bf16.mxu0 0
      %4010 = vmatmul.mubr.bf16.gmra.mxu0 %v3889
      %v4011 = vpop.f32.mrf.mxu0
      %v4012 = vadd.f32 0.0, %v4011
      %v4013 = vpop.f32.mrf.mxu0
      %v4014 = vpop.f32.mrf.mxu0
      %v4015 = vadd.f32 0.0, %v4014
      %v4016 = vpop.f32.mrf.mxu0
      %4017 = vmatprep.mubr.bf16.mxu0 0
      %4018 = vmatmul.mubr.bf16.gmra.mxu0 %v3890
      %v4019 = vpop.f32.mrf.mxu0
      %v4020 = vadd.f32 0.0, %v4019
      %v4021 = vpop.f32.mrf.mxu0
      %v4022 = vpop.f32.mrf.mxu0
      %v4023 = vadd.f32 0.0, %v4022
      %v4024 = vpop.f32.mrf.mxu0
      %4025 = vmatprep.mubr.bf16.mxu0 0
      %4026 = vmatmul.mubr.bf16.gmra.mxu0 %v3891
      %v4027 = vpop.f32.mrf.mxu0
      %v4028 = vadd.f32 0.0, %v4027
      %v4029 = vpop.f32.mrf.mxu0
      %v4030 = vpop.f32.mrf.mxu0
      %v4031 = vadd.f32 0.0, %v4030
      %v4032 = vpop.f32.mrf.mxu0
      %4033 = vmatprep.mubr.bf16.mxu0 0
      %4034 = vmatmul.mubr.bf16.gmra.mxu0 %v3892
      %v4035 = vpop.f32.mrf.mxu0
      %v4036 = vadd.f32 0.0, %v4035
      %v4037 = vpop.f32.mrf.mxu0
      %v4038 = vpop.f32.mrf.mxu0
      %v4039 = vadd.f32 0.0, %v4038
      %v4040 = vpop.f32.mrf.mxu0
      %4041 = vmatprep.mubr.bf16.mxu0 0
      %4042 = vmatmul.mubr.bf16.gmra.mxu0 %v3893
      %v4043 = vpop.f32.mrf.mxu0
      %v4044 = vadd.f32 0.0, %v4043
      %v4045 = vpop.f32.mrf.mxu0
      %v4046 = vpop.f32.mrf.mxu0
      %v4047 = vadd.f32 0.0, %v4046
      %v4048 = vpop.f32.mrf.mxu0
      %4049 = vmatprep.mubr.bf16.mxu0 0
      %4050 = vmatmul.mubr.bf16.gmra.mxu0 %v3894
      %v4051 = vpop.f32.mrf.mxu0
      %v4052 = vadd.f32 0.0, %v4051
      %v4053 = vpop.f32.mrf.mxu0
      %v4054 = vpop.f32.mrf.mxu0
      %v4055 = vadd.f32 0.0, %v4054
      %v4056 = vpop.f32.mrf.mxu0
      %4057 = vmatprep.mubr.bf16.mxu0 0
      %4058 = vmatmul.mubr.bf16.gmra.mxu0 %v3895
      %v4059 = vpop.f32.mrf.mxu0
      %v4060 = vadd.f32 0.0, %v4059
      %v4061 = vpop.f32.mrf.mxu0
      %v4062 = vpop.f32.mrf.mxu0
      %v4063 = vadd.f32 0.0, %v4062
      %v4064 = vpop.f32.mrf.mxu0
      %4065 = vdwg.mxu0
      %v4066 = vadd.f32 %v3851, %v3996
      %v4067 = vadd.f32 %v3852, %v3999
      %v4068 = vadd.f32 %v3853, %v4004
      %v4069 = vadd.f32 %v3854, %v4007
      %v4070 = vadd.f32 %v3855, %v4012
      %v4071 = vadd.f32 %v3856, %v4015
      %v4072 = vadd.f32 %v3857, %v4020
      %v4073 = vadd.f32 %v3858, %v4023
      %v4074 = vadd.f32 %v3859, %v4028
      %v4075 = vadd.f32 %v3860, %v4031
      %v4076 = vadd.f32 %v3861, %v4036
      %v4077 = vadd.f32 %v3862, %v4039
      %v4078 = vadd.f32 %v3863, %v4044
      %v4079 = vadd.f32 %v3864, %v4047
      %v4080 = vadd.f32 %v3865, %v4052
      %v4081 = vadd.f32 %v3866, %v4055
      %v4082 = vadd.f32 %v3867, %v4060
      %v4083 = vadd.f32 %v3868, %v4063
      %v4084 = vld [vmem:[#allocation2 + $0x25] sm:$0xff]
      %v4085 = vld [vmem:[#allocation2 + $0x2d] sm:$0xff]
      %v4086 = vld [vmem:[#allocation2 + $0x35] sm:$0xff]
      %v4087 = vld [vmem:[#allocation2 + $0x3d] sm:$0xff]
      %v4088 = vld [vmem:[#allocation2 + $0x45] sm:$0xff]
      %v4089 = vld [vmem:[#allocation2 + $0x4d] sm:$0xff]
      %v4090 = vld [vmem:[#allocation2 + $0x55] sm:$0xff]
      %v4091 = vld [vmem:[#allocation2 + $0x5d] sm:$0xff]
      %v4092 = vld [vmem:[#allocation2 + $0x65] sm:$0xff]
      %v4093 = vld [vmem:[#allocation2 + $0x6d] sm:$0xff]
      %v4094 = vld [vmem:[#allocation2 + $0x75] sm:$0xff]
      %v4095 = vld [vmem:[#allocation2 + $0x7d] sm:$0xff]
      %v4096 = vld [vmem:[#allocation2 + $0x85] sm:$0xff]
      %v4097 = vld [vmem:[#allocation2 + $0x8d] sm:$0xff]
      %v4098 = vld [vmem:[#allocation2 + $0x95] sm:$0xff]
      %v4099 = vld [vmem:[#allocation2 + $0x9d] sm:$0xff]
      %v4100 = vld [vmem:[#allocation2 + $0xa5] sm:$0xff]
      %v4101 = vld [vmem:[#allocation2 + $0xad] sm:$0xff]
      %v4102 = vpack.c.bf16 %v4085, %v4084
      %v4103 = vpack.c.bf16 %v4087, %v4086
      %v4104 = vpack.c.bf16 %v4089, %v4088
      %v4105 = vpack.c.bf16 %v4091, %v4090
      %v4106 = vpack.c.bf16 %v4093, %v4092
      %v4107 = vpack.c.bf16 %v4095, %v4094
      %v4108 = vpack.c.bf16 %v4097, %v4096
      %v4109 = vpack.c.bf16 %v4099, %v4098
      %v4110 = vpack.c.bf16 %v4101, %v4100
      %s4111 = scalar_lea.vmem %s2, 448
      %v4112 = vld [vmem:[%s4111] sm:$0xf]
      %v4113 = vld [vmem:[%s4111 + $0x4] sm:$0xf]
      %v4114 = vld [vmem:[%s4111 + $0x8] sm:$0xf]
      %v4115 = vld [vmem:[%s4111 + $0xc] sm:$0xf]
      %v4116 = vld [vmem:[%s4111 + $0x10] sm:$0xf]
      %v4117 = vld [vmem:[%s4111 + $0x14] sm:$0xf]
      %v4118 = vld [vmem:[%s4111 + $0x18] sm:$0xf]
      %v4119 = vld [vmem:[%s4111 + $0x1c] sm:$0xf]
      %v4120 = vld [vmem:[%s4111 + $0x20] sm:$0xf]
      %v4121 = vld [vmem:[%s4111 + $0x24] sm:$0xf]
      %v4122 = vld [vmem:[%s4111 + $0x28] sm:$0xf]
      %v4123 = vld [vmem:[%s4111 + $0x2c] sm:$0xf]
      %v4124 = vld [vmem:[%s4111 + $0x30] sm:$0xf]
      %v4125 = vld [vmem:[%s4111 + $0x34] sm:$0xf]
      %v4126 = vld [vmem:[%s4111 + $0x38] sm:$0xf]
      %v4127 = vld [vmem:[%s4111 + $0x3c] sm:$0xf]
      %v4144 = vunpack.c.l.b16 %v4112
      %v4145 = vunpack.c.l.b16 %v4113
      %v4146 = vunpack.c.l.b16 %v4114
      %v4147 = vunpack.c.l.b16 %v4115
      %v4148 = vunpack.c.l.b16 %v4116
      %v4149 = vunpack.c.l.b16 %v4117
      %v4150 = vunpack.c.l.b16 %v4118
      %v4151 = vunpack.c.l.b16 %v4119
      %v4152 = vunpack.c.l.b16 %v4120
      %v4153 = vunpack.c.l.b16 %v4121
      %v4154 = vunpack.c.l.b16 %v4122
      %v4155 = vunpack.c.l.b16 %v4123
      %v4156 = vunpack.c.l.b16 %v4124
      %v4157 = vunpack.c.l.b16 %v4125
      %v4158 = vunpack.c.l.b16 %v4126
      %v4159 = vunpack.c.l.b16 %v4127
      %v4160 = vpack.c.b16 %v4145, %v4144
      %v4161 = vpack.c.b16 %v4147, %v4146
      %v4162 = vpack.c.b16 %v4149, %v4148
      %v4163 = vpack.c.b16 %v4151, %v4150
      %v4164 = vpack.c.b16 %v4153, %v4152
      %v4165 = vpack.c.b16 %v4155, %v4154
      %v4166 = vpack.c.b16 %v4157, %v4156
      %v4167 = vpack.c.b16 %v4159, %v4158
      %4176 = vmatprep.subr.bf16.mxu0 0
      %4177 = vmatpush1.bf16.msra.mxu0 %v4167
      %4178 = vmatprep.subr.bf16.mxu0 0
      %4179 = vmatpush1.bf16.msra.mxu0 %v4166
      %4180 = vmatprep.subr.bf16.mxu0 0
      %4181 = vmatpush1.bf16.msra.mxu0 %v4165
      %4182 = vmatprep.subr.bf16.mxu0 0
      %4183 = vmatpush1.bf16.msra.mxu0 %v4164
      %4184 = vmatprep.subr.bf16.mxu0 0
      %4185 = vmatpush1.bf16.msra.mxu0 %v4163
      %4186 = vmatprep.subr.bf16.mxu0 0
      %4187 = vmatpush1.bf16.msra.mxu0 %v4162
      %4188 = vmatprep.subr.bf16.mxu0 0
      %4189 = vmatpush1.bf16.msra.mxu0 %v4161
      %4190 = vmatprep.subr.bf16.mxu0 0
      %4191 = vmatpush1.bf16.msra.mxu0 %v4160
      %4192 = vmatprep.subr.bf16.mxu0 0
      %4193 = vmatpush2.bf16.msra.mxu0 0
      %4194 = vmatprep.subr.bf16.mxu0 0
      %4195 = vmatpush2.bf16.msra.mxu0 0
      %4196 = vmatprep.subr.bf16.mxu0 0
      %4197 = vmatpush2.bf16.msra.mxu0 0
      %4198 = vmatprep.subr.bf16.mxu0 0
      %4199 = vmatpush2.bf16.msra.mxu0 0
      %4200 = vmatprep.subr.bf16.mxu0 0
      %4201 = vmatpush2.bf16.msra.mxu0 0
      %4202 = vmatprep.subr.bf16.mxu0 0
      %4203 = vmatpush2.bf16.msra.mxu0 0
      %4204 = vmatprep.subr.bf16.mxu0 0
      %4205 = vmatpush2.bf16.msra.mxu0 0
      %4206 = vmatprep.subr.bf16.mxu0 0
      %4207 = vmatpush2.bf16.msra.mxu0 0
      %4208 = vmatprep.mubr.bf16.mxu0 0
      %4209 = vmatmul.mubr.bf16.gmra.mxu0 %v4102
      %v4210 = vpop.f32.mrf.mxu0
      %v4211 = vadd.f32 0.0, %v4210
      %v4212 = vpop.f32.mrf.mxu0
      %v4213 = vpop.f32.mrf.mxu0
      %v4214 = vadd.f32 0.0, %v4213
      %v4215 = vpop.f32.mrf.mxu0
      %4216 = vmatprep.mubr.bf16.mxu0 0
      %4217 = vmatmul.mubr.bf16.gmra.mxu0 %v4103
      %v4218 = vpop.f32.mrf.mxu0
      %v4219 = vadd.f32 0.0, %v4218
      %v4220 = vpop.f32.mrf.mxu0
      %v4221 = vpop.f32.mrf.mxu0
      %v4222 = vadd.f32 0.0, %v4221
      %v4223 = vpop.f32.mrf.mxu0
      %4224 = vmatprep.mubr.bf16.mxu0 0
      %4225 = vmatmul.mubr.bf16.gmra.mxu0 %v4104
      %v4226 = vpop.f32.mrf.mxu0
      %v4227 = vadd.f32 0.0, %v4226
      %v4228 = vpop.f32.mrf.mxu0
      %v4229 = vpop.f32.mrf.mxu0
      %v4230 = vadd.f32 0.0, %v4229
      %v4231 = vpop.f32.mrf.mxu0
      %4232 = vmatprep.mubr.bf16.mxu0 0
      %4233 = vmatmul.mubr.bf16.gmra.mxu0 %v4105
      %v4234 = vpop.f32.mrf.mxu0
      %v4235 = vadd.f32 0.0, %v4234
      %v4236 = vpop.f32.mrf.mxu0
      %v4237 = vpop.f32.mrf.mxu0
      %v4238 = vadd.f32 0.0, %v4237
      %v4239 = vpop.f32.mrf.mxu0
      %4240 = vmatprep.mubr.bf16.mxu0 0
      %4241 = vmatmul.mubr.bf16.gmra.mxu0 %v4106
      %v4242 = vpop.f32.mrf.mxu0
      %v4243 = vadd.f32 0.0, %v4242
      %v4244 = vpop.f32.mrf.mxu0
      %v4245 = vpop.f32.mrf.mxu0
      %v4246 = vadd.f32 0.0, %v4245
      %v4247 = vpop.f32.mrf.mxu0
      %4248 = vmatprep.mubr.bf16.mxu0 0
      %4249 = vmatmul.mubr.bf16.gmra.mxu0 %v4107
      %v4250 = vpop.f32.mrf.mxu0
      %v4251 = vadd.f32 0.0, %v4250
      %v4252 = vpop.f32.mrf.mxu0
      %v4253 = vpop.f32.mrf.mxu0
      %v4254 = vadd.f32 0.0, %v4253
      %v4255 = vpop.f32.mrf.mxu0
      %4256 = vmatprep.mubr.bf16.mxu0 0
      %4257 = vmatmul.mubr.bf16.gmra.mxu0 %v4108
      %v4258 = vpop.f32.mrf.mxu0
      %v4259 = vadd.f32 0.0, %v4258
      %v4260 = vpop.f32.mrf.mxu0
      %v4261 = vpop.f32.mrf.mxu0
      %v4262 = vadd.f32 0.0, %v4261
      %v4263 = vpop.f32.mrf.mxu0
      %4264 = vmatprep.mubr.bf16.mxu0 0
      %4265 = vmatmul.mubr.bf16.gmra.mxu0 %v4109
      %v4266 = vpop.f32.mrf.mxu0
      %v4267 = vadd.f32 0.0, %v4266
      %v4268 = vpop.f32.mrf.mxu0
      %v4269 = vpop.f32.mrf.mxu0
      %v4270 = vadd.f32 0.0, %v4269
      %v4271 = vpop.f32.mrf.mxu0
      %4272 = vmatprep.mubr.bf16.mxu0 0
      %4273 = vmatmul.mubr.bf16.gmra.mxu0 %v4110
      %v4274 = vpop.f32.mrf.mxu0
      %v4275 = vadd.f32 0.0, %v4274
      %v4276 = vpop.f32.mrf.mxu0
      %v4277 = vpop.f32.mrf.mxu0
      %v4278 = vadd.f32 0.0, %v4277
      %v4279 = vpop.f32.mrf.mxu0
      %4280 = vdwg.mxu0
      %v4281 = vadd.f32 %v4066, %v4211
      %v4282 = vadd.f32 %v4067, %v4214
      %v4283 = vadd.f32 %v4068, %v4219
      %v4284 = vadd.f32 %v4069, %v4222
      %v4285 = vadd.f32 %v4070, %v4227
      %v4286 = vadd.f32 %v4071, %v4230
      %v4287 = vadd.f32 %v4072, %v4235
      %v4288 = vadd.f32 %v4073, %v4238
      %v4289 = vadd.f32 %v4074, %v4243
      %v4290 = vadd.f32 %v4075, %v4246
      %v4291 = vadd.f32 %v4076, %v4251
      %v4292 = vadd.f32 %v4077, %v4254
      %v4293 = vadd.f32 %v4078, %v4259
      %v4294 = vadd.f32 %v4079, %v4262
      %v4295 = vadd.f32 %v4080, %v4267
      %v4296 = vadd.f32 %v4081, %v4270
      %v4297 = vadd.f32 %v4082, %v4275
      %v4298 = vadd.f32 %v4083, %v4278
      %v4299 = vld [vmem:[#allocation2 + $0x26] sm:$0xff]
      %v4300 = vld [vmem:[#allocation2 + $0x2e] sm:$0xff]
      %v4301 = vld [vmem:[#allocation2 + $0x36] sm:$0xff]
      %v4302 = vld [vmem:[#allocation2 + $0x3e] sm:$0xff]
      %v4303 = vld [vmem:[#allocation2 + $0x46] sm:$0xff]
      %v4304 = vld [vmem:[#allocation2 + $0x4e] sm:$0xff]
      %v4305 = vld [vmem:[#allocation2 + $0x56] sm:$0xff]
      %v4306 = vld [vmem:[#allocation2 + $0x5e] sm:$0xff]
      %v4307 = vld [vmem:[#allocation2 + $0x66] sm:$0xff]
      %v4308 = vld [vmem:[#allocation2 + $0x6e] sm:$0xff]
      %v4309 = vld [vmem:[#allocation2 + $0x76] sm:$0xff]
      %v4310 = vld [vmem:[#allocation2 + $0x7e] sm:$0xff]
      %v4311 = vld [vmem:[#allocation2 + $0x86] sm:$0xff]
      %v4312 = vld [vmem:[#allocation2 + $0x8e] sm:$0xff]
      %v4313 = vld [vmem:[#allocation2 + $0x96] sm:$0xff]
      %v4314 = vld [vmem:[#allocation2 + $0x9e] sm:$0xff]
      %v4315 = vld [vmem:[#allocation2 + $0xa6] sm:$0xff]
      %v4316 = vld [vmem:[#allocation2 + $0xae] sm:$0xff]
      %v4317 = vpack.c.bf16 %v4300, %v4299
      %v4318 = vpack.c.bf16 %v4302, %v4301
      %v4319 = vpack.c.bf16 %v4304, %v4303
      %v4320 = vpack.c.bf16 %v4306, %v4305
      %v4321 = vpack.c.bf16 %v4308, %v4307
      %v4322 = vpack.c.bf16 %v4310, %v4309
      %v4323 = vpack.c.bf16 %v4312, %v4311
      %v4324 = vpack.c.bf16 %v4314, %v4313
      %v4325 = vpack.c.bf16 %v4316, %v4315
      %s4326 = scalar_lea.vmem %s2, 512
      %v4327 = vld [vmem:[%s4326] sm:$0xf]
      %v4328 = vld [vmem:[%s4326 + $0x4] sm:$0xf]
      %v4329 = vld [vmem:[%s4326 + $0x8] sm:$0xf]
      %v4330 = vld [vmem:[%s4326 + $0xc] sm:$0xf]
      %v4331 = vld [vmem:[%s4326 + $0x10] sm:$0xf]
      %v4332 = vld [vmem:[%s4326 + $0x14] sm:$0xf]
      %v4333 = vld [vmem:[%s4326 + $0x18] sm:$0xf]
      %v4334 = vld [vmem:[%s4326 + $0x1c] sm:$0xf]
      %v4335 = vld [vmem:[%s4326 + $0x20] sm:$0xf]
      %v4336 = vld [vmem:[%s4326 + $0x24] sm:$0xf]
      %v4337 = vld [vmem:[%s4326 + $0x28] sm:$0xf]
      %v4338 = vld [vmem:[%s4326 + $0x2c] sm:$0xf]
      %v4339 = vld [vmem:[%s4326 + $0x30] sm:$0xf]
      %v4340 = vld [vmem:[%s4326 + $0x34] sm:$0xf]
      %v4341 = vld [vmem:[%s4326 + $0x38] sm:$0xf]
      %v4342 = vld [vmem:[%s4326 + $0x3c] sm:$0xf]
      %v4359 = vunpack.c.l.b16 %v4327
      %v4360 = vunpack.c.l.b16 %v4328
      %v4361 = vunpack.c.l.b16 %v4329
      %v4362 = vunpack.c.l.b16 %v4330
      %v4363 = vunpack.c.l.b16 %v4331
      %v4364 = vunpack.c.l.b16 %v4332
      %v4365 = vunpack.c.l.b16 %v4333
      %v4366 = vunpack.c.l.b16 %v4334
      %v4367 = vunpack.c.l.b16 %v4335
      %v4368 = vunpack.c.l.b16 %v4336
      %v4369 = vunpack.c.l.b16 %v4337
      %v4370 = vunpack.c.l.b16 %v4338
      %v4371 = vunpack.c.l.b16 %v4339
      %v4372 = vunpack.c.l.b16 %v4340
      %v4373 = vunpack.c.l.b16 %v4341
      %v4374 = vunpack.c.l.b16 %v4342
      %v4375 = vpack.c.b16 %v4360, %v4359
      %v4376 = vpack.c.b16 %v4362, %v4361
      %v4377 = vpack.c.b16 %v4364, %v4363
      %v4378 = vpack.c.b16 %v4366, %v4365
      %v4379 = vpack.c.b16 %v4368, %v4367
      %v4380 = vpack.c.b16 %v4370, %v4369
      %v4381 = vpack.c.b16 %v4372, %v4371
      %v4382 = vpack.c.b16 %v4374, %v4373
      %4391 = vmatprep.subr.bf16.mxu0 0
      %4392 = vmatpush1.bf16.msra.mxu0 %v4382
      %4393 = vmatprep.subr.bf16.mxu0 0
      %4394 = vmatpush1.bf16.msra.mxu0 %v4381
      %4395 = vmatprep.subr.bf16.mxu0 0
      %4396 = vmatpush1.bf16.msra.mxu0 %v4380
      %4397 = vmatprep.subr.bf16.mxu0 0
      %4398 = vmatpush1.bf16.msra.mxu0 %v4379
      %4399 = vmatprep.subr.bf16.mxu0 0
      %4400 = vmatpush1.bf16.msra.mxu0 %v4378
      %4401 = vmatprep.subr.bf16.mxu0 0
      %4402 = vmatpush1.bf16.msra.mxu0 %v4377
      %4403 = vmatprep.subr.bf16.mxu0 0
      %4404 = vmatpush1.bf16.msra.mxu0 %v4376
      %4405 = vmatprep.subr.bf16.mxu0 0
      %4406 = vmatpush1.bf16.msra.mxu0 %v4375
      %4407 = vmatprep.subr.bf16.mxu0 0
      %4408 = vmatpush2.bf16.msra.mxu0 0
      %4409 = vmatprep.subr.bf16.mxu0 0
      %4410 = vmatpush2.bf16.msra.mxu0 0
      %4411 = vmatprep.subr.bf16.mxu0 0
      %4412 = vmatpush2.bf16.msra.mxu0 0
      %4413 = vmatprep.subr.bf16.mxu0 0
      %4414 = vmatpush2.bf16.msra.mxu0 0
      %4415 = vmatprep.subr.bf16.mxu0 0
      %4416 = vmatpush2.bf16.msra.mxu0 0
      %4417 = vmatprep.subr.bf16.mxu0 0
      %4418 = vmatpush2.bf16.msra.mxu0 0
      %4419 = vmatprep.subr.bf16.mxu0 0
      %4420 = vmatpush2.bf16.msra.mxu0 0
      %4421 = vmatprep.subr.bf16.mxu0 0
      %4422 = vmatpush2.bf16.msra.mxu0 0
      %4423 = vmatprep.mubr.bf16.mxu0 0
      %4424 = vmatmul.mubr.bf16.gmra.mxu0 %v4317
      %v4425 = vpop.f32.mrf.mxu0
      %v4426 = vadd.f32 0.0, %v4425
      %v4427 = vpop.f32.mrf.mxu0
      %v4428 = vpop.f32.mrf.mxu0
      %v4429 = vadd.f32 0.0, %v4428
      %v4430 = vpop.f32.mrf.mxu0
      %4431 = vmatprep.mubr.bf16.mxu0 0
      %4432 = vmatmul.mubr.bf16.gmra.mxu0 %v4318
      %v4433 = vpop.f32.mrf.mxu0
      %v4434 = vadd.f32 0.0, %v4433
      %v4435 = vpop.f32.mrf.mxu0
      %v4436 = vpop.f32.mrf.mxu0
      %v4437 = vadd.f32 0.0, %v4436
      %v4438 = vpop.f32.mrf.mxu0
      %4439 = vmatprep.mubr.bf16.mxu0 0
      %4440 = vmatmul.mubr.bf16.gmra.mxu0 %v4319
      %v4441 = vpop.f32.mrf.mxu0
      %v4442 = vadd.f32 0.0, %v4441
      %v4443 = vpop.f32.mrf.mxu0
      %v4444 = vpop.f32.mrf.mxu0
      %v4445 = vadd.f32 0.0, %v4444
      %v4446 = vpop.f32.mrf.mxu0
      %4447 = vmatprep.mubr.bf16.mxu0 0
      %4448 = vmatmul.mubr.bf16.gmra.mxu0 %v4320
      %v4449 = vpop.f32.mrf.mxu0
      %v4450 = vadd.f32 0.0, %v4449
      %v4451 = vpop.f32.mrf.mxu0
      %v4452 = vpop.f32.mrf.mxu0
      %v4453 = vadd.f32 0.0, %v4452
      %v4454 = vpop.f32.mrf.mxu0
      %4455 = vmatprep.mubr.bf16.mxu0 0
      %4456 = vmatmul.mubr.bf16.gmra.mxu0 %v4321
      %v4457 = vpop.f32.mrf.mxu0
      %v4458 = vadd.f32 0.0, %v4457
      %v4459 = vpop.f32.mrf.mxu0
      %v4460 = vpop.f32.mrf.mxu0
      %v4461 = vadd.f32 0.0, %v4460
      %v4462 = vpop.f32.mrf.mxu0
      %4463 = vmatprep.mubr.bf16.mxu0 0
      %4464 = vmatmul.mubr.bf16.gmra.mxu0 %v4322
      %v4465 = vpop.f32.mrf.mxu0
      %v4466 = vadd.f32 0.0, %v4465
      %v4467 = vpop.f32.mrf.mxu0
      %v4468 = vpop.f32.mrf.mxu0
      %v4469 = vadd.f32 0.0, %v4468
      %v4470 = vpop.f32.mrf.mxu0
      %4471 = vmatprep.mubr.bf16.mxu0 0
      %4472 = vmatmul.mubr.bf16.gmra.mxu0 %v4323
      %v4473 = vpop.f32.mrf.mxu0
      %v4474 = vadd.f32 0.0, %v4473
      %v4475 = vpop.f32.mrf.mxu0
      %v4476 = vpop.f32.mrf.mxu0
      %v4477 = vadd.f32 0.0, %v4476
      %v4478 = vpop.f32.mrf.mxu0
      %4479 = vmatprep.mubr.bf16.mxu0 0
      %4480 = vmatmul.mubr.bf16.gmra.mxu0 %v4324
      %v4481 = vpop.f32.mrf.mxu0
      %v4482 = vadd.f32 0.0, %v4481
      %v4483 = vpop.f32.mrf.mxu0
      %v4484 = vpop.f32.mrf.mxu0
      %v4485 = vadd.f32 0.0, %v4484
      %v4486 = vpop.f32.mrf.mxu0
      %4487 = vmatprep.mubr.bf16.mxu0 0
      %4488 = vmatmul.mubr.bf16.gmra.mxu0 %v4325
      %v4489 = vpop.f32.mrf.mxu0
      %v4490 = vadd.f32 0.0, %v4489
      %v4491 = vpop.f32.mrf.mxu0
      %v4492 = vpop.f32.mrf.mxu0
      %v4493 = vadd.f32 0.0, %v4492
      %v4494 = vpop.f32.mrf.mxu0
      %4495 = vdwg.mxu0
      %v4496 = vadd.f32 %v4281, %v4426
      %v4497 = vadd.f32 %v4282, %v4429
      %v4498 = vadd.f32 %v4283, %v4434
      %v4499 = vadd.f32 %v4284, %v4437
      %v4500 = vadd.f32 %v4285, %v4442
      %v4501 = vadd.f32 %v4286, %v4445
      %v4502 = vadd.f32 %v4287, %v4450
      %v4503 = vadd.f32 %v4288, %v4453
      %v4504 = vadd.f32 %v4289, %v4458
      %v4505 = vadd.f32 %v4290, %v4461
      %v4506 = vadd.f32 %v4291, %v4466
      %v4507 = vadd.f32 %v4292, %v4469
      %v4508 = vadd.f32 %v4293, %v4474
      %v4509 = vadd.f32 %v4294, %v4477
      %v4510 = vadd.f32 %v4295, %v4482
      %v4511 = vadd.f32 %v4296, %v4485
      %v4512 = vadd.f32 %v4297, %v4490
      %v4513 = vadd.f32 %v4298, %v4493
      %s4514 = scalar_lea.vmem %s3, 2
      %v4515 = vld [vmem:[%s4514] sm:$0x1]
      %v4516 = vld [vmem:[%s4514 + $0x1] sm:$0x1]
      %v4517 = vlaneseq
      %v4518 = vshrl.u32 %v4517, 7
      %v4519 = vsub.s32 0, %v4518
      %v4520 = vrot.slane %v4515, %v4519
      %v4521 = vmul.f32 %v4496, %v4520
      %v4522 = vmul.f32 %v4497, %v4520
      %v4523 = vmul.f32 %v4498, %v4520
      %v4524 = vmul.f32 %v4499, %v4520
      %v4525 = vmul.f32 %v4500, %v4520
      %v4526 = vmul.f32 %v4501, %v4520
      %v4527 = vmul.f32 %v4502, %v4520
      %v4528 = vmul.f32 %v4503, %v4520
      %v4529 = vmul.f32 %v4504, %v4520
      %v4530 = vmul.f32 %v4505, %v4520
      %v4531 = vmul.f32 %v4506, %v4520
      %v4532 = vmul.f32 %v4507, %v4520
      %v4533 = vmul.f32 %v4508, %v4520
      %v4534 = vmul.f32 %v4509, %v4520
      %v4535 = vmul.f32 %v4510, %v4520
      %v4536 = vmul.f32 %v4511, %v4520
      %v4537 = vmul.f32 %v4512, %v4520
      %v4538 = vmul.f32 %v4513, %v4520
      %v4539 = vlaneseq
      %v4540 = vshrl.u32 %v4539, 7
      %v4541 = vsub.s32 0, %v4540
      %v4542 = vrot.slane %v4516, %v4541
      %v4543 = vadd.f32 %v4521, %v4542
      %v4544 = vadd.f32 %v4522, %v4542
      %v4545 = vadd.f32 %v4523, %v4542
      %v4546 = vadd.f32 %v4524, %v4542
      %v4547 = vadd.f32 %v4525, %v4542
      %v4548 = vadd.f32 %v4526, %v4542
      %v4549 = vadd.f32 %v4527, %v4542
      %v4550 = vadd.f32 %v4528, %v4542
      %v4551 = vadd.f32 %v4529, %v4542
      %v4552 = vadd.f32 %v4530, %v4542
      %v4553 = vadd.f32 %v4531, %v4542
      %v4554 = vadd.f32 %v4532, %v4542
      %v4555 = vadd.f32 %v4533, %v4542
      %v4556 = vadd.f32 %v4534, %v4542
      %v4557 = vadd.f32 %v4535, %v4542
      %v4558 = vadd.f32 %v4536, %v4542
      %v4559 = vadd.f32 %v4537, %v4542
      %v4560 = vadd.f32 %v4538, %v4542
      %vm4561 = vcmp.ge.f32.partialorder %v4543, 0.0
      %vm4562 = vcmp.ge.f32.partialorder %v4544, 0.0
      %vm4563 = vcmp.ge.f32.partialorder %v4545, 0.0
      %vm4564 = vcmp.ge.f32.partialorder %v4546, 0.0
      %vm4565 = vcmp.ge.f32.partialorder %v4547, 0.0
      %vm4566 = vcmp.ge.f32.partialorder %v4548, 0.0
      %vm4567 = vcmp.ge.f32.partialorder %v4549, 0.0
      %vm4568 = vcmp.ge.f32.partialorder %v4550, 0.0
      %vm4569 = vcmp.ge.f32.partialorder %v4551, 0.0
      %vm4570 = vcmp.ge.f32.partialorder %v4552, 0.0
      %vm4571 = vcmp.ge.f32.partialorder %v4553, 0.0
      %vm4572 = vcmp.ge.f32.partialorder %v4554, 0.0
      %vm4573 = vcmp.ge.f32.partialorder %v4555, 0.0
      %vm4574 = vcmp.ge.f32.partialorder %v4556, 0.0
      %vm4575 = vcmp.ge.f32.partialorder %v4557, 0.0
      %vm4576 = vcmp.ge.f32.partialorder %v4558, 0.0
      %vm4577 = vcmp.ge.f32.partialorder %v4559, 0.0
      %vm4578 = vcmp.ge.f32.partialorder %v4560, 0.0
      %v4579 = vmul.f32 %v4543, 0.005
      %v4580 = vmul.f32 %v4544, 0.005
      %v4581 = vmul.f32 %v4545, 0.005
      %v4582 = vmul.f32 %v4546, 0.005
      %v4583 = vmul.f32 %v4547, 0.005
      %v4584 = vmul.f32 %v4548, 0.005
      %v4585 = vmul.f32 %v4549, 0.005
      %v4586 = vmul.f32 %v4550, 0.005
      %v4587 = vmul.f32 %v4551, 0.005
      %v4588 = vmul.f32 %v4552, 0.005
      %v4589 = vmul.f32 %v4553, 0.005
      %v4590 = vmul.f32 %v4554, 0.005
      %v4591 = vmul.f32 %v4555, 0.005
      %v4592 = vmul.f32 %v4556, 0.005
      %v4593 = vmul.f32 %v4557, 0.005
      %v4594 = vmul.f32 %v4558, 0.005
      %v4595 = vmul.f32 %v4559, 0.005
      %v4596 = vmul.f32 %v4560, 0.005
      %v4597 = vsel %vm4561, %v4543, %v4579
      %v4598 = vsel %vm4562, %v4544, %v4580
      %v4599 = vsel %vm4563, %v4545, %v4581
      %v4600 = vsel %vm4564, %v4546, %v4582
      %v4601 = vsel %vm4565, %v4547, %v4583
      %v4602 = vsel %vm4566, %v4548, %v4584
      %v4603 = vsel %vm4567, %v4549, %v4585
      %v4604 = vsel %vm4568, %v4550, %v4586
      %v4605 = vsel %vm4569, %v4551, %v4587
      %v4606 = vsel %vm4570, %v4552, %v4588
      %v4607 = vsel %vm4571, %v4553, %v4589
      %v4608 = vsel %vm4572, %v4554, %v4590
      %v4609 = vsel %vm4573, %v4555, %v4591
      %v4610 = vsel %vm4574, %v4556, %v4592
      %v4611 = vsel %vm4575, %v4557, %v4593
      %v4612 = vsel %vm4576, %v4558, %v4594
      %v4613 = vsel %vm4577, %v4559, %v4595
      %v4614 = vsel %vm4578, %v4560, %v4596
      %4615 = vst [vmem:[%s286] sm:$0xff] %v4597
      %4616 = vst [vmem:[%s286 + $0x8] sm:$0xff] %v4598
      %s4617 = scalar_lea.vmem %s286, 16
      %4618 = vst [vmem:[%s4617 - $0x2] sm:$0xfc] %v4599
      %4619 = vst [vmem:[%s4617 + $0x6] sm:$0xff] %v4600
      %4620 = vst [vmem:[%s4617 + $0xe] sm:$0x3] %v4601
      %s4621 = scalar_lea.vmem %s286, 32
      %4622 = vst [vmem:[%s4621 - $0x4] sm:$0xf0] %v4601
      %4623 = vst [vmem:[%s4621 + $0x4] sm:$0xff] %v4602
      %4624 = vst [vmem:[%s4621 + $0xc] sm:$0xf] %v4603
      %s4625 = scalar_lea.vmem %s286, 48
      %4626 = vst [vmem:[%s4625 - $0x6] sm:$0xc0] %v4603
      %4627 = vst [vmem:[%s4625 + $0x2] sm:$0xff] %v4604
      %4628 = vst [vmem:[%s4625 + $0xa] sm:$0x3f] %v4605
      %s4629 = scalar_lea.vmem %s286, 64
      %4630 = vst [vmem:[%s4629] sm:$0xff] %v4606
      %4631 = vst [vmem:[%s4629 + $0x8] sm:$0xff] %v4607
      %s4632 = scalar_lea.vmem %s286, 80
      %4633 = vst [vmem:[%s4632 - $0x2] sm:$0xfc] %v4608
      %4634 = vst [vmem:[%s4632 + $0x6] sm:$0xff] %v4609
      %4635 = vst [vmem:[%s4632 + $0xe] sm:$0x3] %v4610
      %s4636 = scalar_lea.vmem %s286, 96
      %4637 = vst [vmem:[%s4636 - $0x4] sm:$0xf0] %v4610
      %4638 = vst [vmem:[%s4636 + $0x4] sm:$0xff] %v4611
      %4639 = vst [vmem:[%s4636 + $0xc] sm:$0xf] %v4612
      %s4640 = scalar_lea.vmem %s286, 112
      %4641 = vst [vmem:[%s4640 - $0x6] sm:$0xc0] %v4612
      %4642 = vst [vmem:[%s4640 + $0x2] sm:$0xff] %v4613
      %4643 = vst [vmem:[%s4640 + $0xa] sm:$0x3f] %v4614
      %v4644 = vpack.c.bf16 %v4598, %v4597
      %v4645 = vpack.c.bf16 %v4600, %v4599
      %v4646 = vpack.c.bf16 %v4602, %v4601
      %v4647 = vpack.c.bf16 %v4604, %v4603
      %v4648 = vpack.c.bf16 %v4606, %v4605
      %v4649 = vpack.c.bf16 %v4608, %v4607
      %v4650 = vpack.c.bf16 %v4610, %v4609
      %v4651 = vpack.c.bf16 %v4612, %v4611
      %v4652 = vpack.c.bf16 %v4614, %v4613
      %v4653 = vld [vmem:[%s4] sm:$0xf]
      %v4654 = vld [vmem:[%s4 + $0x4] sm:$0xf]
      %v4655 = vld [vmem:[%s4 + $0x8] sm:$0xf]
      %v4656 = vld [vmem:[%s4 + $0xc] sm:$0xf]
      %v4657 = vld [vmem:[%s4 + $0x10] sm:$0xf]
      %v4658 = vld [vmem:[%s4 + $0x14] sm:$0xf]
      %v4659 = vld [vmem:[%s4 + $0x18] sm:$0xf]
      %v4660 = vld [vmem:[%s4 + $0x1c] sm:$0xf]
      %v4661 = vld [vmem:[%s4 + $0x20] sm:$0xf]
      %v4662 = vld [vmem:[%s4 + $0x24] sm:$0xf]
      %v4663 = vld [vmem:[%s4 + $0x28] sm:$0xf]
      %v4664 = vld [vmem:[%s4 + $0x2c] sm:$0xf]
      %v4665 = vld [vmem:[%s4 + $0x30] sm:$0xf]
      %v4666 = vld [vmem:[%s4 + $0x34] sm:$0xf]
      %v4667 = vld [vmem:[%s4 + $0x38] sm:$0xf]
      %v4668 = vld [vmem:[%s4 + $0x3c] sm:$0xf]
      %v4685 = vunpack.c.l.b16 %v4653
      %v4686 = vunpack.c.l.b16 %v4654
      %v4687 = vunpack.c.l.b16 %v4655
      %v4688 = vunpack.c.l.b16 %v4656
      %v4689 = vunpack.c.l.b16 %v4657
      %v4690 = vunpack.c.l.b16 %v4658
      %v4691 = vunpack.c.l.b16 %v4659
      %v4692 = vunpack.c.l.b16 %v4660
      %v4693 = vunpack.c.l.b16 %v4661
      %v4694 = vunpack.c.l.b16 %v4662
      %v4695 = vunpack.c.l.b16 %v4663
      %v4696 = vunpack.c.l.b16 %v4664
      %v4697 = vunpack.c.l.b16 %v4665
      %v4698 = vunpack.c.l.b16 %v4666
      %v4699 = vunpack.c.l.b16 %v4667
      %v4700 = vunpack.c.l.b16 %v4668
      %v4701 = vpack.c.b16 %v4686, %v4685
      %v4702 = vpack.c.b16 %v4688, %v4687
      %v4703 = vpack.c.b16 %v4690, %v4689
      %v4704 = vpack.c.b16 %v4692, %v4691
      %v4705 = vpack.c.b16 %v4694, %v4693
      %v4706 = vpack.c.b16 %v4696, %v4695
      %v4707 = vpack.c.b16 %v4698, %v4697
      %v4708 = vpack.c.b16 %v4700, %v4699
      %4717 = vmatprep.subr.bf16.mxu0 0
      %4718 = vmatpush1.bf16.msra.mxu0 %v4708
      %4719 = vmatprep.subr.bf16.mxu0 0
      %4720 = vmatpush1.bf16.msra.mxu0 %v4707
      %4721 = vmatprep.subr.bf16.mxu0 0
      %4722 = vmatpush1.bf16.msra.mxu0 %v4706
      %4723 = vmatprep.subr.bf16.mxu0 0
      %4724 = vmatpush1.bf16.msra.mxu0 %v4705
      %4725 = vmatprep.subr.bf16.mxu0 0
      %4726 = vmatpush1.bf16.msra.mxu0 %v4704
      %4727 = vmatprep.subr.bf16.mxu0 0
      %4728 = vmatpush1.bf16.msra.mxu0 %v4703
      %4729 = vmatprep.subr.bf16.mxu0 0
      %4730 = vmatpush1.bf16.msra.mxu0 %v4702
      %4731 = vmatprep.subr.bf16.mxu0 0
      %4732 = vmatpush1.bf16.msra.mxu0 %v4701
      %4733 = vmatprep.subr.bf16.mxu0 0
      %4734 = vmatpush2.bf16.msra.mxu0 0
      %4735 = vmatprep.subr.bf16.mxu0 0
      %4736 = vmatpush2.bf16.msra.mxu0 0
      %4737 = vmatprep.subr.bf16.mxu0 0
      %4738 = vmatpush2.bf16.msra.mxu0 0
      %4739 = vmatprep.subr.bf16.mxu0 0
      %4740 = vmatpush2.bf16.msra.mxu0 0
      %4741 = vmatprep.subr.bf16.mxu0 0
      %4742 = vmatpush2.bf16.msra.mxu0 0
      %4743 = vmatprep.subr.bf16.mxu0 0
      %4744 = vmatpush2.bf16.msra.mxu0 0
      %4745 = vmatprep.subr.bf16.mxu0 0
      %4746 = vmatpush2.bf16.msra.mxu0 0
      %4747 = vmatprep.subr.bf16.mxu0 0
      %4748 = vmatpush2.bf16.msra.mxu0 0
      %4749 = vmatprep.mubr.bf16.mxu0 0
      %4750 = vmatmul.mubr.bf16.gmra.mxu0 %v4644
      %v4751 = vpop.f32.mrf.mxu0
      %v4752 = vadd.f32 0.0, %v4751
      %v4753 = vpop.f32.mrf.mxu0
      %v4754 = vpop.f32.mrf.mxu0
      %v4755 = vadd.f32 0.0, %v4754
      %v4756 = vpop.f32.mrf.mxu0
      %4757 = vmatprep.mubr.bf16.mxu0 0
      %4758 = vmatmul.mubr.bf16.gmra.mxu0 %v4645
      %v4759 = vpop.f32.mrf.mxu0
      %v4760 = vadd.f32 0.0, %v4759
      %v4761 = vpop.f32.mrf.mxu0
      %v4762 = vpop.f32.mrf.mxu0
      %v4763 = vadd.f32 0.0, %v4762
      %v4764 = vpop.f32.mrf.mxu0
      %4765 = vmatprep.mubr.bf16.mxu0 0
      %4766 = vmatmul.mubr.bf16.gmra.mxu0 %v4646
      %v4767 = vpop.f32.mrf.mxu0
      %v4768 = vadd.f32 0.0, %v4767
      %v4769 = vpop.f32.mrf.mxu0
      %v4770 = vpop.f32.mrf.mxu0
      %v4771 = vadd.f32 0.0, %v4770
      %v4772 = vpop.f32.mrf.mxu0
      %4773 = vmatprep.mubr.bf16.mxu0 0
      %4774 = vmatmul.mubr.bf16.gmra.mxu0 %v4647
      %v4775 = vpop.f32.mrf.mxu0
      %v4776 = vadd.f32 0.0, %v4775
      %v4777 = vpop.f32.mrf.mxu0
      %v4778 = vpop.f32.mrf.mxu0
      %v4779 = vadd.f32 0.0, %v4778
      %v4780 = vpop.f32.mrf.mxu0
      %4781 = vmatprep.mubr.bf16.mxu0 0
      %4782 = vmatmul.mubr.bf16.gmra.mxu0 %v4648
      %v4783 = vpop.f32.mrf.mxu0
      %v4784 = vadd.f32 0.0, %v4783
      %v4785 = vpop.f32.mrf.mxu0
      %v4786 = vpop.f32.mrf.mxu0
      %v4787 = vadd.f32 0.0, %v4786
      %v4788 = vpop.f32.mrf.mxu0
      %4789 = vmatprep.mubr.bf16.mxu0 0
      %4790 = vmatmul.mubr.bf16.gmra.mxu0 %v4649
      %v4791 = vpop.f32.mrf.mxu0
      %v4792 = vadd.f32 0.0, %v4791
      %v4793 = vpop.f32.mrf.mxu0
      %v4794 = vpop.f32.mrf.mxu0
      %v4795 = vadd.f32 0.0, %v4794
      %v4796 = vpop.f32.mrf.mxu0
      %4797 = vmatprep.mubr.bf16.mxu0 0
      %4798 = vmatmul.mubr.bf16.gmra.mxu0 %v4650
      %v4799 = vpop.f32.mrf.mxu0
      %v4800 = vadd.f32 0.0, %v4799
      %v4801 = vpop.f32.mrf.mxu0
      %v4802 = vpop.f32.mrf.mxu0
      %v4803 = vadd.f32 0.0, %v4802
      %v4804 = vpop.f32.mrf.mxu0
      %4805 = vmatprep.mubr.bf16.mxu0 0
      %4806 = vmatmul.mubr.bf16.gmra.mxu0 %v4651
      %v4807 = vpop.f32.mrf.mxu0
      %v4808 = vadd.f32 0.0, %v4807
      %v4809 = vpop.f32.mrf.mxu0
      %v4810 = vpop.f32.mrf.mxu0
      %v4811 = vadd.f32 0.0, %v4810
      %v4812 = vpop.f32.mrf.mxu0
      %4813 = vmatprep.mubr.bf16.mxu0 0
      %4814 = vmatmul.mubr.bf16.gmra.mxu0 %v4652
      %v4815 = vpop.f32.mrf.mxu0
      %v4816 = vadd.f32 0.0, %v4815
      %v4817 = vpop.f32.mrf.mxu0
      %v4818 = vpop.f32.mrf.mxu0
      %v4819 = vadd.f32 0.0, %v4818
      %v4820 = vpop.f32.mrf.mxu0
      %4821 = vdwg.mxu0
      %s4822 = scalar_lea.vmem %s4, 64
      %v4823 = vld [vmem:[%s4822] sm:$0xf]
      %v4824 = vld [vmem:[%s4822 + $0x4] sm:$0xf]
      %v4825 = vld [vmem:[%s4822 + $0x8] sm:$0xf]
      %v4826 = vld [vmem:[%s4822 + $0xc] sm:$0xf]
      %v4827 = vld [vmem:[%s4822 + $0x10] sm:$0xf]
      %v4828 = vld [vmem:[%s4822 + $0x14] sm:$0xf]
      %v4829 = vld [vmem:[%s4822 + $0x18] sm:$0xf]
      %v4830 = vld [vmem:[%s4822 + $0x1c] sm:$0xf]
      %v4831 = vld [vmem:[%s4822 + $0x20] sm:$0xf]
      %v4832 = vld [vmem:[%s4822 + $0x24] sm:$0xf]
      %v4833 = vld [vmem:[%s4822 + $0x28] sm:$0xf]
      %v4834 = vld [vmem:[%s4822 + $0x2c] sm:$0xf]
      %v4835 = vld [vmem:[%s4822 + $0x30] sm:$0xf]
      %v4836 = vld [vmem:[%s4822 + $0x34] sm:$0xf]
      %v4837 = vld [vmem:[%s4822 + $0x38] sm:$0xf]
      %v4838 = vld [vmem:[%s4822 + $0x3c] sm:$0xf]
      %v4855 = vunpack.c.l.b16 %v4823
      %v4856 = vunpack.c.l.b16 %v4824
      %v4857 = vunpack.c.l.b16 %v4825
      %v4858 = vunpack.c.l.b16 %v4826
      %v4859 = vunpack.c.l.b16 %v4827
      %v4860 = vunpack.c.l.b16 %v4828
      %v4861 = vunpack.c.l.b16 %v4829
      %v4862 = vunpack.c.l.b16 %v4830
      %v4863 = vunpack.c.l.b16 %v4831
      %v4864 = vunpack.c.l.b16 %v4832
      %v4865 = vunpack.c.l.b16 %v4833
      %v4866 = vunpack.c.l.b16 %v4834
      %v4867 = vunpack.c.l.b16 %v4835
      %v4868 = vunpack.c.l.b16 %v4836
      %v4869 = vunpack.c.l.b16 %v4837
      %v4870 = vunpack.c.l.b16 %v4838
      %v4871 = vpack.c.b16 %v4856, %v4855
      %v4872 = vpack.c.b16 %v4858, %v4857
      %v4873 = vpack.c.b16 %v4860, %v4859
      %v4874 = vpack.c.b16 %v4862, %v4861
      %v4875 = vpack.c.b16 %v4864, %v4863
      %v4876 = vpack.c.b16 %v4866, %v4865
      %v4877 = vpack.c.b16 %v4868, %v4867
      %v4878 = vpack.c.b16 %v4870, %v4869
      %4887 = vmatprep.subr.bf16.mxu0 0
      %4888 = vmatpush1.bf16.msra.mxu0 %v4878
      %4889 = vmatprep.subr.bf16.mxu0 0
      %4890 = vmatpush1.bf16.msra.mxu0 %v4877
      %4891 = vmatprep.subr.bf16.mxu0 0
      %4892 = vmatpush1.bf16.msra.mxu0 %v4876
      %4893 = vmatprep.subr.bf16.mxu0 0
      %4894 = vmatpush1.bf16.msra.mxu0 %v4875
      %4895 = vmatprep.subr.bf16.mxu0 0
      %4896 = vmatpush1.bf16.msra.mxu0 %v4874
      %4897 = vmatprep.subr.bf16.mxu0 0
      %4898 = vmatpush1.bf16.msra.mxu0 %v4873
      %4899 = vmatprep.subr.bf16.mxu0 0
      %4900 = vmatpush1.bf16.msra.mxu0 %v4872
      %4901 = vmatprep.subr.bf16.mxu0 0
      %4902 = vmatpush1.bf16.msra.mxu0 %v4871
      %4903 = vmatprep.subr.bf16.mxu0 0
      %4904 = vmatpush2.bf16.msra.mxu0 0
      %4905 = vmatprep.subr.bf16.mxu0 0
      %4906 = vmatpush2.bf16.msra.mxu0 0
      %4907 = vmatprep.subr.bf16.mxu0 0
      %4908 = vmatpush2.bf16.msra.mxu0 0
      %4909 = vmatprep.subr.bf16.mxu0 0
      %4910 = vmatpush2.bf16.msra.mxu0 0
      %4911 = vmatprep.subr.bf16.mxu0 0
      %4912 = vmatpush2.bf16.msra.mxu0 0
      %4913 = vmatprep.subr.bf16.mxu0 0
      %4914 = vmatpush2.bf16.msra.mxu0 0
      %4915 = vmatprep.subr.bf16.mxu0 0
      %4916 = vmatpush2.bf16.msra.mxu0 0
      %4917 = vmatprep.subr.bf16.mxu0 0
      %4918 = vmatpush2.bf16.msra.mxu0 0
      %4919 = vmatprep.mubr.bf16.mxu0 0
      %4920 = vmatmul.mubr.bf16.gmra.mxu0 %v4644
      %v4921 = vpop.f32.mrf.mxu0
      %v4922 = vadd.f32 0.0, %v4921
      %v4923 = vpop.f32.mrf.mxu0
      %v4924 = vpop.f32.mrf.mxu0
      %v4925 = vadd.f32 0.0, %v4924
      %v4926 = vpop.f32.mrf.mxu0
      %4927 = vmatprep.mubr.bf16.mxu0 0
      %4928 = vmatmul.mubr.bf16.gmra.mxu0 %v4645
      %v4929 = vpop.f32.mrf.mxu0
      %v4930 = vadd.f32 0.0, %v4929
      %v4931 = vpop.f32.mrf.mxu0
      %v4932 = vpop.f32.mrf.mxu0
      %v4933 = vadd.f32 0.0, %v4932
      %v4934 = vpop.f32.mrf.mxu0
      %4935 = vmatprep.mubr.bf16.mxu0 0
      %4936 = vmatmul.mubr.bf16.gmra.mxu0 %v4646
      %v4937 = vpop.f32.mrf.mxu0
      %v4938 = vadd.f32 0.0, %v4937
      %v4939 = vpop.f32.mrf.mxu0
      %v4940 = vpop.f32.mrf.mxu0
      %v4941 = vadd.f32 0.0, %v4940
      %v4942 = vpop.f32.mrf.mxu0
      %4943 = vmatprep.mubr.bf16.mxu0 0
      %4944 = vmatmul.mubr.bf16.gmra.mxu0 %v4647
      %v4945 = vpop.f32.mrf.mxu0
      %v4946 = vadd.f32 0.0, %v4945
      %v4947 = vpop.f32.mrf.mxu0
      %v4948 = vpop.f32.mrf.mxu0
      %v4949 = vadd.f32 0.0, %v4948
      %v4950 = vpop.f32.mrf.mxu0
      %4951 = vmatprep.mubr.bf16.mxu0 0
      %4952 = vmatmul.mubr.bf16.gmra.mxu0 %v4648
      %v4953 = vpop.f32.mrf.mxu0
      %v4954 = vadd.f32 0.0, %v4953
      %v4955 = vpop.f32.mrf.mxu0
      %v4956 = vpop.f32.mrf.mxu0
      %v4957 = vadd.f32 0.0, %v4956
      %v4958 = vpop.f32.mrf.mxu0
      %4959 = vmatprep.mubr.bf16.mxu0 0
      %4960 = vmatmul.mubr.bf16.gmra.mxu0 %v4649
      %v4961 = vpop.f32.mrf.mxu0
      %v4962 = vadd.f32 0.0, %v4961
      %v4963 = vpop.f32.mrf.mxu0
      %v4964 = vpop.f32.mrf.mxu0
      %v4965 = vadd.f32 0.0, %v4964
      %v4966 = vpop.f32.mrf.mxu0
      %4967 = vmatprep.mubr.bf16.mxu0 0
      %4968 = vmatmul.mubr.bf16.gmra.mxu0 %v4650
      %v4969 = vpop.f32.mrf.mxu0
      %v4970 = vadd.f32 0.0, %v4969
      %v4971 = vpop.f32.mrf.mxu0
      %v4972 = vpop.f32.mrf.mxu0
      %v4973 = vadd.f32 0.0, %v4972
      %v4974 = vpop.f32.mrf.mxu0
      %4975 = vmatprep.mubr.bf16.mxu0 0
      %4976 = vmatmul.mubr.bf16.gmra.mxu0 %v4651
      %v4977 = vpop.f32.mrf.mxu0
      %v4978 = vadd.f32 0.0, %v4977
      %v4979 = vpop.f32.mrf.mxu0
      %v4980 = vpop.f32.mrf.mxu0
      %v4981 = vadd.f32 0.0, %v4980
      %v4982 = vpop.f32.mrf.mxu0
      %4983 = vmatprep.mubr.bf16.mxu0 0
      %4984 = vmatmul.mubr.bf16.gmra.mxu0 %v4652
      %v4985 = vpop.f32.mrf.mxu0
      %v4986 = vadd.f32 0.0, %v4985
      %v4987 = vpop.f32.mrf.mxu0
      %v4988 = vpop.f32.mrf.mxu0
      %v4989 = vadd.f32 0.0, %v4988
      %v4990 = vpop.f32.mrf.mxu0
      %4991 = vdwg.mxu0
      %v4992 = vmax.f32 %v4752, %v4922
      %v4993 = vmax.f32 %v4755, %v4925
      %v4994 = vmax.f32 %v4760, %v4930
      %v4995 = vmax.f32 %v4763, %v4933
      %v4996 = vmax.f32 %v4768, %v4938
      %v4997 = vmax.f32 %v4771, %v4941
      %v4998 = vmax.f32 %v4776, %v4946
      %v4999 = vmax.f32 %v4779, %v4949
      %v5000 = vmax.f32 %v4784, %v4954
      %v5001 = vmax.f32 %v4787, %v4957
      %v5002 = vmax.f32 %v4792, %v4962
      %v5003 = vmax.f32 %v4795, %v4965
      %v5004 = vmax.f32 %v4800, %v4970
      %v5005 = vmax.f32 %v4803, %v4973
      %v5006 = vmax.f32 %v4808, %v4978
      %v5007 = vmax.f32 %v4811, %v4981
      %v5008 = vmax.f32 %v4816, %v4986
      %v5009 = vmax.f32 %v4819, %v4989
      %v5010 = vpack.c.bf16 %v4993, %v4992
      %v5011 = vpack.c.bf16 %v4995, %v4994
      %v5012 = vpack.c.bf16 %v4997, %v4996
      %v5013 = vpack.c.bf16 %v4999, %v4998
      %v5014 = vpack.c.bf16 %v5001, %v5000
      %v5015 = vpack.c.bf16 %v5003, %v5002
      %v5016 = vpack.c.bf16 %v5005, %v5004
      %v5017 = vpack.c.bf16 %v5007, %v5006
      %v5018 = vpack.c.bf16 %v5009, %v5008
      %v5019 = vld [vmem:[%s5] sm:$0xff]
      %v5020 = vld [vmem:[%s5 + $0x8] sm:$0xff]
      %v5021 = vld [vmem:[%s5 + $0x10] sm:$0xff]
      %v5022 = vld [vmem:[%s5 + $0x18] sm:$0xff]
      %v5023 = vld [vmem:[%s5 + $0x20] sm:$0xff]
      %v5024 = vld [vmem:[%s5 + $0x28] sm:$0xff]
      %v5025 = vld [vmem:[%s5 + $0x30] sm:$0xff]
      %v5026 = vld [vmem:[%s5 + $0x38] sm:$0xff]
      %v5035 = vunpack.c.l.b16 %v5019
      %v5036 = vunpack.c.h.b16 %v5019
      %v5037 = vunpack.c.l.b16 %v5020
      %v5038 = vunpack.c.h.b16 %v5020
      %v5039 = vunpack.c.l.b16 %v5021
      %v5040 = vunpack.c.h.b16 %v5021
      %v5041 = vunpack.c.l.b16 %v5022
      %v5042 = vunpack.c.h.b16 %v5022
      %v5043 = vunpack.c.l.b16 %v5023
      %v5044 = vunpack.c.h.b16 %v5023
      %v5045 = vunpack.c.l.b16 %v5024
      %v5046 = vunpack.c.h.b16 %v5024
      %v5047 = vunpack.c.l.b16 %v5025
      %v5048 = vunpack.c.h.b16 %v5025
      %v5049 = vunpack.c.l.b16 %v5026
      %v5050 = vunpack.c.h.b16 %v5026
      %v5051 = vpack.c.b16 %v5037, %v5035
      %v5052 = vpack.c.b16 %v5038, %v5036
      %v5053 = vpack.c.b16 %v5041, %v5039
      %v5054 = vpack.c.b16 %v5042, %v5040
      %v5055 = vpack.c.b16 %v5045, %v5043
      %v5056 = vpack.c.b16 %v5046, %v5044
      %v5057 = vpack.c.b16 %v5049, %v5047
      %v5058 = vpack.c.b16 %v5050, %v5048
      %vm5063 = vcmask 130048
      %v5065 = vsel %vm5063, %v5052, 0
      %v5068 = vsel %vm5063, %v5054, 0
      %v5071 = vsel %vm5063, %v5056, 0
      %v5074 = vsel %vm5063, %v5058, 0
      %5076 = vmatprep.subr.bf16.mxu0 0
      %5077 = vmatpush1.bf16.msra.mxu0 %v5017
      %5078 = vmatprep.subr.bf16.mxu0 0
      %5079 = vmatpush1.bf16.msra.mxu0 %v5016
      %5080 = vmatprep.subr.bf16.mxu0 0
      %5081 = vmatpush1.bf16.msra.mxu0 %v5015
      %5082 = vmatprep.subr.bf16.mxu0 0
      %5083 = vmatpush1.bf16.msra.mxu0 %v5014
      %5084 = vmatprep.subr.bf16.mxu0 0
      %5085 = vmatpush1.bf16.msra.mxu0 %v5013
      %5086 = vmatprep.subr.bf16.mxu0 0
      %5087 = vmatpush1.bf16.msra.mxu0 %v5012
      %5088 = vmatprep.subr.bf16.mxu0 0
      %5089 = vmatpush1.bf16.msra.mxu0 %v5011
      %5090 = vmatprep.subr.bf16.mxu0 0
      %5091 = vmatpush1.bf16.msra.mxu0 %v5010
      %5092 = vmatprep.subr.bf16.mxu0 0
      %5093 = vmatpush2.bf16.msra.mxu0 0
      %5094 = vmatprep.subr.bf16.mxu0 0
      %5095 = vmatpush2.bf16.msra.mxu0 0
      %5096 = vmatprep.subr.bf16.mxu0 0
      %5097 = vmatpush2.bf16.msra.mxu0 0
      %5098 = vmatprep.subr.bf16.mxu0 0
      %5099 = vmatpush2.bf16.msra.mxu0 0
      %5100 = vmatprep.subr.bf16.mxu0 0
      %5101 = vmatpush2.bf16.msra.mxu0 0
      %5102 = vmatprep.subr.bf16.mxu0 0
      %5103 = vmatpush2.bf16.msra.mxu0 0
      %5104 = vmatprep.subr.bf16.mxu0 0
      %5105 = vmatpush2.bf16.msra.mxu0 0
      %5106 = vmatprep.subr.bf16.mxu0 0
      %5107 = vmatpush2.bf16.msra.mxu0 %v5018
      %5108 = vmatprep.mubr.bf16.mxu0 %v5065
      %5109 = vmatmul.mubr.bf16.gmra.mxu0 %v5051
      %v5110 = vpop.f32.mrf.mxu0
      %v5111 = vadd.f32 0.0, %v5110
      %v5112 = vpop.f32.mrf.mxu0
      %v5113 = vpop.f32.mrf.mxu0
      %v5114 = vadd.f32 0.0, %v5113
      %v5115 = vpop.f32.mrf.mxu0
      %5116 = vmatprep.mubr.bf16.mxu0 %v5068
      %5117 = vmatmul.mubr.bf16.gmra.mxu0 %v5053
      %v5118 = vpop.f32.mrf.mxu0
      %v5119 = vadd.f32 0.0, %v5118
      %v5120 = vpop.f32.mrf.mxu0
      %v5121 = vpop.f32.mrf.mxu0
      %v5122 = vadd.f32 0.0, %v5121
      %v5123 = vpop.f32.mrf.mxu0
      %5124 = vmatprep.mubr.bf16.mxu0 %v5071
      %5125 = vmatmul.mubr.bf16.gmra.mxu0 %v5055
      %v5126 = vpop.f32.mrf.mxu0
      %v5127 = vadd.f32 0.0, %v5126
      %v5128 = vpop.f32.mrf.mxu0
      %v5129 = vpop.f32.mrf.mxu0
      %v5130 = vadd.f32 0.0, %v5129
      %v5131 = vpop.f32.mrf.mxu0
      %5132 = vmatprep.mubr.bf16.mxu0 %v5074
      %5133 = vmatmul.mubr.bf16.gmra.mxu0 %v5057
      %v5134 = vpop.f32.mrf.mxu0
      %v5135 = vadd.f32 0.0, %v5134
      %v5136 = vpop.f32.mrf.mxu0
      %v5137 = vpop.f32.mrf.mxu0
      %v5138 = vadd.f32 0.0, %v5137
      %v5139 = vpop.f32.mrf.mxu0
      %5140 = vdwg.mxu0
      %s5141 = scalar_lea.vmem %s5, 64
      %v5142 = vld [vmem:[%s5141] sm:$0xff]
      %v5143 = vld [vmem:[%s5141 + $0x8] sm:$0xff]
      %v5144 = vld [vmem:[%s5141 + $0x10] sm:$0xff]
      %v5145 = vld [vmem:[%s5141 + $0x18] sm:$0xff]
      %v5146 = vld [vmem:[%s5141 + $0x20] sm:$0xff]
      %v5147 = vld [vmem:[%s5141 + $0x28] sm:$0xff]
      %v5148 = vld [vmem:[%s5141 + $0x30] sm:$0xff]
      %v5149 = vld [vmem:[%s5141 + $0x38] sm:$0xff]
      %v5158 = vunpack.c.l.b16 %v5142
      %v5159 = vunpack.c.h.b16 %v5142
      %v5160 = vunpack.c.l.b16 %v5143
      %v5161 = vunpack.c.h.b16 %v5143
      %v5162 = vunpack.c.l.b16 %v5144
      %v5163 = vunpack.c.h.b16 %v5144
      %v5164 = vunpack.c.l.b16 %v5145
      %v5165 = vunpack.c.h.b16 %v5145
      %v5166 = vunpack.c.l.b16 %v5146
      %v5167 = vunpack.c.h.b16 %v5146
      %v5168 = vunpack.c.l.b16 %v5147
      %v5169 = vunpack.c.h.b16 %v5147
      %v5170 = vunpack.c.l.b16 %v5148
      %v5171 = vunpack.c.h.b16 %v5148
      %v5172 = vunpack.c.l.b16 %v5149
      %v5173 = vunpack.c.h.b16 %v5149
      %v5174 = vpack.c.b16 %v5160, %v5158
      %v5175 = vpack.c.b16 %v5161, %v5159
      %v5176 = vpack.c.b16 %v5164, %v5162
      %v5177 = vpack.c.b16 %v5165, %v5163
      %v5178 = vpack.c.b16 %v5168, %v5166
      %v5179 = vpack.c.b16 %v5169, %v5167
      %v5180 = vpack.c.b16 %v5172, %v5170
      %v5181 = vpack.c.b16 %v5173, %v5171
      %v5187 = vsel %vm5063, %v5175, 0
      %v5190 = vsel %vm5063, %v5177, 0
      %v5193 = vsel %vm5063, %v5179, 0
      %v5196 = vsel %vm5063, %v5181, 0
      %5198 = vmatprep.subr.bf16.mxu0 0
      %5199 = vmatpush1.bf16.msra.mxu0 %v5017
      %5200 = vmatprep.subr.bf16.mxu0 0
      %5201 = vmatpush1.bf16.msra.mxu0 %v5016
      %5202 = vmatprep.subr.bf16.mxu0 0
      %5203 = vmatpush1.bf16.msra.mxu0 %v5015
      %5204 = vmatprep.subr.bf16.mxu0 0
      %5205 = vmatpush1.bf16.msra.mxu0 %v5014
      %5206 = vmatprep.subr.bf16.mxu0 0
      %5207 = vmatpush1.bf16.msra.mxu0 %v5013
      %5208 = vmatprep.subr.bf16.mxu0 0
      %5209 = vmatpush1.bf16.msra.mxu0 %v5012
      %5210 = vmatprep.subr.bf16.mxu0 0
      %5211 = vmatpush1.bf16.msra.mxu0 %v5011
      %5212 = vmatprep.subr.bf16.mxu0 0
      %5213 = vmatpush1.bf16.msra.mxu0 %v5010
      %5214 = vmatprep.subr.bf16.mxu0 0
      %5215 = vmatpush2.bf16.msra.mxu0 0
      %5216 = vmatprep.subr.bf16.mxu0 0
      %5217 = vmatpush2.bf16.msra.mxu0 0
      %5218 = vmatprep.subr.bf16.mxu0 0
      %5219 = vmatpush2.bf16.msra.mxu0 0
      %5220 = vmatprep.subr.bf16.mxu0 0
      %5221 = vmatpush2.bf16.msra.mxu0 0
      %5222 = vmatprep.subr.bf16.mxu0 0
      %5223 = vmatpush2.bf16.msra.mxu0 0
      %5224 = vmatprep.subr.bf16.mxu0 0
      %5225 = vmatpush2.bf16.msra.mxu0 0
      %5226 = vmatprep.subr.bf16.mxu0 0
      %5227 = vmatpush2.bf16.msra.mxu0 0
      %5228 = vmatprep.subr.bf16.mxu0 0
      %5229 = vmatpush2.bf16.msra.mxu0 %v5018
      %5230 = vmatprep.mubr.bf16.mxu0 %v5187
      %5231 = vmatmul.mubr.bf16.gmra.mxu0 %v5174
      %v5232 = vpop.f32.mrf.mxu0
      %v5233 = vadd.f32 0.0, %v5232
      %v5234 = vpop.f32.mrf.mxu0
      %v5235 = vpop.f32.mrf.mxu0
      %v5236 = vadd.f32 0.0, %v5235
      %v5237 = vpop.f32.mrf.mxu0
      %5238 = vmatprep.mubr.bf16.mxu0 %v5190
      %5239 = vmatmul.mubr.bf16.gmra.mxu0 %v5176
      %v5240 = vpop.f32.mrf.mxu0
      %v5241 = vadd.f32 0.0, %v5240
      %v5242 = vpop.f32.mrf.mxu0
      %v5243 = vpop.f32.mrf.mxu0
      %v5244 = vadd.f32 0.0, %v5243
      %v5245 = vpop.f32.mrf.mxu0
      %5246 = vmatprep.mubr.bf16.mxu0 %v5193
      %5247 = vmatmul.mubr.bf16.gmra.mxu0 %v5178
      %v5248 = vpop.f32.mrf.mxu0
      %v5249 = vadd.f32 0.0, %v5248
      %v5250 = vpop.f32.mrf.mxu0
      %v5251 = vpop.f32.mrf.mxu0
      %v5252 = vadd.f32 0.0, %v5251
      %v5253 = vpop.f32.mrf.mxu0
      %5254 = vmatprep.mubr.bf16.mxu0 %v5196
      %5255 = vmatmul.mubr.bf16.gmra.mxu0 %v5180
      %v5256 = vpop.f32.mrf.mxu0
      %v5257 = vadd.f32 0.0, %v5256
      %v5258 = vpop.f32.mrf.mxu0
      %v5259 = vpop.f32.mrf.mxu0
      %v5260 = vadd.f32 0.0, %v5259
      %v5261 = vpop.f32.mrf.mxu0
      %5262 = vdwg.mxu0
      %v5263 = vmax.f32 %v5111, %v5233
      %v5264 = vmax.f32 %v5114, %v5236
      %v5265 = vmax.f32 %v5119, %v5241
      %v5266 = vmax.f32 %v5122, %v5244
      %v5267 = vmax.f32 %v5127, %v5249
      %v5268 = vmax.f32 %v5130, %v5252
      %v5269 = vmax.f32 %v5135, %v5257
      %v5270 = vmax.f32 %v5138, %v5260
      %5271 = vst.msk [vmem:[%s291] sm:$0xff] %vm501, %v5263
      %5272 = vst.msk [vmem:[%s291 + $0x8] sm:$0xff] %vm501, %v5264
      %5273 = vst.msk [vmem:[%s291 + $0x10] sm:$0xff] %vm501, %v5265
      %5274 = vst.msk [vmem:[%s291 + $0x18] sm:$0xff] %vm501, %v5266
      %5275 = vst.msk [vmem:[%s291 + $0x20] sm:$0xff] %vm501, %v5267
      %5276 = vst.msk [vmem:[%s291 + $0x28] sm:$0xff] %vm501, %v5268
      %5277 = vst.msk [vmem:[%s291 + $0x30] sm:$0xff] %vm501, %v5269
      %5278 = vst.msk [vmem:[%s291 + $0x38] sm:$0xff] %vm501, %v5270
      %p5279 = scmp.lt.s32.totalorder %s19, 1
      %s5280 = scalar_select %p5279, %s19, 1
      %s5281 = smul.addr %s5280, 16
      %s5282 = smul.addr %s5281, 8
      %s5283 = scalar_lea.vmem %s6, %s5282
      %p5284 = scmp.lt.s32.totalorder %s19, 1
      %s5285 = scalar_select %p5284, %s19, 1
      %s5286 = smul.addr %s5285, 8
      %s5287 = smul.addr %s5286, 8
      %s5288 = scalar_lea.vmem %s7, %s5287
      // Predicated region
      $region45: #{unet_down_forward.1} parent=43 // pred_check
        %p5289 = pneg %p168
      $region46: #{unet_down_forward.1} parent=43 // pred_check_branch
        %5291 = sbr.rel (%p5289) target = $region48
      $region47: #{unet_down_forward.1} parent=43 // pred_region
        _
      $region48: #{unet_down_forward.1} parent=43 // pred_fallthru
        _
      // Predicated region
      $region49: #{unet_down_forward.1} parent=43 // pred_check
        %p5292 = pneg %p194
      $region50: #{unet_down_forward.1} parent=43 // pred_check_branch
        %5294 = sbr.rel (%p5292) target = $region52
      $region51: #{unet_down_forward.1} parent=43 // pred_region
        _
      $region52: #{unet_down_forward.1} parent=43 // pred_fallthru
        _
    $region44: #{unet_down_forward.1} parent=5 // pred_fallthru
      _
    %p5295 = scmp.le.s32.totalorder 2, %s14
    // Predicated region
    $region53: #{unet_down_forward.1} parent=5 // pred_check
      %p5296 = pneg %p5295
    $region54: #{unet_down_forward.1} parent=5 // pred_check_branch
      %5298 = sbr.rel (%p5296) target = $region56
    $region55: #{unet_down_forward.1} parent=5 // pred_region
      %s5299 = ssub.s32 %s14, 2
      // Predicated region
      $region57: #{unet_down_forward.1} parent=55 // pred_check
        %p5300 = pneg %p174
      $region58: #{unet_down_forward.1} parent=55 // pred_check_branch
        %5302 = sbr.rel (%p5300) target = $region60
      $region59: #{unet_down_forward.1} parent=55 // pred_region
        %p5303 = scmp.lt.s32.totalorder %s20, 1
        %s5304 = scalar_select %p5303, %s20, 1
        %s5305 = smul.addr %s5304, 16
        %s5306 = smul.addr %s5305, 8
        %s5307 = scalar_lea.vmem %s6, %s5306
      $region60: #{unet_down_forward.1} parent=55 // pred_fallthru
        _
      // Predicated region
      $region61: #{unet_down_forward.1} parent=55 // pred_check
        %p5308 = pneg %p200
      $region62: #{unet_down_forward.1} parent=55 // pred_check_branch
        %5310 = sbr.rel (%p5308) target = $region64
      $region63: #{unet_down_forward.1} parent=55 // pred_region
        %p5311 = scmp.lt.s32.totalorder %s20, 1
        %s5312 = scalar_select %p5311, %s20, 1
        %s5313 = smul.addr %s5312, 8
        %s5314 = smul.addr %s5313, 8
        %s5315 = scalar_lea.vmem %s7, %s5314
      $region64: #{unet_down_forward.1} parent=55 // pred_fallthru
        _
    $region56: #{unet_down_forward.1} parent=5 // pred_fallthru
      _
  $region6: #{unet_down_forward.1} parent=0 // loop_footer
    %s18 = sadd.s32 1, %s14
  $region7: #{unet_down_forward.1} parent=0 // loop_footer_branch
    %13 = sbr.rel target = $region3
  $region8: #{unet_down_forward.1} parent=0 // loop_exit
    _

</llo_original>
